<compile_context>
chip_gen: v5e
topology: v5e:2x2
jax: 0.10.0
libtpu: 0.0.40
codegen_flags: <defaults>
</compile_context>

<pallas_src>
import functools

import jax
import jax.numpy as jnp
from jax.experimental import pallas as pl
from jax.experimental.pallas import tpu as pltpu


def _disc_opt_block_kernel(x_ref, xsc_ref,
                           w1_ref, b1_ref, w2_ref, b2_ref, w3_ref, b3_ref,
                           o_ref, tri_ref, y2_ref, *, H, W, CP):
    HW = H * W
    Hh, Wh = H // 2, W // 2
    bf16 = jnp.bfloat16

    # Zero only the H-halo rows of the shared shifted-operand scratch.  Done
    # every grid step (not @pl.when(n == 0)): under "parallel" partitioning a
    # TensorCore may never execute n == 0 yet still owns its own scratch.
    zrow = jnp.zeros((W, 3 * CP), bf16)
    tri_ref[pl.ds(0, W), :] = zrow
    tri_ref[pl.ds(W + HW, W), :] = zrow

    # Row masks for the W-direction shifts (zero the wrapped edge columns).
    wpos = jax.lax.broadcasted_iota(jnp.int32, (HW, 1), 0) % W
    not_w_first = wpos != 0
    not_w_last = wpos != (W - 1)

    def shifted_triple(v):
        # v: (HW, CP) f32 -> (HW, 3*CP) bf16 = [v(w-1) | v(w) | v(w+1)], with
        # zeros where the shift crosses an image column edge.  Shifts are XLU
        # rolls, so no sublane-misaligned window copies are materialized.
        left = jnp.where(not_w_first, pltpu.roll(v, 1, 0), 0.0)
        right = jnp.where(not_w_last, pltpu.roll(v, HW - 1, 0), 0.0)  # roll by -1
        return jnp.concatenate([left, v, right], axis=1).astype(bf16)

    def conv3x3(w_ref):
        # im2col-merged 3x3 conv: 3 matmuls with K = 3*CP; the per-dh operands
        # are sublane-aligned leading-row views of the H-haloed scratch.
        acc = jnp.dot(tri_ref[pl.ds(0, HW), :], w_ref[0],
                      preferred_element_type=jnp.float32)
        acc += jnp.dot(tri_ref[pl.ds(W, HW), :], w_ref[1],
                       preferred_element_type=jnp.float32)
        acc += jnp.dot(tri_ref[pl.ds(2 * W, HW), :], w_ref[2],
                       preferred_element_type=jnp.float32)
        return acc

    # ---------------- conv1 (3x3, pad 1) + bias + ReLU ----------------------
    tri_ref[pl.ds(W, HW), :] = shifted_triple(x_ref[...])
    y1 = jnp.maximum(conv3x3(w1_ref) + b1_ref[...], 0.0)

    # ---------------- conv2 (3x3, pad 1); bias folded in after the pool -----
    tri_ref[pl.ds(W, HW), :] = shifted_triple(y1)
    acc2 = conv3x3(w2_ref)

    # ---------------- 2x2 average pool of the main branch -------------------
    # W-pair sums via one XLU roll (even-w rows hold the pair sums), compacted
    # with a single stride-2 sublane load; H-pair sums via a free leading-dim
    # reshape + VPU add.  avg(y + b2) == avg(y) + b2, so b2 is added here.
    y2_ref[...] = acc2 + pltpu.roll(acc2, HW - 1, 0)            # roll by -1
    pw = y2_ref[pl.ds(0, H * Wh, stride=2), :]                  # (H*Wh, CP)
    main = 0.25 * jnp.sum(pw.reshape(Hh, 2, Wh, CP), axis=1) + b2_ref[...]

    # ---------------- shortcut: (pre-pooled x) @ 1x1 conv -------------------
    sc = jnp.dot(xsc_ref[...], w3_ref[...],
                 preferred_element_type=jnp.float32) + b3_ref[...]

    o_ref[...] = (main + sc.reshape(Hh, Wh, CP)).astype(o_ref.dtype)


def _spectral_sigma(w_mat, n_iter=50, eps=1e-12):
    """Top singular value of the (out, -1)-reshaped conv weight (power iteration)."""
    u = jnp.ones((w_mat.shape[0],), jnp.float32)
    u = u / (jnp.linalg.norm(u) + eps)
    v = jnp.zeros((w_mat.shape[1],), jnp.float32)
    wm = w_mat.astype(jnp.float32)
    for _ in range(n_iter):
        v = wm.T @ u
        v = v / (jnp.linalg.norm(v) + eps)
        u = wm @ v
        u = u / (jnp.linalg.norm(u) + eps)
    return jnp.vdot(u, wm @ v)


def _round_up(v, m):
    return ((v + m - 1) // m) * m


def disc_opt_block(x, w1, b1, w2, b2, w3, b3):
    """Forward pass of DiscOptBlock.

    x : (N, Cin, H, W)  NCHW (PyTorch convention)
    w1: (Cout, Cin, 3, 3), b1: (Cout,)   -- snconv1
    w2: (Cout, Cout, 3, 3), b2: (Cout,)  -- snconv2
    w3: (Cout, Cin, 1, 1), b3: (Cout,)   -- snconv3 (shortcut)
    returns (N, Cout, H//2, W//2)
    """
    N, Cin, H, W = x.shape
    Cout = w1.shape[0]
    assert H % 2 == 0 and W % 2 == 0
    Hh, Wh = H // 2, W // 2
    HW = H * W

    # Spectral weight normalization (pure weight preprocessing, outside kernel).
    w1n = w1 / _spectral_sigma(w1.reshape(Cout, -1))
    w2n = w2 / _spectral_sigma(w2.reshape(Cout, -1))
    w3n = w3 / _spectral_sigma(w3.reshape(Cout, -1))

    # Channels padded to a 128-lane multiple: lane-dense loads/stores, full MXU
    # output columns.  Padded weight/bias slots are zero, so padded output
    # channels stay exactly zero and are sliced off at the end.
    CP = _round_up(max(Cin, Cout, 1), 128)

    x_nhwc = jnp.transpose(x, (0, 2, 3, 1)).astype(jnp.float32)     # (N,H,W,Cin)
    x_p = jnp.zeros((N, H, W, CP), jnp.float32).at[..., :Cin].set(x_nhwc)
    x_flat = x_p.reshape(N, HW, CP)
    # Pre-pooled shortcut input (x is shipped to the kernel only once).
    xsc = x_p.reshape(N, Hh, 2, Wh, 2, CP).mean(axis=(2, 4))
    xsc = xsc.reshape(N, Hh * Wh, CP).astype(jnp.bfloat16)

    def pack3x3(w, cin):
        # (Cout, cin, 3, 3) -> (3, 3*CP, CP) bf16 with K index = dw*CP + ci.
        wt = jnp.transpose(w, (2, 3, 1, 0)).astype(jnp.float32)     # (3,3,cin,Cout)
        wp = jnp.zeros((3, 3, CP, CP), jnp.float32).at[:, :, :cin, :Cout].set(wt)
        return wp.reshape(3, 3 * CP, CP).astype(jnp.bfloat16)

    w1h = pack3x3(w1n, Cin)
    w2h = pack3x3(w2n, Cout)
    w3h = (jnp.zeros((CP, CP), jnp.float32)
           .at[:Cin, :Cout].set(jnp.transpose(w3n[:, :, 0, 0], (1, 0))
                                .astype(jnp.float32))
           .astype(jnp.bfloat16))

    def packb(b):
        return jnp.zeros((1, CP), jnp.float32).at[0, :Cout].set(b.astype(jnp.float32))

    b1r, b2r, b3r = packb(b1), packb(b2), packb(b3)

    # VMEM budget: double-buffered streams + scratch + live f32 temporaries,
    # 2x headroom, clamped against the chip's physical VMEM (v7x: 64 MiB).
    est = (2 * HW * CP * 4                                   # x blocks
           + 2 * Hh * Wh * CP * 2                            # pooled shortcut blocks
           + 2 * (2 * 3 * 3 * CP * CP + CP * CP) * 2         # weights (bf16)
           + 2 * 3 * CP * 4                                  # biases
           + 2 * Hh * Wh * CP * 4                            # output blocks
           + (H + 2) * W * 3 * CP * 2                        # shifted-triple scratch
           + HW * CP * 4                                     # W-pair-sum scratch
           + HW * 3 * CP * 4 + 6 * HW * CP * 4)              # live temporaries
    try:
        cap = pltpu.get_tpu_info().vmem_capacity_bytes
    except Exception:  # conservative fallback (v7x-sized)
        cap = 64 * 1024 * 1024
    vmem_limit = int(min(max(2 * est, 16 * 1024 * 1024), (3 * cap) // 4))

    kernel = functools.partial(_disc_opt_block_kernel, H=H, W=W, CP=CP)
    out = pl.pallas_call(
        kernel,
        out_shape=jax.ShapeDtypeStruct((N, Hh, Wh, CP), x.dtype),
        grid_spec=pltpu.PrefetchScalarGridSpec(
            num_scalar_prefetch=0,
            grid=(N,),
            in_specs=[
                pl.BlockSpec((None, HW, CP), lambda n: (n, 0, 0)),
                pl.BlockSpec((None, Hh * Wh, CP), lambda n: (n, 0, 0)),
                pl.BlockSpec((3, 3 * CP, CP), lambda n: (0, 0, 0)),
                pl.BlockSpec((1, CP), lambda n: (0, 0)),
                pl.BlockSpec((3, 3 * CP, CP), lambda n: (0, 0, 0)),
                pl.BlockSpec((1, CP), lambda n: (0, 0)),
                pl.BlockSpec((CP, CP), lambda n: (0, 0)),
                pl.BlockSpec((1, CP), lambda n: (0, 0)),
            ],
            out_specs=pl.BlockSpec((None, Hh, Wh, CP), lambda n: (n, 0, 0, 0)),
            scratch_shapes=[
                pltpu.VMEM(((H + 2) * W, 3 * CP), jnp.bfloat16),  # shifted taps
                pltpu.VMEM((HW, CP), jnp.float32),                # W-pair sums
            ],
        ),
        compiler_params=pltpu.CompilerParams(
            dimension_semantics=("parallel",),
            vmem_limit_bytes=vmem_limit,
        ),
    )(x_flat, xsc, w1h, b1r, w2h, b2r, w3h, b3r)

    return jnp.transpose(out[..., :Cout], (0, 3, 1, 2))


# ------------------------------ reference ----------------------------------
def _avgpool2_nchw(x):
    N, C, H, W = x.shape
    return x.reshape(N, C, H // 2, 2, W // 2, 2).mean(axis=(3, 5))


def reference(x, w1, b1, w2, b2, w3, b3):
    N, Cin, H, W = x.shape
    Cout = w1.shape[0]
    w1n = w1 / _spectral_sigma(w1.reshape(Cout, -1))
    w2n = w2 / _spectral_sigma(w2.reshape(Cout, -1))
    w3n = w3 / _spectral_sigma(w3.reshape(Cout, -1))
    dn = ("NCHW", "OIHW", "NCHW")
    hp = jax.lax.Precision.HIGHEST
    y = jax.lax.conv_general_dilated(x, w1n, (1, 1), ((1, 1), (1, 1)),
                                     dimension_numbers=dn, precision=hp)
    y = jnp.maximum(y + b1[None, :, None, None], 0.0)
    y = jax.lax.conv_general_dilated(y, w2n, (1, 1), ((1, 1), (1, 1)),
                                     dimension_numbers=dn, precision=hp)
    y = _avgpool2_nchw(y + b2[None, :, None, None])
    s = _avgpool2_nchw(x)
    s = jax.lax.conv_general_dilated(s, w3n, (1, 1), ((0, 0), (0, 0)),
                                     dimension_numbers=dn, precision=hp)
    s = s + b3[None, :, None, None]
    return y + s


if __name__ == "__main__":
    key = jax.random.PRNGKey(0)
    N, in_ch, out_ch, H, W = 2, 4, 8, 16, 16
    ks = jax.random.split(key, 7)

    x = jax.random.normal(ks[0], (N, in_ch, H, W), dtype=jnp.float32)
    w1 = 0.2 * jax.random.normal(ks[1], (out_ch, in_ch, 3, 3), dtype=jnp.float32)
    b1 = 0.3 * jax.random.normal(ks[2], (out_ch,), dtype=jnp.float32)
    w2 = 0.2 * jax.random.normal(ks[3], (out_ch, out_ch, 3, 3), dtype=jnp.float32)
    b2 = 0.3 * jax.random.normal(ks[4], (out_ch,), dtype=jnp.float32)
    w3 = 0.2 * jax.random.normal(ks[5], (out_ch, in_ch, 1, 1), dtype=jnp.float32)
    b3 = 0.3 * jax.random.normal(ks[6], (out_ch,), dtype=jnp.float32)

    out = disc_opt_block(x, w1, b1, w2, b2, w3, b3)
    out = jax.block_until_ready(out)

    ref = reference(x, w1, b1, w2, b2, w3, b3)
    assert out.shape == (N, out_ch, H // 2, W // 2)
    max_err = float(jnp.max(jnp.abs(out - ref)))
    assert jnp.allclose(out, ref, atol=5e-2, rtol=5e-2), max_err
    print("KERNEL_OK")
</pallas_src>

<mosaic_0001>
module attributes {stable_mosaic.version = 11 : i64} {
  func.func @_disc_opt_block_kernel(%arg0: i32, %arg1: memref<1x256x128xf32, #tpu.memory_space<vmem>>, %arg2: memref<1x64x128xbf16, #tpu.memory_space<vmem>>, %arg3: memref<3x384x128xbf16, #tpu.memory_space<vmem>>, %arg4: memref<1x128xf32, #tpu.memory_space<vmem>>, %arg5: memref<3x384x128xbf16, #tpu.memory_space<vmem>>, %arg6: memref<1x128xf32, #tpu.memory_space<vmem>>, %arg7: memref<128x128xbf16, #tpu.memory_space<vmem>>, %arg8: memref<1x128xf32, #tpu.memory_space<vmem>>, %arg9: memref<1x8x8x128xf32, #tpu.memory_space<vmem>>, %arg10: memref<288x384xbf16, #tpu.memory_space<vmem>>, %arg11: memref<256x128xf32, #tpu.memory_space<vmem>>) attributes {dimension_semantics = [#tpu.dimension_semantics<parallel>], iteration_bounds = array<i64: 2>, scalar_prefetch = 0 : i64, scratch_operands = 2 : i64, tpu.core_type = #tpu.core_type<tc>, window_params = [{transform_indices = @transform_0, window_bounds = array<i64: 1, 256, 128>}, {transform_indices = @transform_1, window_bounds = array<i64: 1, 64, 128>}, {pipeline_mode = #tpu.pipeline_mode<synchronous>, transform_indices = @transform_2, window_bounds = array<i64: 3, 384, 128>}, {pipeline_mode = #tpu.pipeline_mode<synchronous>, transform_indices = @transform_3, window_bounds = array<i64: 1, 128>}, {pipeline_mode = #tpu.pipeline_mode<synchronous>, transform_indices = @transform_4, window_bounds = array<i64: 3, 384, 128>}, {pipeline_mode = #tpu.pipeline_mode<synchronous>, transform_indices = @transform_5, window_bounds = array<i64: 1, 128>}, {pipeline_mode = #tpu.pipeline_mode<synchronous>, transform_indices = @transform_6, window_bounds = array<i64: 128, 128>}, {pipeline_mode = #tpu.pipeline_mode<synchronous>, transform_indices = @transform_7, window_bounds = array<i64: 1, 128>}, {transform_indices = @transform_8, window_bounds = array<i64: 1, 8, 8, 128>}]} {
    %cst = arith.constant 0.000000e+00 : bf16
    %0 = vector.broadcast %cst : bf16 to vector<16x384xbf16>
    %c0 = arith.constant 0 : index
    %c0_0 = arith.constant 0 : index
    %1 = vector.load %arg10[%c0, %c0_0] : memref<288x384xbf16, #tpu.memory_space<vmem>>, vector<16x384xbf16>
    tpu.vector_store %arg10[%c0, %c0_0], %0 {strides = array<i32>} : memref<288x384xbf16, #tpu.memory_space<vmem>>, vector<16x384xbf16>,
    %c272 = arith.constant 272 : index
    %c0_1 = arith.constant 0 : index
    %2 = vector.load %arg10[%c272, %c0_1] : memref<288x384xbf16, #tpu.memory_space<vmem>>, vector<16x384xbf16>
    tpu.vector_store %arg10[%c272, %c0_1], %0 {strides = array<i32>} : memref<288x384xbf16, #tpu.memory_space<vmem>>, vector<16x384xbf16>,
    %3 = tpu.iota {dimensions = array<i32: 0>} : vector<256x1xi32>
    %c16_i32 = arith.constant 16 : i32
    %c0_i32 = arith.constant 0 : i32
    %4 = arith.cmpi eq, %c16_i32, %c0_i32 : i32
    %c1_i32 = arith.constant 1 : i32
    %5 = arith.select %4, %c1_i32, %c16_i32 : i32
    %6 = vector.broadcast %5 : i32 to vector<256x1xi32>
    %7 = arith.remsi %3, %6 : vector<256x1xi32>
    %c0_i32_2 = arith.constant 0 : i32
    %8 = vector.broadcast %c0_i32_2 : i32 to vector<256x1xi32>
    %9 = arith.cmpi ne, %7, %8 : vector<256x1xi32>
    %c0_i32_3 = arith.constant 0 : i32
    %10 = vector.broadcast %c0_i32_3 : i32 to vector<256x1xi32>
    %11 = arith.cmpi slt, %7, %10 : vector<256x1xi32>
    %c0_i32_4 = arith.constant 0 : i32
    %12 = arith.cmpi slt, %5, %c0_i32_4 : i32
    %13 = vector.broadcast %12 : i1 to vector<256x1xi1>
    %14 = vector.broadcast %13 : vector<256x1xi1> to vector<256x1xi1>
    %15 = arith.xori %11, %14 : vector<256x1xi1>
    %16 = arith.andi %15, %9 : vector<256x1xi1>
    %17 = vector.broadcast %5 : i32 to vector<256x1xi32>
    %18 = arith.addi %7, %17 : vector<256x1xi32>
    %19 = arith.select %16, %18, %7 : vector<256x1xi1>, vector<256x1xi32>
    %c0_i32_5 = arith.constant 0 : i32
    %20 = vector.broadcast %c0_i32_5 : i32 to vector<256x1xi32>
    %21 = arith.cmpi ne, %19, %20 : vector<256x1xi32>
    %c15_i32 = arith.constant 15 : i32
    %22 = vector.broadcast %c15_i32 : i32 to vector<256x1xi32>
    %23 = arith.cmpi ne, %19, %22 : vector<256x1xi32>
    %c0_6 = arith.constant 0 : index
    %c0_7 = arith.constant 0 : index
    %c0_8 = arith.constant 0 : index
    %24 = vector.load %arg1[%c0_6, %c0_7, %c0_8] : memref<1x256x128xf32, #tpu.memory_space<vmem>>, vector<1x256x128xf32>
    %25 = vector.shape_cast %24 : vector<1x256x128xf32> to vector<256x128xf32>
    %c1_i32_9 = arith.constant 1 : i32
    %26 = tpu.dynamic_rotate %25 by %c1_i32_9 dim 0 : vector<256x128xf32>, i32 -> vector<256x128xf32>
    %cst_10 = arith.constant 0.000000e+00 : f32
    %27 = vector.shape_cast %21 : vector<256x1xi1> to vector<256x1xi1>
    %28 = vector.broadcast %27 : vector<256x1xi1> to vector<256x128xi1>
    %29 = vector.broadcast %cst_10 : f32 to vector<256x128xf32>
    %30 = arith.select %28, %26, %29 : vector<256x128xi1>, vector<256x128xf32>
    %c255_i32 = arith.constant 255 : i32
    %31 = tpu.dynamic_rotate %25 by %c255_i32 dim 0 : vector<256x128xf32>, i32 -> vector<256x128xf32>
    %cst_11 = arith.constant 0.000000e+00 : f32
    %32 = vector.shape_cast %23 : vector<256x1xi1> to vector<256x1xi1>
    %33 = vector.broadcast %32 : vector<256x1xi1> to vector<256x128xi1>
    %34 = vector.broadcast %cst_11 : f32 to vector<256x128xf32>
    %35 = arith.select %33, %31, %34 : vector<256x128xi1>, vector<256x128xf32>
    %36 = tpu.concatenate %30, %25, %35 in 1 : vector<256x128xf32>, vector<256x128xf32>, vector<256x128xf32> -> vector<256x384xf32>
    %37 = arith.truncf %36 : vector<256x384xf32> to vector<256x384xbf16>
    %c16 = arith.constant 16 : index
    %c0_12 = arith.constant 0 : index
    %38 = vector.load %arg10[%c16, %c0_12] : memref<288x384xbf16, #tpu.memory_space<vmem>>, vector<256x384xbf16>
    tpu.vector_store %arg10[%c16, %c0_12], %37 {strides = array<i32>} : memref<288x384xbf16, #tpu.memory_space<vmem>>, vector<256x384xbf16>,
    %c0_13 = arith.constant 0 : index
    %c0_14 = arith.constant 0 : index
    %39 = vector.load %arg10[%c0_13, %c0_14] : memref<288x384xbf16, #tpu.memory_space<vmem>>, vector<256x384xbf16>
    %c0_15 = arith.constant 0 : index
    %c0_16 = arith.constant 0 : index
    %c0_17 = arith.constant 0 : index
    %40 = vector.load %arg3[%c0_15, %c0_16, %c0_17] : memref<3x384x128xbf16, #tpu.memory_space<vmem>>, vector<1x384x128xbf16>
    %41 = vector.shape_cast %40 : vector<1x384x128xbf16> to vector<384x128xbf16>
    %cst_18 = arith.constant dense<0.000000e+00> : vector<256x128xf32>
    %42 = tpu.matmul %39, %41, %cst_18 {dimension_numbers = #tpu.dot_dimension_numbers<[1], [0], [0], [1], [0, 0, 1, 1], [], []>} : vector<256x384xbf16>, vector<384x128xbf16>, vector<256x128xf32> -> vector<256x128xf32>
    %c16_19 = arith.constant 16 : index
    %c0_20 = arith.constant 0 : index
    %43 = vector.load %arg10[%c16_19, %c0_20] : memref<288x384xbf16, #tpu.memory_space<vmem>>, vector<256x384xbf16>
    %c1 = arith.constant 1 : index
    %c0_21 = arith.constant 0 : index
    %c0_22 = arith.constant 0 : index
    %44 = vector.load %arg3[%c1, %c0_21, %c0_22] : memref<3x384x128xbf16, #tpu.memory_space<vmem>>, vector<1x384x128xbf16>
    %45 = vector.shape_cast %44 : vector<1x384x128xbf16> to vector<384x128xbf16>
    %cst_23 = arith.constant dense<0.000000e+00> : vector<256x128xf32>
    %46 = tpu.matmul %43, %45, %cst_23 {dimension_numbers = #tpu.dot_dimension_numbers<[1], [0], [0], [1], [0, 0, 1, 1], [], []>} : vector<256x384xbf16>, vector<384x128xbf16>, vector<256x128xf32> -> vector<256x128xf32>
    %47 = arith.addf %42, %46 : vector<256x128xf32>
    %c32 = arith.constant 32 : index
    %c0_24 = arith.constant 0 : index
    %48 = vector.load %arg10[%c32, %c0_24] : memref<288x384xbf16, #tpu.memory_space<vmem>>, vector<256x384xbf16>
    %c2 = arith.constant 2 : index
    %c0_25 = arith.constant 0 : index
    %c0_26 = arith.constant 0 : index
    %49 = vector.load %arg3[%c2, %c0_25, %c0_26] : memref<3x384x128xbf16, #tpu.memory_space<vmem>>, vector<1x384x128xbf16>
    %50 = vector.shape_cast %49 : vector<1x384x128xbf16> to vector<384x128xbf16>
    %cst_27 = arith.constant dense<0.000000e+00> : vector<256x128xf32>
    %51 = tpu.matmul %48, %50, %cst_27 {dimension_numbers = #tpu.dot_dimension_numbers<[1], [0], [0], [1], [0, 0, 1, 1], [], []>} : vector<256x384xbf16>, vector<384x128xbf16>, vector<256x128xf32> -> vector<256x128xf32>
    %52 = arith.addf %47, %51 : vector<256x128xf32>
    %c0_28 = arith.constant 0 : index
    %c0_29 = arith.constant 0 : index
    %53 = vector.load %arg4[%c0_28, %c0_29] : memref<1x128xf32, #tpu.memory_space<vmem>>, vector<1x128xf32>
    %54 = vector.broadcast %53 : vector<1x128xf32> to vector<256x128xf32>
    %55 = arith.addf %52, %54 : vector<256x128xf32>
    %cst_30 = arith.constant 0.000000e+00 : f32
    %56 = vector.broadcast %cst_30 : f32 to vector<256x128xf32>
    %57 = arith.maximumf %55, %56 : vector<256x128xf32>
    %c1_i32_31 = arith.constant 1 : i32
    %58 = tpu.dynamic_rotate %57 by %c1_i32_31 dim 0 : vector<256x128xf32>, i32 -> vector<256x128xf32>
    %cst_32 = arith.constant 0.000000e+00 : f32
    %59 = vector.shape_cast %21 : vector<256x1xi1> to vector<256x1xi1>
    %60 = vector.broadcast %59 : vector<256x1xi1> to vector<256x128xi1>
    %61 = vector.broadcast %cst_32 : f32 to vector<256x128xf32>
    %62 = arith.select %60, %58, %61 : vector<256x128xi1>, vector<256x128xf32>
    %c255_i32_33 = arith.constant 255 : i32
    %63 = tpu.dynamic_rotate %57 by %c255_i32_33 dim 0 : vector<256x128xf32>, i32 -> vector<256x128xf32>
    %cst_34 = arith.constant 0.000000e+00 : f32
    %64 = vector.shape_cast %23 : vector<256x1xi1> to vector<256x1xi1>
    %65 = vector.broadcast %64 : vector<256x1xi1> to vector<256x128xi1>
    %66 = vector.broadcast %cst_34 : f32 to vector<256x128xf32>
    %67 = arith.select %65, %63, %66 : vector<256x128xi1>, vector<256x128xf32>
    %68 = tpu.concatenate %62, %57, %67 in 1 : vector<256x128xf32>, vector<256x128xf32>, vector<256x128xf32> -> vector<256x384xf32>
    %69 = arith.truncf %68 : vector<256x384xf32> to vector<256x384xbf16>
    %c16_35 = arith.constant 16 : index
    %c0_36 = arith.constant 0 : index
    %70 = vector.load %arg10[%c16_35, %c0_36] : memref<288x384xbf16, #tpu.memory_space<vmem>>, vector<256x384xbf16>
    tpu.vector_store %arg10[%c16_35, %c0_36], %69 {strides = array<i32>} : memref<288x384xbf16, #tpu.memory_space<vmem>>, vector<256x384xbf16>,
    %c0_37 = arith.constant 0 : index
    %c0_38 = arith.constant 0 : index
    %71 = vector.load %arg10[%c0_37, %c0_38] : memref<288x384xbf16, #tpu.memory_space<vmem>>, vector<256x384xbf16>
    %c0_39 = arith.constant 0 : index
    %c0_40 = arith.constant 0 : index
    %c0_41 = arith.constant 0 : index
    %72 = vector.load %arg5[%c0_39, %c0_40, %c0_41] : memref<3x384x128xbf16, #tpu.memory_space<vmem>>, vector<1x384x128xbf16>
    %73 = vector.shape_cast %72 : vector<1x384x128xbf16> to vector<384x128xbf16>
    %cst_42 = arith.constant dense<0.000000e+00> : vector<256x128xf32>
    %74 = tpu.matmul %71, %73, %cst_42 {dimension_numbers = #tpu.dot_dimension_numbers<[1], [0], [0], [1], [0, 0, 1, 1], [], []>} : vector<256x384xbf16>, vector<384x128xbf16>, vector<256x128xf32> -> vector<256x128xf32>
    %c16_43 = arith.constant 16 : index
    %c0_44 = arith.constant 0 : index
    %75 = vector.load %arg10[%c16_43, %c0_44] : memref<288x384xbf16, #tpu.memory_space<vmem>>, vector<256x384xbf16>
    %c1_45 = arith.constant 1 : index
    %c0_46 = arith.constant 0 : index
    %c0_47 = arith.constant 0 : index
    %76 = vector.load %arg5[%c1_45, %c0_46, %c0_47] : memref<3x384x128xbf16, #tpu.memory_space<vmem>>, vector<1x384x128xbf16>
    %77 = vector.shape_cast %76 : vector<1x384x128xbf16> to vector<384x128xbf16>
    %cst_48 = arith.constant dense<0.000000e+00> : vector<256x128xf32>
    %78 = tpu.matmul %75, %77, %cst_48 {dimension_numbers = #tpu.dot_dimension_numbers<[1], [0], [0], [1], [0, 0, 1, 1], [], []>} : vector<256x384xbf16>, vector<384x128xbf16>, vector<256x128xf32> -> vector<256x128xf32>
    %79 = arith.addf %74, %78 : vector<256x128xf32>
    %c32_49 = arith.constant 32 : index
    %c0_50 = arith.constant 0 : index
    %80 = vector.load %arg10[%c32_49, %c0_50] : memref<288x384xbf16, #tpu.memory_space<vmem>>, vector<256x384xbf16>
    %c2_51 = arith.constant 2 : index
    %c0_52 = arith.constant 0 : index
    %c0_53 = arith.constant 0 : index
    %81 = vector.load %arg5[%c2_51, %c0_52, %c0_53] : memref<3x384x128xbf16, #tpu.memory_space<vmem>>, vector<1x384x128xbf16>
    %82 = vector.shape_cast %81 : vector<1x384x128xbf16> to vector<384x128xbf16>
    %cst_54 = arith.constant dense<0.000000e+00> : vector<256x128xf32>
    %83 = tpu.matmul %80, %82, %cst_54 {dimension_numbers = #tpu.dot_dimension_numbers<[1], [0], [0], [1], [0, 0, 1, 1], [], []>} : vector<256x384xbf16>, vector<384x128xbf16>, vector<256x128xf32> -> vector<256x128xf32>
    %84 = arith.addf %79, %83 : vector<256x128xf32>
    %c255_i32_55 = arith.constant 255 : i32
    %85 = tpu.dynamic_rotate %84 by %c255_i32_55 dim 0 : vector<256x128xf32>, i32 -> vector<256x128xf32>
    %86 = arith.addf %84, %85 : vector<256x128xf32>
    %c0_56 = arith.constant 0 : index
    %c0_57 = arith.constant 0 : index
    %87 = vector.load %arg11[%c0_56, %c0_57] : memref<256x128xf32, #tpu.memory_space<vmem>>, vector<256x128xf32>
    tpu.vector_store %arg11[%c0_56, %c0_57], %86 {strides = array<i32>} : memref<256x128xf32, #tpu.memory_space<vmem>>, vector<256x128xf32>,
    %c0_58 = arith.constant 0 : index
    %c0_59 = arith.constant 0 : index
    %88 = tpu.strided_load %arg11[%c0_58, %c0_59] {strides = array<i32: 2, 1>} : memref<256x128xf32, #tpu.memory_space<vmem>>, vector<128x128xf32>
    %89 = vector.shape_cast %88 : vector<128x128xf32> to vector<8x2x8x128xf32>
    %cst_60 = arith.constant dense<0.000000e+00> : vector<8x8x128xf32>
    %90 = vector.multi_reduction <add>, %89, %cst_60 [1] : vector<8x2x8x128xf32> to vector<8x8x128xf32>
    %cst_61 = arith.constant 2.500000e-01 : f32
    %91 = vector.broadcast %cst_61 : f32 to vector<8x8x128xf32>
    %92 = arith.mulf %91, %90 : vector<8x8x128xf32>
    %c0_62 = arith.constant 0 : index
    %c0_63 = arith.constant 0 : index
    %93 = vector.load %arg6[%c0_62, %c0_63] : memref<1x128xf32, #tpu.memory_space<vmem>>, vector<1x128xf32>
    %94 = vector.shape_cast %93 : vector<1x128xf32> to vector<1x1x128xf32>
    %95 = vector.broadcast %94 : vector<1x1x128xf32> to vector<8x8x128xf32>
    %96 = arith.addf %92, %95 : vector<8x8x128xf32>
    %c0_64 = arith.constant 0 : index
    %c0_65 = arith.constant 0 : index
    %c0_66 = arith.constant 0 : index
    %97 = vector.load %arg2[%c0_64, %c0_65, %c0_66] : memref<1x64x128xbf16, #tpu.memory_space<vmem>>, vector<1x64x128xbf16>
    %98 = vector.shape_cast %97 : vector<1x64x128xbf16> to vector<64x128xbf16>
    %c0_67 = arith.constant 0 : index
    %c0_68 = arith.constant 0 : index
    %99 = vector.load %arg7[%c0_67, %c0_68] : memref<128x128xbf16, #tpu.memory_space<vmem>>, vector<128x128xbf16>
    %cst_69 = arith.constant dense<0.000000e+00> : vector<64x128xf32>
    %100 = tpu.matmul %98, %99, %cst_69 {dimension_numbers = #tpu.dot_dimension_numbers<[1], [0], [0], [1], [0, 0, 1, 1], [], []>} : vector<64x128xbf16>, vector<128x128xbf16>, vector<64x128xf32> -> vector<64x128xf32>
    %c0_70 = arith.constant 0 : index
    %c0_71 = arith.constant 0 : index
    %101 = vector.load %arg8[%c0_70, %c0_71] : memref<1x128xf32, #tpu.memory_space<vmem>>, vector<1x128xf32>
    %102 = vector.broadcast %101 : vector<1x128xf32> to vector<64x128xf32>
    %103 = arith.addf %100, %102 : vector<64x128xf32>
    %104 = vector.shape_cast %103 : vector<64x128xf32> to vector<8x8x128xf32>
    %105 = arith.addf %96, %104 : vector<8x8x128xf32>
    %c0_72 = arith.constant 0 : index
    %c0_73 = arith.constant 0 : index
    %c0_74 = arith.constant 0 : index
    %c0_75 = arith.constant 0 : index
    %106 = vector.load %arg9[%c0_72, %c0_73, %c0_74, %c0_75] : memref<1x8x8x128xf32, #tpu.memory_space<vmem>>, vector<1x8x8x128xf32>
    %107 = vector.shape_cast %106 : vector<1x8x8x128xf32> to vector<8x8x128xf32>
    %108 = vector.shape_cast %105 : vector<8x8x128xf32> to vector<1x8x8x128xf32>
    tpu.vector_store %arg9[%c0_72, %c0_73, %c0_74, %c0_75], %108 {strides = array<i32>} : memref<1x8x8x128xf32, #tpu.memory_space<vmem>>, vector<1x8x8x128xf32>,
    return
  }
  func.func @transform_0(%arg0: i32) -> (i32, i32, i32) {
    %c0_i32 = arith.constant 0 : i32
    %c0_i32_0 = arith.constant 0 : i32
    %c0_i32_1 = arith.constant 0 : i32
    return %arg0, %c0_i32, %c0_i32_0 : i32, i32, i32
  }
  func.func @transform_1(%arg0: i32) -> (i32, i32, i32) {
    %c0_i32 = arith.constant 0 : i32
    %c0_i32_0 = arith.constant 0 : i32
    %c0_i32_1 = arith.constant 0 : i32
    return %arg0, %c0_i32, %c0_i32_0 : i32, i32, i32
  }
  func.func @transform_2(%arg0: i32) -> (i32, i32, i32) {
    %c0_i32 = arith.constant 0 : i32
    %c0_i32_0 = arith.constant 0 : i32
    %c0_i32_1 = arith.constant 0 : i32
    %c0_i32_2 = arith.constant 0 : i32
    return %c0_i32, %c0_i32_0, %c0_i32_1 : i32, i32, i32
  }
  func.func @transform_3(%arg0: i32) -> (i32, i32) {
    %c0_i32 = arith.constant 0 : i32
    %c0_i32_0 = arith.constant 0 : i32
    %c0_i32_1 = arith.constant 0 : i32
    return %c0_i32, %c0_i32_0 : i32, i32
  }
  func.func @transform_4(%arg0: i32) -> (i32, i32, i32) {
    %c0_i32 = arith.constant 0 : i32
    %c0_i32_0 = arith.constant 0 : i32
    %c0_i32_1 = arith.constant 0 : i32
    %c0_i32_2 = arith.constant 0 : i32
    return %c0_i32, %c0_i32_0, %c0_i32_1 : i32, i32, i32
  }
  func.func @transform_5(%arg0: i32) -> (i32, i32) {
    %c0_i32 = arith.constant 0 : i32
    %c0_i32_0 = arith.constant 0 : i32
    %c0_i32_1 = arith.constant 0 : i32
    return %c0_i32, %c0_i32_0 : i32, i32
  }
  func.func @transform_6(%arg0: i32) -> (i32, i32) {
    %c0_i32 = arith.constant 0 : i32
    %c0_i32_0 = arith.constant 0 : i32
    %c0_i32_1 = arith.constant 0 : i32
    return %c0_i32, %c0_i32_0 : i32, i32
  }
  func.func @transform_7(%arg0: i32) -> (i32, i32) {
    %c0_i32 = arith.constant 0 : i32
    %c0_i32_0 = arith.constant 0 : i32
    %c0_i32_1 = arith.constant 0 : i32
    return %c0_i32, %c0_i32_0 : i32, i32
  }
  func.func @transform_8(%arg0: i32) -> (i32, i32, i32, i32) {
    %c0_i32 = arith.constant 0 : i32
    %c0_i32_0 = arith.constant 0 : i32
    %c0_i32_1 = arith.constant 0 : i32
    %c0_i32_2 = arith.constant 0 : i32
    return %arg0, %c0_i32, %c0_i32_0, %c0_i32_1 : i32, i32, i32, i32
  }
}

</mosaic_0001>

<llo_original>
// kernel: tpu_custom_call.1
$region0: #{tpu_custom_call.1}
  #allocation0 [shape = 'u32[]', space=smem, size = 0x4, offset = 0x4, fixed_abs, tag = 'smem constant byte address 0x4 - core index']
  #allocation1 [shape = 'u32[72,128]{1,0:T(1,128)}', space=vmem, size = 0x9000, scoped, tag = 'internal scratch']
  #allocation2 [shape = 'bf16[288,384]{1,0:T(8,128)(2,1)}', space=vmem, size = 0x36000, scoped, tag = 'scratch operand']
  #allocation3 [shape = 'f32[256,128]{1,0:T(8,128)}', space=vmem, size = 0x20000, scoped, tag = 'scratch operand']
  %s0 = inlined_call_operand.hbm [shape: f32[2,256,128], index: 0, kind: input, shape index: {}]
  %s1 = inlined_call_operand.hbm [shape: bf16[2,64,128], index: 1, kind: input, shape index: {}]
  %s2 = inlined_call_operand.hbm [shape: bf16[3,384,128], index: 2, kind: input, shape index: {}]
  %s3 = inlined_call_operand.vmem [shape: f32[1,128], index: 3, kind: input, shape index: {}]
  %s4 = inlined_call_operand.hbm [shape: bf16[3,384,128], index: 4, kind: input, shape index: {}]
  %s5 = inlined_call_operand.vmem [shape: f32[1,128], index: 5, kind: input, shape index: {}]
  %s6 = inlined_call_operand.hbm [shape: bf16[128,128], index: 6, kind: input, shape index: {}]
  %s7 = inlined_call_operand.vmem [shape: f32[1,128], index: 7, kind: input, shape index: {}]
  %s8 = inlined_call_operand.hbm [shape: f32[2,8,8,128], index: 8, kind: output, shape index: {}]
  %s9 = sld [smem:[#allocation0]]
  $region85: #{tpu_custom_call.1} parent=0
    _
  %s11 = ssub.s32 1, %s9
  %s12 = scalar_select 0, %s11, %s9
  $region1: #{tpu_custom_call.1} parent=0
    #allocation4 [shape = 'u8[262144]{0}', space=vmem, size = 0x40000, scoped, tag = 'input window, operand 0']
    #allocation5 [shape = 's32[2]{0}', space=sflag, size = 0x8, scoped, tag = 'scoped memory for tpu_custom_call.1']
    #allocation6 [shape = 's32[2]{0}', space=sflag, size = 0x8, scoped, tag = 'scoped memory for tpu_custom_call.1']
    #allocation7 [shape = 'u8[32768]{0}', space=vmem, size = 0x8000, scoped, tag = 'input window, operand 1']
    #allocation8 [shape = 's32[2]{0}', space=sflag, size = 0x8, scoped, tag = 'scoped memory for tpu_custom_call.1']
    #allocation9 [shape = 'u8[294912]{0}', space=vmem, size = 0x48000, scoped, tag = 'input window, operand 2, single buffered']
    #allocation10 [shape = 'u8[294912]{0}', space=vmem, size = 0x48000, scoped, tag = 'input window, operand 4, single buffered']
    #allocation11 [shape = 's32[1]{0}', space=sflag, size = 0x4, scoped, tag = 'scoped memory for tpu_custom_call.1']
    #allocation12 [shape = 'u8[32768]{0}', space=vmem, size = 0x8000, scoped, tag = 'input window, operand 6, single buffered']
    #allocation13 [shape = 'u8[65536]{0}', space=vmem, size = 0x10000, scoped, tag = 'output window, operand 0']
    %13 = vsyncpa [#allocation5], 0
    %s14 = scalar_lea.sflag [#allocation5], 1
    %15 = vsyncpa %s14, 0
    %16 = vsyncpa [#allocation8], 0
    %s17 = scalar_lea.sflag [#allocation8], 1
    %18 = vsyncpa %s17, 0
    %19 = vsyncpa [#allocation11], 0
    %20 = vsyncpa [#allocation6], 0
    %s21 = scalar_lea.sflag [#allocation6], 1
    %22 = vsyncpa %s21, 0
    loop: start=0, step=1, limit=4
    $region2: #{tpu_custom_call.1} parent=1 // loop_pre_header
      _
    $region3: #{tpu_custom_call.1} parent=1 // loop_header
      %s24 = sphi 0, %s28
      %p25 = scmp.ge.s32.totalorder %s24, 4
      %s34 = sphi 0, %s36
      %s37 = sphi 0, %s34
      %s38 = sphi 0, %s37
      %s54 = sphi 0, %s38
      %s60 = sphi 0, %s62
      %s63 = sphi 0, %s60
      %s64 = sphi 0, %s63
      %s80 = sphi 0, %s64
      %s84 = sphi 0, %s84
      %s86 = sphi 0, %s84
      %s87 = sphi 0, %s86
      %s101 = sphi 0, %s87
      %s105 = sphi 0, %s105
      %s107 = sphi 0, %s105
      %s108 = sphi 0, %s107
      %s122 = sphi 0, %s108
      %s126 = sphi 0, %s126
      %s128 = sphi 0, %s126
      %s129 = sphi 0, %s128
      %s143 = sphi 0, %s129
      %s147 = sphi 0, %s147
      %s149 = sphi 0, %s147
      %s150 = sphi 0, %s149
      %s164 = sphi 0, %s150
      %s168 = sphi 0, %s168
      %s170 = sphi 0, %s168
      %s171 = sphi 0, %s170
      %s185 = sphi 0, %s171
      %s189 = sphi 0, %s189
      %s191 = sphi 0, %s189
      %s192 = sphi 0, %s191
      %s206 = sphi 0, %s192
      %s212 = sphi 0, %s214
      %s215 = sphi 0, %s212
      %s216 = sphi 0, %s215
      %s232 = sphi 0, %s216
    $region4: #{tpu_custom_call.1} parent=1 // loop_header_branch
      %27 = sbr.rel (%p25) target = $region8
    $region5: #{tpu_custom_call.1} parent=1 // loop_body
      %s29 = ssub.s32 %s24, 1
      %s30 = ssub.s32 %s24, 2
      %s31 = sadd.s32 %s24, 1
      %s32 = ssub.s32 %s24, %s31
      %p33 = scmp.eq.s32.totalorder %s32, 0
      %s35 = sadd.s32 %s34, 1
      %s36 = scalar_select %p33, %s34, %s35
      %p39 = pneg %p33
      %p40 = scmp.eq.s32.totalorder %s24, 1
      %p41 = por %p39, %p40
      %p42 = scmp.ne.s32.totalorder %s34, %s37
      %p43 = scmp.eq.s32.totalorder %s24, 0
      %p44 = por %p42, %p43
      %p45 = scmp.ne.s32.totalorder %s34, %s37
      %p46 = scmp.eq.s32.totalorder %s29, 1
      %p47 = por %p45, %p46
      %p48 = scmp.ne.s32.totalorder %s37, %s38
      %p49 = scmp.eq.s32.totalorder %s29, 0
      %p50 = por %p48, %p49
      %p51 = scmp.ne.s32.totalorder %s37, %s38
      %p52 = scmp.eq.s32.totalorder %s30, 1
      %p53 = por %p51, %p52
      %p55 = scmp.ne.s32.totalorder %s38, %s54
      %p56 = scmp.eq.s32.totalorder %s30, 0
      %p57 = por %p55, %p56
      %s58 = ssub.s32 %s24, %s31
      %p59 = scmp.eq.s32.totalorder %s58, 0
      %s61 = sadd.s32 %s60, 1
      %s62 = scalar_select %p59, %s60, %s61
      %p65 = pneg %p59
      %p66 = scmp.eq.s32.totalorder %s24, 1
      %p67 = por %p65, %p66
      %p68 = scmp.ne.s32.totalorder %s60, %s63
      %p69 = scmp.eq.s32.totalorder %s24, 0
      %p70 = por %p68, %p69
      %p71 = scmp.ne.s32.totalorder %s60, %s63
      %p72 = scmp.eq.s32.totalorder %s29, 1
      %p73 = por %p71, %p72
      %p74 = scmp.ne.s32.totalorder %s63, %s64
      %p75 = scmp.eq.s32.totalorder %s29, 0
      %p76 = por %p74, %p75
      %p77 = scmp.ne.s32.totalorder %s63, %s64
      %p78 = scmp.eq.s32.totalorder %s30, 1
      %p79 = por %p77, %p78
      %p81 = scmp.ne.s32.totalorder %s64, %s80
      %p82 = scmp.eq.s32.totalorder %s30, 0
      %p83 = por %p81, %p82
      %s85 = sadd.s32 %s84, 1
      %p88 = scmp.eq.s32.totalorder %s24, 1
      %p89 = scmp.ne.s32.totalorder %s84, %s86
      %p90 = scmp.eq.s32.totalorder %s24, 0
      %p91 = por %p89, %p90
      %p92 = scmp.ne.s32.totalorder %s84, %s86
      %p93 = scmp.eq.s32.totalorder %s29, 1
      %p94 = por %p92, %p93
      %p95 = scmp.ne.s32.totalorder %s86, %s87
      %p96 = scmp.eq.s32.totalorder %s29, 0
      %p97 = por %p95, %p96
      %p98 = scmp.ne.s32.totalorder %s86, %s87
      %p99 = scmp.eq.s32.totalorder %s30, 1
      %p100 = por %p98, %p99
      %p102 = scmp.ne.s32.totalorder %s87, %s101
      %p103 = scmp.eq.s32.totalorder %s30, 0
      %p104 = por %p102, %p103
      %s106 = sadd.s32 %s105, 1
      %p109 = scmp.eq.s32.totalorder %s24, 1
      %p110 = scmp.ne.s32.totalorder %s105, %s107
      %p111 = scmp.eq.s32.totalorder %s24, 0
      %p112 = por %p110, %p111
      %p113 = scmp.ne.s32.totalorder %s105, %s107
      %p114 = scmp.eq.s32.totalorder %s29, 1
      %p115 = por %p113, %p114
      %p116 = scmp.ne.s32.totalorder %s107, %s108
      %p117 = scmp.eq.s32.totalorder %s29, 0
      %p118 = por %p116, %p117
      %p119 = scmp.ne.s32.totalorder %s107, %s108
      %p120 = scmp.eq.s32.totalorder %s30, 1
      %p121 = por %p119, %p120
      %p123 = scmp.ne.s32.totalorder %s108, %s122
      %p124 = scmp.eq.s32.totalorder %s30, 0
      %p125 = por %p123, %p124
      %s127 = sadd.s32 %s126, 1
      %p130 = scmp.eq.s32.totalorder %s24, 1
      %p131 = scmp.ne.s32.totalorder %s126, %s128
      %p132 = scmp.eq.s32.totalorder %s24, 0
      %p133 = por %p131, %p132
      %p134 = scmp.ne.s32.totalorder %s126, %s128
      %p135 = scmp.eq.s32.totalorder %s29, 1
      %p136 = por %p134, %p135
      %p137 = scmp.ne.s32.totalorder %s128, %s129
      %p138 = scmp.eq.s32.totalorder %s29, 0
      %p139 = por %p137, %p138
      %p140 = scmp.ne.s32.totalorder %s128, %s129
      %p141 = scmp.eq.s32.totalorder %s30, 1
      %p142 = por %p140, %p141
      %p144 = scmp.ne.s32.totalorder %s129, %s143
      %p145 = scmp.eq.s32.totalorder %s30, 0
      %p146 = por %p144, %p145
      %s148 = sadd.s32 %s147, 1
      %p151 = scmp.eq.s32.totalorder %s24, 1
      %p152 = scmp.ne.s32.totalorder %s147, %s149
      %p153 = scmp.eq.s32.totalorder %s24, 0
      %p154 = por %p152, %p153
      %p155 = scmp.ne.s32.totalorder %s147, %s149
      %p156 = scmp.eq.s32.totalorder %s29, 1
      %p157 = por %p155, %p156
      %p158 = scmp.ne.s32.totalorder %s149, %s150
      %p159 = scmp.eq.s32.totalorder %s29, 0
      %p160 = por %p158, %p159
      %p161 = scmp.ne.s32.totalorder %s149, %s150
      %p162 = scmp.eq.s32.totalorder %s30, 1
      %p163 = por %p161, %p162
      %p165 = scmp.ne.s32.totalorder %s150, %s164
      %p166 = scmp.eq.s32.totalorder %s30, 0
      %p167 = por %p165, %p166
      %s169 = sadd.s32 %s168, 1
      %p172 = scmp.eq.s32.totalorder %s24, 1
      %p173 = scmp.ne.s32.totalorder %s168, %s170
      %p174 = scmp.eq.s32.totalorder %s24, 0
      %p175 = por %p173, %p174
      %p176 = scmp.ne.s32.totalorder %s168, %s170
      %p177 = scmp.eq.s32.totalorder %s29, 1
      %p178 = por %p176, %p177
      %p179 = scmp.ne.s32.totalorder %s170, %s171
      %p180 = scmp.eq.s32.totalorder %s29, 0
      %p181 = por %p179, %p180
      %p182 = scmp.ne.s32.totalorder %s170, %s171
      %p183 = scmp.eq.s32.totalorder %s30, 1
      %p184 = por %p182, %p183
      %p186 = scmp.ne.s32.totalorder %s171, %s185
      %p187 = scmp.eq.s32.totalorder %s30, 0
      %p188 = por %p186, %p187
      %s190 = sadd.s32 %s189, 1
      %p193 = scmp.eq.s32.totalorder %s24, 1
      %p194 = scmp.ne.s32.totalorder %s189, %s191
      %p195 = scmp.eq.s32.totalorder %s24, 0
      %p196 = por %p194, %p195
      %p197 = scmp.ne.s32.totalorder %s189, %s191
      %p198 = scmp.eq.s32.totalorder %s29, 1
      %p199 = por %p197, %p198
      %p200 = scmp.ne.s32.totalorder %s191, %s192
      %p201 = scmp.eq.s32.totalorder %s29, 0
      %p202 = por %p200, %p201
      %p203 = scmp.ne.s32.totalorder %s191, %s192
      %p204 = scmp.eq.s32.totalorder %s30, 1
      %p205 = por %p203, %p204
      %p207 = scmp.ne.s32.totalorder %s192, %s206
      %p208 = scmp.eq.s32.totalorder %s30, 0
      %p209 = por %p207, %p208
      %s210 = ssub.s32 %s24, %s31
      %p211 = scmp.eq.s32.totalorder %s210, 0
      %s213 = sadd.s32 %s212, 1
      %s214 = scalar_select %p211, %s212, %s213
      %p217 = pneg %p211
      %p218 = scmp.eq.s32.totalorder %s24, 1
      %p219 = por %p217, %p218
      %p220 = scmp.ne.s32.totalorder %s212, %s215
      %p221 = scmp.eq.s32.totalorder %s24, 0
      %p222 = por %p220, %p221
      %p223 = scmp.ne.s32.totalorder %s212, %s215
      %p224 = scmp.eq.s32.totalorder %s29, 1
      %p225 = por %p223, %p224
      %p226 = scmp.ne.s32.totalorder %s215, %s216
      %p227 = scmp.eq.s32.totalorder %s29, 0
      %p228 = por %p226, %p227
      %p229 = scmp.ne.s32.totalorder %s215, %s216
      %p230 = scmp.eq.s32.totalorder %s30, 1
      %p231 = por %p229, %p230
      %p233 = scmp.ne.s32.totalorder %s216, %s232
      %p234 = scmp.eq.s32.totalorder %s30, 0
      %p235 = por %p233, %p234
      %p236 = scmp.le.s32.totalorder 1, %s24
      %p237 = scmp.lt.s32.totalorder %s24, 3
      %p238 = pnand %p236, %p237
      %p239 = pneg %p238
      // Predicated region
      $region9: #{tpu_custom_call.1} parent=5 // pred_check
        _
      $region10: #{tpu_custom_call.1} parent=5 // pred_check_branch
        %241 = sbr.rel (%p238) target = $region12
      $region11: #{tpu_custom_call.1} parent=5 // pred_region
        %s242 = ssub.s32 %s24, 1
        // Predicated region
        $region13: #{tpu_custom_call.1} parent=11 // pred_check
          %p243 = pneg %p97
        $region14: #{tpu_custom_call.1} parent=11 // pred_check_branch
          %245 = sbr.rel (%p243) target = $region16
        $region15: #{tpu_custom_call.1} parent=11 // pred_region
          %247 = vsyncadd [#allocation8], 0
          %s248 = sshll.u32 %s2, 4
          %s249 = int_to_ptr.hbm [resolvable:$true] %s248
          %s250 = sshll.u32 [#allocation9], 4
          %s251 = int_to_ptr.vmem [resolvable:$true] %s250
          %256 = dma.hbm_to_vmem [thread:$0]  %s249, 9216, %s251, [#allocation8], 64, 64, 4
        $region16: #{tpu_custom_call.1} parent=11 // pred_fallthru
          _
        // Predicated region
        $region17: #{tpu_custom_call.1} parent=11 // pred_check
          %p257 = pneg %p118
        $region18: #{tpu_custom_call.1} parent=11 // pred_check_branch
          %259 = sbr.rel (%p257) target = $region20
        $region19: #{tpu_custom_call.1} parent=11 // pred_region
          _
        $region20: #{tpu_custom_call.1} parent=11 // pred_fallthru
          _
        // Predicated region
        $region21: #{tpu_custom_call.1} parent=11 // pred_check
          %p260 = pneg %p139
        $region22: #{tpu_custom_call.1} parent=11 // pred_check_branch
          %262 = sbr.rel (%p260) target = $region24
        $region23: #{tpu_custom_call.1} parent=11 // pred_region
          %264 = vsyncadd [#allocation11], 0
          %s265 = sshll.u32 %s4, 4
          %s266 = int_to_ptr.hbm [resolvable:$true] %s265
          %s267 = sshll.u32 [#allocation10], 4
          %s268 = int_to_ptr.vmem [resolvable:$true] %s267
          %273 = dma.hbm_to_vmem [thread:$0]  %s266, 9216, %s268, [#allocation11], 64, 64, 4
        $region24: #{tpu_custom_call.1} parent=11 // pred_fallthru
          _
        // Predicated region
        $region25: #{tpu_custom_call.1} parent=11 // pred_check
          %p274 = pneg %p160
        $region26: #{tpu_custom_call.1} parent=11 // pred_check_branch
          %276 = sbr.rel (%p274) target = $region28
        $region27: #{tpu_custom_call.1} parent=11 // pred_region
          _
        $region28: #{tpu_custom_call.1} parent=11 // pred_fallthru
          _
        // Predicated region
        $region29: #{tpu_custom_call.1} parent=11 // pred_check
          %p277 = pneg %p181
        $region30: #{tpu_custom_call.1} parent=11 // pred_check_branch
          %279 = sbr.rel (%p277) target = $region32
        $region31: #{tpu_custom_call.1} parent=11 // pred_region
          %281 = vsyncadd [#allocation11], 0
          %s282 = sshll.u32 %s6, 4
          %s283 = int_to_ptr.hbm [resolvable:$true] %s282
          %s284 = sshll.u32 [#allocation12], 4
          %s285 = int_to_ptr.vmem [resolvable:$true] %s284
          %290 = dma.hbm_to_vmem [thread:$0]  %s283, 1024, %s285, [#allocation11], 64, 64, 4
        $region32: #{tpu_custom_call.1} parent=11 // pred_fallthru
          _
        // Predicated region
        $region33: #{tpu_custom_call.1} parent=11 // pred_check
          %p291 = pneg %p202
        $region34: #{tpu_custom_call.1} parent=11 // pred_check_branch
          %293 = sbr.rel (%p291) target = $region36
        $region35: #{tpu_custom_call.1} parent=11 // pred_region
          _
        $region36: #{tpu_custom_call.1} parent=11 // pred_fallthru
          _
      $region12: #{tpu_custom_call.1} parent=5 // pred_fallthru
        _
      %p294 = scmp.lt.s32.totalorder %s24, 2
      // Predicated region
      $region37: #{tpu_custom_call.1} parent=5 // pred_check
        %p295 = pneg %p294
      $region38: #{tpu_custom_call.1} parent=5 // pred_check_branch
        %297 = sbr.rel (%p295) target = $region40
      $region39: #{tpu_custom_call.1} parent=5 // pred_region
        // Predicated region
        $region41: #{tpu_custom_call.1} parent=39 // pred_check
          %p298 = pneg %p44
        $region42: #{tpu_custom_call.1} parent=39 // pred_check_branch
          %300 = sbr.rel (%p298) target = $region44
        $region43: #{tpu_custom_call.1} parent=39 // pred_region
          %s301 = sand.u32 %s34, 1
          %s302 = scalar_lea.sflag [#allocation5], %s301
          %s303 = sand.u32 %s34, 1
          %s304 = smul.addr %s303, 256
          %s305 = scalar_lea.vmem [#allocation4], %s304
          %307 = vsyncadd %s302, 0
          %s308 = smul.addr %s24, 32
          %s309 = smul.addr %s308, 8
          %s310 = scalar_lea.hbm %s0, %s309
          %s311 = sshll.u32 %s310, 4
          %s312 = int_to_ptr.hbm [resolvable:$true] %s311
          %s313 = sshll.u32 %s305, 4
          %s314 = int_to_ptr.vmem [resolvable:$true] %s313
          %319 = dma.hbm_to_vmem [thread:$0]  %s312, 4096, %s314, %s302, 128, 128, 8
        $region44: #{tpu_custom_call.1} parent=39 // pred_fallthru
          _
        // Predicated region
        $region45: #{tpu_custom_call.1} parent=39 // pred_check
          %p320 = pneg %p70
        $region46: #{tpu_custom_call.1} parent=39 // pred_check_branch
          %322 = sbr.rel (%p320) target = $region48
        $region47: #{tpu_custom_call.1} parent=39 // pred_region
          %s323 = sand.u32 %s24, 1
          %s324 = scalar_lea.sflag [#allocation8], %s323
          %s325 = sand.u32 %s60, 1
          %s326 = smul.addr %s325, 32
          %s327 = scalar_lea.vmem [#allocation7], %s326
          %329 = vsyncadd %s324, 0
          %s330 = smul.addr %s24, 8
          %s331 = smul.addr %s330, 4
          %s332 = scalar_lea.hbm %s1, %s331
          %s333 = sshll.u32 %s332, 4
          %s334 = int_to_ptr.hbm [resolvable:$true] %s333
          %s335 = sshll.u32 %s327, 4
          %s336 = int_to_ptr.vmem [resolvable:$true] %s335
          %341 = dma.hbm_to_vmem [thread:$0]  %s334, 512, %s336, %s324, 64, 64, 4
        $region48: #{tpu_custom_call.1} parent=39 // pred_fallthru
          _
      $region40: #{tpu_custom_call.1} parent=5 // pred_fallthru
        _
      %p342 = scmp.le.s32.totalorder 1, %s24
      %p343 = scmp.lt.s32.totalorder %s24, 3
      %p344 = pnand %p342, %p343
      %p345 = pneg %p344
      // Predicated region
      $region49: #{tpu_custom_call.1} parent=5 // pred_check
        _
      $region50: #{tpu_custom_call.1} parent=5 // pred_check_branch
        %347 = sbr.rel (%p344) target = $region52
      $region51: #{tpu_custom_call.1} parent=5 // pred_region
        %s348 = ssub.s32 %s24, 1
        %s349 = sand.u32 %s37, 1
        %s350 = scalar_lea.sflag [#allocation5], %s349
        %s351 = sand.u32 %s37, 1
        %s352 = smul.addr %s351, 256
        %s353 = scalar_lea.vmem [#allocation4], %s352
        // Predicated region
        $region53: #{tpu_custom_call.1} parent=51 // pred_check
          %p354 = pneg %p50
        $region54: #{tpu_custom_call.1} parent=51 // pred_check_branch
          %356 = sbr.rel (%p354) target = $region56
        $region55: #{tpu_custom_call.1} parent=51 // pred_region
          %358 = dma.done %s350, 4096
        $region56: #{tpu_custom_call.1} parent=51 // pred_fallthru
          _
        %s359 = sand.u32 %s29, 1
        %s360 = scalar_lea.sflag [#allocation8], %s359
        %s361 = sand.u32 %s63, 1
        %s362 = smul.addr %s361, 32
        %s363 = scalar_lea.vmem [#allocation7], %s362
        // Predicated region
        $region57: #{tpu_custom_call.1} parent=51 // pred_check
          %p364 = pneg %p76
        $region58: #{tpu_custom_call.1} parent=51 // pred_check_branch
          %366 = sbr.rel (%p364) target = $region60
        $region59: #{tpu_custom_call.1} parent=51 // pred_region
          %368 = dma.done %s360, 512
        $region60: #{tpu_custom_call.1} parent=51 // pred_fallthru
          _
        // Predicated region
        $region61: #{tpu_custom_call.1} parent=51 // pred_check
          %p369 = pneg %p97
        $region62: #{tpu_custom_call.1} parent=51 // pred_check_branch
          %371 = sbr.rel (%p369) target = $region64
        $region63: #{tpu_custom_call.1} parent=51 // pred_region
          %373 = dma.done [#allocation8], 9216
        $region64: #{tpu_custom_call.1} parent=51 // pred_fallthru
          _
        // Predicated region
        $region65: #{tpu_custom_call.1} parent=51 // pred_check
          %p374 = pneg %p139
        $region66: #{tpu_custom_call.1} parent=51 // pred_check_branch
          %376 = sbr.rel (%p374) target = $region68
        $region67: #{tpu_custom_call.1} parent=51 // pred_region
          %378 = dma.done [#allocation11], 9216
        $region68: #{tpu_custom_call.1} parent=51 // pred_fallthru
          _
        // Predicated region
        $region69: #{tpu_custom_call.1} parent=51 // pred_check
          %p379 = pneg %p181
        $region70: #{tpu_custom_call.1} parent=51 // pred_check_branch
          %381 = sbr.rel (%p379) target = $region72
        $region71: #{tpu_custom_call.1} parent=51 // pred_region
          %383 = dma.done [#allocation11], 1024
        $region72: #{tpu_custom_call.1} parent=51 // pred_fallthru
          _
        %s384 = sand.u32 %s37, 1
        %s385 = scalar_lea.sflag [#allocation5], %s384
        %s386 = sand.u32 %s37, 1
        %s387 = smul.addr %s386, 256
        %s388 = scalar_lea.vmem [#allocation4], %s387
        %p389 = pneg %p50
        %p390 = pneg %p47
        %s391 = sand.u32 %s29, 1
        %s392 = scalar_lea.sflag [#allocation8], %s391
        %s393 = sand.u32 %s63, 1
        %s394 = smul.addr %s393, 32
        %s395 = scalar_lea.vmem [#allocation7], %s394
        %p396 = pneg %p76
        %p397 = pneg %p73
        %p398 = pneg %p97
        %p399 = pneg %p94
        %p400 = pneg %p118
        %p401 = pneg %p115
        %p402 = pneg %p139
        %p403 = pneg %p136
        %p404 = pneg %p160
        %p405 = pneg %p157
        %p406 = pneg %p181
        %p407 = pneg %p178
        %p408 = pneg %p202
        %p409 = pneg %p199
        %p410 = pneg %p228
        %p411 = pneg %p225
        %s412 = sand.u32 %s215, 1
        %s413 = scalar_lea.sflag [#allocation6], %s412
        %s414 = sand.u32 %s215, 1
        %s415 = smul.addr %s414, 64
        %s416 = scalar_lea.vmem [#allocation13], %s415
        %418 = vst [vmem:[#allocation2] sm:$0xff] 0
        %419 = vst [vmem:[#allocation2 + $0x8] sm:$0xf] 0
        %420 = vst [vmem:[#allocation2 + $0xc] sm:$0xff] 0
        %421 = vst [vmem:[#allocation2 + $0x14] sm:$0xf] 0
        %422 = vst [vmem:[#allocation2 + $0x198] sm:$0xff] 0
        %423 = vst [vmem:[#allocation2 + $0x1a0] sm:$0xf] 0
        %424 = vst [vmem:[#allocation2 + $0x1a4] sm:$0xff] 0
        %425 = vst [vmem:[#allocation2 + $0x1ac] sm:$0xf] 0
        %v426 = vlaneseq
        %v427 = vshrl.u32 %v426, 7
        %v428 = vadd.s32 %v427, 8
        %v429 = vadd.s32 %v427, 16
        %v430 = vadd.s32 %v427, 24
        %v431 = vadd.s32 %v427, 32
        %v432 = vadd.s32 %v427, 40
        %v433 = vadd.s32 %v427, 48
        %v434 = vadd.s32 %v427, 56
        %v435 = vadd.s32 %v427, 64
        %v436 = vadd.s32 %v427, 72
        %v437 = vadd.s32 %v427, 80
        %v438 = vadd.s32 %v427, 88
        %v439 = vadd.s32 %v427, 96
        %v440 = vadd.s32 %v427, 104
        %v441 = vadd.s32 %v427, 112
        %v442 = vadd.s32 %v427, 120
        %v443 = vadd.s32 %v427, 128
        %v444 = vadd.s32 %v427, 136
        %v445 = vadd.s32 %v427, 144
        %v446 = vadd.s32 %v427, 152
        %v447 = vadd.s32 %v427, 160
        %v448 = vadd.s32 %v427, 168
        %v449 = vadd.s32 %v427, 176
        %v450 = vadd.s32 %v427, 184
        %v451 = vadd.s32 %v427, 192
        %v452 = vadd.s32 %v427, 200
        %v453 = vadd.s32 %v427, 208
        %v454 = vadd.s32 %v427, 216
        %v455 = vadd.s32 %v427, 224
        %v456 = vadd.s32 %v427, 232
        %v457 = vadd.s32 %v427, 240
        %v458 = vadd.s32 %v427, 248
        %vm459 = vcmp.lt.s32.totalorder %v427, 0
        %v460 = vsub.s32 0, %v427
        %v461 = vsel %vm459, %v460, %v427
        %v462 = vshrl.u32 %v461, 4
        %v463 = vand.u32 %v461, 15
        %v464 = vsub.s32 0, %v463
        %v465 = vsel %vm459, %v464, %v463
        %vm466 = vcmp.lt.s32.totalorder %v428, 0
        %v467 = vsub.s32 0, %v428
        %v468 = vsel %vm466, %v467, %v428
        %v469 = vshrl.u32 %v468, 4
        %v470 = vand.u32 %v468, 15
        %v471 = vsub.s32 0, %v470
        %v472 = vsel %vm466, %v471, %v470
        %vm473 = vcmp.lt.s32.totalorder %v429, 0
        %v474 = vsub.s32 0, %v429
        %v475 = vsel %vm473, %v474, %v429
        %v476 = vshrl.u32 %v475, 4
        %v477 = vand.u32 %v475, 15
        %v478 = vsub.s32 0, %v477
        %v479 = vsel %vm473, %v478, %v477
        %vm480 = vcmp.lt.s32.totalorder %v430, 0
        %v481 = vsub.s32 0, %v430
        %v482 = vsel %vm480, %v481, %v430
        %v483 = vshrl.u32 %v482, 4
        %v484 = vand.u32 %v482, 15
        %v485 = vsub.s32 0, %v484
        %v486 = vsel %vm480, %v485, %v484
        %vm487 = vcmp.lt.s32.totalorder %v431, 0
        %v488 = vsub.s32 0, %v431
        %v489 = vsel %vm487, %v488, %v431
        %v490 = vshrl.u32 %v489, 4
        %v491 = vand.u32 %v489, 15
        %v492 = vsub.s32 0, %v491
        %v493 = vsel %vm487, %v492, %v491
        %vm494 = vcmp.lt.s32.totalorder %v432, 0
        %v495 = vsub.s32 0, %v432
        %v496 = vsel %vm494, %v495, %v432
        %v497 = vshrl.u32 %v496, 4
        %v498 = vand.u32 %v496, 15
        %v499 = vsub.s32 0, %v498
        %v500 = vsel %vm494, %v499, %v498
        %vm501 = vcmp.lt.s32.totalorder %v433, 0
        %v502 = vsub.s32 0, %v433
        %v503 = vsel %vm501, %v502, %v433
        %v504 = vshrl.u32 %v503, 4
        %v505 = vand.u32 %v503, 15
        %v506 = vsub.s32 0, %v505
        %v507 = vsel %vm501, %v506, %v505
        %vm508 = vcmp.lt.s32.totalorder %v434, 0
        %v509 = vsub.s32 0, %v434
        %v510 = vsel %vm508, %v509, %v434
        %v511 = vshrl.u32 %v510, 4
        %v512 = vand.u32 %v510, 15
        %v513 = vsub.s32 0, %v512
        %v514 = vsel %vm508, %v513, %v512
        %vm515 = vcmp.lt.s32.totalorder %v435, 0
        %v516 = vsub.s32 0, %v435
        %v517 = vsel %vm515, %v516, %v435
        %v518 = vshrl.u32 %v517, 4
        %v519 = vand.u32 %v517, 15
        %v520 = vsub.s32 0, %v519
        %v521 = vsel %vm515, %v520, %v519
        %vm522 = vcmp.lt.s32.totalorder %v436, 0
        %v523 = vsub.s32 0, %v436
        %v524 = vsel %vm522, %v523, %v436
        %v525 = vshrl.u32 %v524, 4
        %v526 = vand.u32 %v524, 15
        %v527 = vsub.s32 0, %v526
        %v528 = vsel %vm522, %v527, %v526
        %vm529 = vcmp.lt.s32.totalorder %v437, 0
        %v530 = vsub.s32 0, %v437
        %v531 = vsel %vm529, %v530, %v437
        %v532 = vshrl.u32 %v531, 4
        %v533 = vand.u32 %v531, 15
        %v534 = vsub.s32 0, %v533
        %v535 = vsel %vm529, %v534, %v533
        %vm536 = vcmp.lt.s32.totalorder %v438, 0
        %v537 = vsub.s32 0, %v438
        %v538 = vsel %vm536, %v537, %v438
        %v539 = vshrl.u32 %v538, 4
        %v540 = vand.u32 %v538, 15
        %v541 = vsub.s32 0, %v540
        %v542 = vsel %vm536, %v541, %v540
        %vm543 = vcmp.lt.s32.totalorder %v439, 0
        %v544 = vsub.s32 0, %v439
        %v545 = vsel %vm543, %v544, %v439
        %v546 = vshrl.u32 %v545, 4
        %v547 = vand.u32 %v545, 15
        %v548 = vsub.s32 0, %v547
        %v549 = vsel %vm543, %v548, %v547
        %vm550 = vcmp.lt.s32.totalorder %v440, 0
        %v551 = vsub.s32 0, %v440
        %v552 = vsel %vm550, %v551, %v440
        %v553 = vshrl.u32 %v552, 4
        %v554 = vand.u32 %v552, 15
        %v555 = vsub.s32 0, %v554
        %v556 = vsel %vm550, %v555, %v554
        %vm557 = vcmp.lt.s32.totalorder %v441, 0
        %v558 = vsub.s32 0, %v441
        %v559 = vsel %vm557, %v558, %v441
        %v560 = vshrl.u32 %v559, 4
        %v561 = vand.u32 %v559, 15
        %v562 = vsub.s32 0, %v561
        %v563 = vsel %vm557, %v562, %v561
        %vm564 = vcmp.lt.s32.totalorder %v442, 0
        %v565 = vsub.s32 0, %v442
        %v566 = vsel %vm564, %v565, %v442
        %v567 = vshrl.u32 %v566, 4
        %v568 = vand.u32 %v566, 15
        %v569 = vsub.s32 0, %v568
        %v570 = vsel %vm564, %v569, %v568
        %vm571 = vcmp.lt.s32.totalorder %v443, 0
        %v572 = vsub.s32 0, %v443
        %v573 = vsel %vm571, %v572, %v443
        %v574 = vshrl.u32 %v573, 4
        %v575 = vand.u32 %v573, 15
        %v576 = vsub.s32 0, %v575
        %v577 = vsel %vm571, %v576, %v575
        %vm578 = vcmp.lt.s32.totalorder %v444, 0
        %v579 = vsub.s32 0, %v444
        %v580 = vsel %vm578, %v579, %v444
        %v581 = vshrl.u32 %v580, 4
        %v582 = vand.u32 %v580, 15
        %v583 = vsub.s32 0, %v582
        %v584 = vsel %vm578, %v583, %v582
        %vm585 = vcmp.lt.s32.totalorder %v445, 0
        %v586 = vsub.s32 0, %v445
        %v587 = vsel %vm585, %v586, %v445
        %v588 = vshrl.u32 %v587, 4
        %v589 = vand.u32 %v587, 15
        %v590 = vsub.s32 0, %v589
        %v591 = vsel %vm585, %v590, %v589
        %vm592 = vcmp.lt.s32.totalorder %v446, 0
        %v593 = vsub.s32 0, %v446
        %v594 = vsel %vm592, %v593, %v446
        %v595 = vshrl.u32 %v594, 4
        %v596 = vand.u32 %v594, 15
        %v597 = vsub.s32 0, %v596
        %v598 = vsel %vm592, %v597, %v596
        %vm599 = vcmp.lt.s32.totalorder %v447, 0
        %v600 = vsub.s32 0, %v447
        %v601 = vsel %vm599, %v600, %v447
        %v602 = vshrl.u32 %v601, 4
        %v603 = vand.u32 %v601, 15
        %v604 = vsub.s32 0, %v603
        %v605 = vsel %vm599, %v604, %v603
        %vm606 = vcmp.lt.s32.totalorder %v448, 0
        %v607 = vsub.s32 0, %v448
        %v608 = vsel %vm606, %v607, %v448
        %v609 = vshrl.u32 %v608, 4
        %v610 = vand.u32 %v608, 15
        %v611 = vsub.s32 0, %v610
        %v612 = vsel %vm606, %v611, %v610
        %vm613 = vcmp.lt.s32.totalorder %v449, 0
        %v614 = vsub.s32 0, %v449
        %v615 = vsel %vm613, %v614, %v449
        %v616 = vshrl.u32 %v615, 4
        %v617 = vand.u32 %v615, 15
        %v618 = vsub.s32 0, %v617
        %v619 = vsel %vm613, %v618, %v617
        %vm620 = vcmp.lt.s32.totalorder %v450, 0
        %v621 = vsub.s32 0, %v450
        %v622 = vsel %vm620, %v621, %v450
        %v623 = vshrl.u32 %v622, 4
        %v624 = vand.u32 %v622, 15
        %v625 = vsub.s32 0, %v624
        %v626 = vsel %vm620, %v625, %v624
        %vm627 = vcmp.lt.s32.totalorder %v451, 0
        %v628 = vsub.s32 0, %v451
        %v629 = vsel %vm627, %v628, %v451
        %v630 = vshrl.u32 %v629, 4
        %v631 = vand.u32 %v629, 15
        %v632 = vsub.s32 0, %v631
        %v633 = vsel %vm627, %v632, %v631
        %vm634 = vcmp.lt.s32.totalorder %v452, 0
        %v635 = vsub.s32 0, %v452
        %v636 = vsel %vm634, %v635, %v452
        %v637 = vshrl.u32 %v636, 4
        %v638 = vand.u32 %v636, 15
        %v639 = vsub.s32 0, %v638
        %v640 = vsel %vm634, %v639, %v638
        %vm641 = vcmp.lt.s32.totalorder %v453, 0
        %v642 = vsub.s32 0, %v453
        %v643 = vsel %vm641, %v642, %v453
        %v644 = vshrl.u32 %v643, 4
        %v645 = vand.u32 %v643, 15
        %v646 = vsub.s32 0, %v645
        %v647 = vsel %vm641, %v646, %v645
        %vm648 = vcmp.lt.s32.totalorder %v454, 0
        %v649 = vsub.s32 0, %v454
        %v650 = vsel %vm648, %v649, %v454
        %v651 = vshrl.u32 %v650, 4
        %v652 = vand.u32 %v650, 15
        %v653 = vsub.s32 0, %v652
        %v654 = vsel %vm648, %v653, %v652
        %vm655 = vcmp.lt.s32.totalorder %v455, 0
        %v656 = vsub.s32 0, %v455
        %v657 = vsel %vm655, %v656, %v455
        %v658 = vshrl.u32 %v657, 4
        %v659 = vand.u32 %v657, 15
        %v660 = vsub.s32 0, %v659
        %v661 = vsel %vm655, %v660, %v659
        %vm662 = vcmp.lt.s32.totalorder %v456, 0
        %v663 = vsub.s32 0, %v456
        %v664 = vsel %vm662, %v663, %v456
        %v665 = vshrl.u32 %v664, 4
        %v666 = vand.u32 %v664, 15
        %v667 = vsub.s32 0, %v666
        %v668 = vsel %vm662, %v667, %v666
        %vm669 = vcmp.lt.s32.totalorder %v457, 0
        %v670 = vsub.s32 0, %v457
        %v671 = vsel %vm669, %v670, %v457
        %v672 = vshrl.u32 %v671, 4
        %v673 = vand.u32 %v671, 15
        %v674 = vsub.s32 0, %v673
        %v675 = vsel %vm669, %v674, %v673
        %vm676 = vcmp.lt.s32.totalorder %v458, 0
        %v677 = vsub.s32 0, %v458
        %v678 = vsel %vm676, %v677, %v458
        %v679 = vshrl.u32 %v678, 4
        %v680 = vand.u32 %v678, 15
        %v681 = vsub.s32 0, %v680
        %v682 = vsel %vm676, %v681, %v680
        %vm683 = vcmp.ne.s32.totalorder %v465, 0
        %vm684 = vcmp.ne.s32.totalorder %v472, 0
        %vm685 = vcmp.ne.s32.totalorder %v479, 0
        %vm686 = vcmp.ne.s32.totalorder %v486, 0
        %vm687 = vcmp.ne.s32.totalorder %v493, 0
        %vm688 = vcmp.ne.s32.totalorder %v500, 0
        %vm689 = vcmp.ne.s32.totalorder %v507, 0
        %vm690 = vcmp.ne.s32.totalorder %v514, 0
        %vm691 = vcmp.ne.s32.totalorder %v521, 0
        %vm692 = vcmp.ne.s32.totalorder %v528, 0
        %vm693 = vcmp.ne.s32.totalorder %v535, 0
        %vm694 = vcmp.ne.s32.totalorder %v542, 0
        %vm695 = vcmp.ne.s32.totalorder %v549, 0
        %vm696 = vcmp.ne.s32.totalorder %v556, 0
        %vm697 = vcmp.ne.s32.totalorder %v563, 0
        %vm698 = vcmp.ne.s32.totalorder %v570, 0
        %vm699 = vcmp.ne.s32.totalorder %v577, 0
        %vm700 = vcmp.ne.s32.totalorder %v584, 0
        %vm701 = vcmp.ne.s32.totalorder %v591, 0
        %vm702 = vcmp.ne.s32.totalorder %v598, 0
        %vm703 = vcmp.ne.s32.totalorder %v605, 0
        %vm704 = vcmp.ne.s32.totalorder %v612, 0
        %vm705 = vcmp.ne.s32.totalorder %v619, 0
        %vm706 = vcmp.ne.s32.totalorder %v626, 0
        %vm707 = vcmp.ne.s32.totalorder %v633, 0
        %vm708 = vcmp.ne.s32.totalorder %v640, 0
        %vm709 = vcmp.ne.s32.totalorder %v647, 0
        %vm710 = vcmp.ne.s32.totalorder %v654, 0
        %vm711 = vcmp.ne.s32.totalorder %v661, 0
        %vm712 = vcmp.ne.s32.totalorder %v668, 0
        %vm713 = vcmp.ne.s32.totalorder %v675, 0
        %vm714 = vcmp.ne.s32.totalorder %v682, 0
        %vm715 = vcmp.lt.s32.totalorder %v465, 0
        %vm716 = vcmp.lt.s32.totalorder %v472, 0
        %vm717 = vcmp.lt.s32.totalorder %v479, 0
        %vm718 = vcmp.lt.s32.totalorder %v486, 0
        %vm719 = vcmp.lt.s32.totalorder %v493, 0
        %vm720 = vcmp.lt.s32.totalorder %v500, 0
        %vm721 = vcmp.lt.s32.totalorder %v507, 0
        %vm722 = vcmp.lt.s32.totalorder %v514, 0
        %vm723 = vcmp.lt.s32.totalorder %v521, 0
        %vm724 = vcmp.lt.s32.totalorder %v528, 0
        %vm725 = vcmp.lt.s32.totalorder %v535, 0
        %vm726 = vcmp.lt.s32.totalorder %v542, 0
        %vm727 = vcmp.lt.s32.totalorder %v549, 0
        %vm728 = vcmp.lt.s32.totalorder %v556, 0
        %vm729 = vcmp.lt.s32.totalorder %v563, 0
        %vm730 = vcmp.lt.s32.totalorder %v570, 0
        %vm731 = vcmp.lt.s32.totalorder %v577, 0
        %vm732 = vcmp.lt.s32.totalorder %v584, 0
        %vm733 = vcmp.lt.s32.totalorder %v591, 0
        %vm734 = vcmp.lt.s32.totalorder %v598, 0
        %vm735 = vcmp.lt.s32.totalorder %v605, 0
        %vm736 = vcmp.lt.s32.totalorder %v612, 0
        %vm737 = vcmp.lt.s32.totalorder %v619, 0
        %vm738 = vcmp.lt.s32.totalorder %v626, 0
        %vm739 = vcmp.lt.s32.totalorder %v633, 0
        %vm740 = vcmp.lt.s32.totalorder %v640, 0
        %vm741 = vcmp.lt.s32.totalorder %v647, 0
        %vm742 = vcmp.lt.s32.totalorder %v654, 0
        %vm743 = vcmp.lt.s32.totalorder %v661, 0
        %vm744 = vcmp.lt.s32.totalorder %v668, 0
        %vm745 = vcmp.lt.s32.totalorder %v675, 0
        %vm746 = vcmp.lt.s32.totalorder %v682, 0
        %vm747 = vmand %vm715, %vm683
        %vm748 = vmand %vm716, %vm684
        %vm749 = vmand %vm717, %vm685
        %vm750 = vmand %vm718, %vm686
        %vm751 = vmand %vm719, %vm687
        %vm752 = vmand %vm720, %vm688
        %vm753 = vmand %vm721, %vm689
        %vm754 = vmand %vm722, %vm690
        %vm755 = vmand %vm723, %vm691
        %vm756 = vmand %vm724, %vm692
        %vm757 = vmand %vm725, %vm693
        %vm758 = vmand %vm726, %vm694
        %vm759 = vmand %vm727, %vm695
        %vm760 = vmand %vm728, %vm696
        %vm761 = vmand %vm729, %vm697
        %vm762 = vmand %vm730, %vm698
        %vm763 = vmand %vm731, %vm699
        %vm764 = vmand %vm732, %vm700
        %vm765 = vmand %vm733, %vm701
        %vm766 = vmand %vm734, %vm702
        %vm767 = vmand %vm735, %vm703
        %vm768 = vmand %vm736, %vm704
        %vm769 = vmand %vm737, %vm705
        %vm770 = vmand %vm738, %vm706
        %vm771 = vmand %vm739, %vm707
        %vm772 = vmand %vm740, %vm708
        %vm773 = vmand %vm741, %vm709
        %vm774 = vmand %vm742, %vm710
        %vm775 = vmand %vm743, %vm711
        %vm776 = vmand %vm744, %vm712
        %vm777 = vmand %vm745, %vm713
        %vm778 = vmand %vm746, %vm714
        %v779 = vadd.s32 %v465, 16
        %v780 = vadd.s32 %v472, 16
        %v781 = vadd.s32 %v479, 16
        %v782 = vadd.s32 %v486, 16
        %v783 = vadd.s32 %v493, 16
        %v784 = vadd.s32 %v500, 16
        %v785 = vadd.s32 %v507, 16
        %v786 = vadd.s32 %v514, 16
        %v787 = vadd.s32 %v521, 16
        %v788 = vadd.s32 %v528, 16
        %v789 = vadd.s32 %v535, 16
        %v790 = vadd.s32 %v542, 16
        %v791 = vadd.s32 %v549, 16
        %v792 = vadd.s32 %v556, 16
        %v793 = vadd.s32 %v563, 16
        %v794 = vadd.s32 %v570, 16
        %v795 = vadd.s32 %v577, 16
        %v796 = vadd.s32 %v584, 16
        %v797 = vadd.s32 %v591, 16
        %v798 = vadd.s32 %v598, 16
        %v799 = vadd.s32 %v605, 16
        %v800 = vadd.s32 %v612, 16
        %v801 = vadd.s32 %v619, 16
        %v802 = vadd.s32 %v626, 16
        %v803 = vadd.s32 %v633, 16
        %v804 = vadd.s32 %v640, 16
        %v805 = vadd.s32 %v647, 16
        %v806 = vadd.s32 %v654, 16
        %v807 = vadd.s32 %v661, 16
        %v808 = vadd.s32 %v668, 16
        %v809 = vadd.s32 %v675, 16
        %v810 = vadd.s32 %v682, 16
        %v811 = vsel %vm747, %v779, %v465
        %v812 = vsel %vm748, %v780, %v472
        %v813 = vsel %vm749, %v781, %v479
        %v814 = vsel %vm750, %v782, %v486
        %v815 = vsel %vm751, %v783, %v493
        %v816 = vsel %vm752, %v784, %v500
        %v817 = vsel %vm753, %v785, %v507
        %v818 = vsel %vm754, %v786, %v514
        %v819 = vsel %vm755, %v787, %v521
        %v820 = vsel %vm756, %v788, %v528
        %v821 = vsel %vm757, %v789, %v535
        %v822 = vsel %vm758, %v790, %v542
        %v823 = vsel %vm759, %v791, %v549
        %v824 = vsel %vm760, %v792, %v556
        %v825 = vsel %vm761, %v793, %v563
        %v826 = vsel %vm762, %v794, %v570
        %v827 = vsel %vm763, %v795, %v577
        %v828 = vsel %vm764, %v796, %v584
        %v829 = vsel %vm765, %v797, %v591
        %v830 = vsel %vm766, %v798, %v598
        %v831 = vsel %vm767, %v799, %v605
        %v832 = vsel %vm768, %v800, %v612
        %v833 = vsel %vm769, %v801, %v619
        %v834 = vsel %vm770, %v802, %v626
        %v835 = vsel %vm771, %v803, %v633
        %v836 = vsel %vm772, %v804, %v640
        %v837 = vsel %vm773, %v805, %v647
        %v838 = vsel %vm774, %v806, %v654
        %v839 = vsel %vm775, %v807, %v661
        %v840 = vsel %vm776, %v808, %v668
        %v841 = vsel %vm777, %v809, %v675
        %v842 = vsel %vm778, %v810, %v682
        %vm843 = vcmp.ne.s32.totalorder %v811, 0
        %vm844 = vcmp.ne.s32.totalorder %v812, 0
        %vm845 = vcmp.ne.s32.totalorder %v813, 0
        %vm846 = vcmp.ne.s32.totalorder %v814, 0
        %vm847 = vcmp.ne.s32.totalorder %v815, 0
        %vm848 = vcmp.ne.s32.totalorder %v816, 0
        %vm849 = vcmp.ne.s32.totalorder %v817, 0
        %vm850 = vcmp.ne.s32.totalorder %v818, 0
        %vm851 = vcmp.ne.s32.totalorder %v819, 0
        %vm852 = vcmp.ne.s32.totalorder %v820, 0
        %vm853 = vcmp.ne.s32.totalorder %v821, 0
        %vm854 = vcmp.ne.s32.totalorder %v822, 0
        %vm855 = vcmp.ne.s32.totalorder %v823, 0
        %vm856 = vcmp.ne.s32.totalorder %v824, 0
        %vm857 = vcmp.ne.s32.totalorder %v825, 0
        %vm858 = vcmp.ne.s32.totalorder %v826, 0
        %vm859 = vcmp.ne.s32.totalorder %v827, 0
        %vm860 = vcmp.ne.s32.totalorder %v828, 0
        %vm861 = vcmp.ne.s32.totalorder %v829, 0
        %vm862 = vcmp.ne.s32.totalorder %v830, 0
        %vm863 = vcmp.ne.s32.totalorder %v831, 0
        %vm864 = vcmp.ne.s32.totalorder %v832, 0
        %vm865 = vcmp.ne.s32.totalorder %v833, 0
        %vm866 = vcmp.ne.s32.totalorder %v834, 0
        %vm867 = vcmp.ne.s32.totalorder %v835, 0
        %vm868 = vcmp.ne.s32.totalorder %v836, 0
        %vm869 = vcmp.ne.s32.totalorder %v837, 0
        %vm870 = vcmp.ne.s32.totalorder %v838, 0
        %vm871 = vcmp.ne.s32.totalorder %v839, 0
        %vm872 = vcmp.ne.s32.totalorder %v840, 0
        %vm873 = vcmp.ne.s32.totalorder %v841, 0
        %vm874 = vcmp.ne.s32.totalorder %v842, 0
        %vm875 = vcmp.ne.s32.totalorder %v811, 15
        %vm876 = vcmp.ne.s32.totalorder %v812, 15
        %vm877 = vcmp.ne.s32.totalorder %v813, 15
        %vm878 = vcmp.ne.s32.totalorder %v814, 15
        %vm879 = vcmp.ne.s32.totalorder %v815, 15
        %vm880 = vcmp.ne.s32.totalorder %v816, 15
        %vm881 = vcmp.ne.s32.totalorder %v817, 15
        %vm882 = vcmp.ne.s32.totalorder %v818, 15
        %vm883 = vcmp.ne.s32.totalorder %v819, 15
        %vm884 = vcmp.ne.s32.totalorder %v820, 15
        %vm885 = vcmp.ne.s32.totalorder %v821, 15
        %vm886 = vcmp.ne.s32.totalorder %v822, 15
        %vm887 = vcmp.ne.s32.totalorder %v823, 15
        %vm888 = vcmp.ne.s32.totalorder %v824, 15
        %vm889 = vcmp.ne.s32.totalorder %v825, 15
        %vm890 = vcmp.ne.s32.totalorder %v826, 15
        %vm891 = vcmp.ne.s32.totalorder %v827, 15
        %vm892 = vcmp.ne.s32.totalorder %v828, 15
        %vm893 = vcmp.ne.s32.totalorder %v829, 15
        %vm894 = vcmp.ne.s32.totalorder %v830, 15
        %vm895 = vcmp.ne.s32.totalorder %v831, 15
        %vm896 = vcmp.ne.s32.totalorder %v832, 15
        %vm897 = vcmp.ne.s32.totalorder %v833, 15
        %vm898 = vcmp.ne.s32.totalorder %v834, 15
        %vm899 = vcmp.ne.s32.totalorder %v835, 15
        %vm900 = vcmp.ne.s32.totalorder %v836, 15
        %vm901 = vcmp.ne.s32.totalorder %v837, 15
        %vm902 = vcmp.ne.s32.totalorder %v838, 15
        %vm903 = vcmp.ne.s32.totalorder %v839, 15
        %vm904 = vcmp.ne.s32.totalorder %v840, 15
        %vm905 = vcmp.ne.s32.totalorder %v841, 15
        %vm906 = vcmp.ne.s32.totalorder %v842, 15
        %v907 = vld [vmem:[%s353] sm:$0xff]
        %v908 = vld [vmem:[%s353 + $0x8] sm:$0xff]
        %v909 = vld [vmem:[%s353 + $0x10] sm:$0xff]
        %v910 = vld [vmem:[%s353 + $0x18] sm:$0xff]
        %v911 = vld [vmem:[%s353 + $0x20] sm:$0xff]
        %v912 = vld [vmem:[%s353 + $0x28] sm:$0xff]
        %v913 = vld [vmem:[%s353 + $0x30] sm:$0xff]
        %v914 = vld [vmem:[%s353 + $0x38] sm:$0xff]
        %v915 = vld [vmem:[%s353 + $0x40] sm:$0xff]
        %v916 = vld [vmem:[%s353 + $0x48] sm:$0xff]
        %v917 = vld [vmem:[%s353 + $0x50] sm:$0xff]
        %v918 = vld [vmem:[%s353 + $0x58] sm:$0xff]
        %v919 = vld [vmem:[%s353 + $0x60] sm:$0xff]
        %v920 = vld [vmem:[%s353 + $0x68] sm:$0xff]
        %v921 = vld [vmem:[%s353 + $0x70] sm:$0xff]
        %v922 = vld [vmem:[%s353 + $0x78] sm:$0xff]
        %v923 = vld [vmem:[%s353 + $0x80] sm:$0xff]
        %v924 = vld [vmem:[%s353 + $0x88] sm:$0xff]
        %v925 = vld [vmem:[%s353 + $0x90] sm:$0xff]
        %v926 = vld [vmem:[%s353 + $0x98] sm:$0xff]
        %v927 = vld [vmem:[%s353 + $0xa0] sm:$0xff]
        %v928 = vld [vmem:[%s353 + $0xa8] sm:$0xff]
        %v929 = vld [vmem:[%s353 + $0xb0] sm:$0xff]
        %v930 = vld [vmem:[%s353 + $0xb8] sm:$0xff]
        %v931 = vld [vmem:[%s353 + $0xc0] sm:$0xff]
        %v932 = vld [vmem:[%s353 + $0xc8] sm:$0xff]
        %v933 = vld [vmem:[%s353 + $0xd0] sm:$0xff]
        %v934 = vld [vmem:[%s353 + $0xd8] sm:$0xff]
        %v935 = vld [vmem:[%s353 + $0xe0] sm:$0xff]
        %v936 = vld [vmem:[%s353 + $0xe8] sm:$0xff]
        %v937 = vld [vmem:[%s353 + $0xf0] sm:$0xff]
        %v938 = vld [vmem:[%s353 + $0xf8] sm:$0xff]
        %v939 = vrot.slane %v907, 7
        %v940 = vrot.slane %v908, 7
        %v941 = vrot.slane %v909, 7
        %v942 = vrot.slane %v910, 7
        %v943 = vrot.slane %v911, 7
        %v944 = vrot.slane %v912, 7
        %v945 = vrot.slane %v913, 7
        %v946 = vrot.slane %v914, 7
        %v947 = vrot.slane %v915, 7
        %v948 = vrot.slane %v916, 7
        %v949 = vrot.slane %v917, 7
        %v950 = vrot.slane %v918, 7
        %v951 = vrot.slane %v919, 7
        %v952 = vrot.slane %v920, 7
        %v953 = vrot.slane %v921, 7
        %v954 = vrot.slane %v922, 7
        %v955 = vrot.slane %v923, 7
        %v956 = vrot.slane %v924, 7
        %v957 = vrot.slane %v925, 7
        %v958 = vrot.slane %v926, 7
        %v959 = vrot.slane %v927, 7
        %v960 = vrot.slane %v928, 7
        %v961 = vrot.slane %v929, 7
        %v962 = vrot.slane %v930, 7
        %v963 = vrot.slane %v931, 7
        %v964 = vrot.slane %v932, 7
        %v965 = vrot.slane %v933, 7
        %v966 = vrot.slane %v934, 7
        %v967 = vrot.slane %v935, 7
        %v968 = vrot.slane %v936, 7
        %v969 = vrot.slane %v937, 7
        %v970 = vrot.slane %v938, 7
        %vm971 = vcmp.lt.s32.totalorder %v427, 1
        %v972 = vsel %vm971, %v969, %v970
        %v973 = vsel %vm971, %v968, %v969
        %v974 = vsel %vm971, %v967, %v968
        %v975 = vsel %vm971, %v966, %v967
        %v976 = vsel %vm971, %v965, %v966
        %v977 = vsel %vm971, %v964, %v965
        %v978 = vsel %vm971, %v963, %v964
        %v979 = vsel %vm971, %v962, %v963
        %v980 = vsel %vm971, %v961, %v962
        %v981 = vsel %vm971, %v960, %v961
        %v982 = vsel %vm971, %v959, %v960
        %v983 = vsel %vm971, %v958, %v959
        %v984 = vsel %vm971, %v957, %v958
        %v985 = vsel %vm971, %v956, %v957
        %v986 = vsel %vm971, %v955, %v956
        %v987 = vsel %vm971, %v954, %v955
        %v988 = vsel %vm971, %v953, %v954
        %v989 = vsel %vm971, %v952, %v953
        %v990 = vsel %vm971, %v951, %v952
        %v991 = vsel %vm971, %v950, %v951
        %v992 = vsel %vm971, %v949, %v950
        %v993 = vsel %vm971, %v948, %v949
        %v994 = vsel %vm971, %v947, %v948
        %v995 = vsel %vm971, %v946, %v947
        %v996 = vsel %vm971, %v945, %v946
        %v997 = vsel %vm971, %v944, %v945
        %v998 = vsel %vm971, %v943, %v944
        %v999 = vsel %vm971, %v942, %v943
        %v1000 = vsel %vm971, %v941, %v942
        %v1001 = vsel %vm971, %v940, %v941
        %v1002 = vsel %vm971, %v939, %v940
        %v1003 = vsel %vm971, %v970, %v939
        %v1004 = vsel %vm843, 1, 0
        %v1005 = vsel %vm844, 1, 0
        %v1006 = vsel %vm845, 1, 0
        %v1007 = vsel %vm846, 1, 0
        %v1008 = vsel %vm847, 1, 0
        %v1009 = vsel %vm848, 1, 0
        %v1010 = vsel %vm849, 1, 0
        %v1011 = vsel %vm850, 1, 0
        %v1012 = vsel %vm851, 1, 0
        %v1013 = vsel %vm852, 1, 0
        %v1014 = vsel %vm853, 1, 0
        %v1015 = vsel %vm854, 1, 0
        %v1016 = vsel %vm855, 1, 0
        %v1017 = vsel %vm856, 1, 0
        %v1018 = vsel %vm857, 1, 0
        %v1019 = vsel %vm858, 1, 0
        %v1020 = vsel %vm859, 1, 0
        %v1021 = vsel %vm860, 1, 0
        %v1022 = vsel %vm861, 1, 0
        %v1023 = vsel %vm862, 1, 0
        %v1024 = vsel %vm863, 1, 0
        %v1025 = vsel %vm864, 1, 0
        %v1026 = vsel %vm865, 1, 0
        %v1027 = vsel %vm866, 1, 0
        %v1028 = vsel %vm867, 1, 0
        %v1029 = vsel %vm868, 1, 0
        %v1030 = vsel %vm869, 1, 0
        %v1031 = vsel %vm870, 1, 0
        %v1032 = vsel %vm871, 1, 0
        %v1033 = vsel %vm872, 1, 0
        %v1034 = vsel %vm873, 1, 0
        %v1035 = vsel %vm874, 1, 0
        %vm1036 = vcmp.eq.s32.totalorder %v1004, 1
        %vm1037 = vcmp.eq.s32.totalorder %v1005, 1
        %vm1038 = vcmp.eq.s32.totalorder %v1006, 1
        %vm1039 = vcmp.eq.s32.totalorder %v1007, 1
        %vm1040 = vcmp.eq.s32.totalorder %v1008, 1
        %vm1041 = vcmp.eq.s32.totalorder %v1009, 1
        %vm1042 = vcmp.eq.s32.totalorder %v1010, 1
        %vm1043 = vcmp.eq.s32.totalorder %v1011, 1
        %vm1044 = vcmp.eq.s32.totalorder %v1012, 1
        %vm1045 = vcmp.eq.s32.totalorder %v1013, 1
        %vm1046 = vcmp.eq.s32.totalorder %v1014, 1
        %vm1047 = vcmp.eq.s32.totalorder %v1015, 1
        %vm1048 = vcmp.eq.s32.totalorder %v1016, 1
        %vm1049 = vcmp.eq.s32.totalorder %v1017, 1
        %vm1050 = vcmp.eq.s32.totalorder %v1018, 1
        %vm1051 = vcmp.eq.s32.totalorder %v1019, 1
        %vm1052 = vcmp.eq.s32.totalorder %v1020, 1
        %vm1053 = vcmp.eq.s32.totalorder %v1021, 1
        %vm1054 = vcmp.eq.s32.totalorder %v1022, 1
        %vm1055 = vcmp.eq.s32.totalorder %v1023, 1
        %vm1056 = vcmp.eq.s32.totalorder %v1024, 1
        %vm1057 = vcmp.eq.s32.totalorder %v1025, 1
        %vm1058 = vcmp.eq.s32.totalorder %v1026, 1
        %vm1059 = vcmp.eq.s32.totalorder %v1027, 1
        %vm1060 = vcmp.eq.s32.totalorder %v1028, 1
        %vm1061 = vcmp.eq.s32.totalorder %v1029, 1
        %vm1062 = vcmp.eq.s32.totalorder %v1030, 1
        %vm1063 = vcmp.eq.s32.totalorder %v1031, 1
        %vm1064 = vcmp.eq.s32.totalorder %v1032, 1
        %vm1065 = vcmp.eq.s32.totalorder %v1033, 1
        %vm1066 = vcmp.eq.s32.totalorder %v1034, 1
        %vm1067 = vcmp.eq.s32.totalorder %v1035, 1
        %v1068 = vsel %vm1036, %v1003, 0.0
        %v1069 = vsel %vm1037, %v1002, 0.0
        %v1070 = vsel %vm1038, %v1001, 0.0
        %v1071 = vsel %vm1039, %v1000, 0.0
        %v1072 = vsel %vm1040, %v999, 0.0
        %v1073 = vsel %vm1041, %v998, 0.0
        %v1074 = vsel %vm1042, %v997, 0.0
        %v1075 = vsel %vm1043, %v996, 0.0
        %v1076 = vsel %vm1044, %v995, 0.0
        %v1077 = vsel %vm1045, %v994, 0.0
        %v1078 = vsel %vm1046, %v993, 0.0
        %v1079 = vsel %vm1047, %v992, 0.0
        %v1080 = vsel %vm1048, %v991, 0.0
        %v1081 = vsel %vm1049, %v990, 0.0
        %v1082 = vsel %vm1050, %v989, 0.0
        %v1083 = vsel %vm1051, %v988, 0.0
        %v1084 = vsel %vm1052, %v987, 0.0
        %v1085 = vsel %vm1053, %v986, 0.0
        %v1086 = vsel %vm1054, %v985, 0.0
        %v1087 = vsel %vm1055, %v984, 0.0
        %v1088 = vsel %vm1056, %v983, 0.0
        %v1089 = vsel %vm1057, %v982, 0.0
        %v1090 = vsel %vm1058, %v981, 0.0
        %v1091 = vsel %vm1059, %v980, 0.0
        %v1092 = vsel %vm1060, %v979, 0.0
        %v1093 = vsel %vm1061, %v978, 0.0
        %v1094 = vsel %vm1062, %v977, 0.0
        %v1095 = vsel %vm1063, %v976, 0.0
        %v1096 = vsel %vm1064, %v975, 0.0
        %v1097 = vsel %vm1065, %v974, 0.0
        %v1098 = vsel %vm1066, %v973, 0.0
        %v1099 = vsel %vm1067, %v972, 0.0
        %v1100 = vrot.slane %v907, 1
        %v1101 = vrot.slane %v908, 1
        %v1102 = vrot.slane %v909, 1
        %v1103 = vrot.slane %v910, 1
        %v1104 = vrot.slane %v911, 1
        %v1105 = vrot.slane %v912, 1
        %v1106 = vrot.slane %v913, 1
        %v1107 = vrot.slane %v914, 1
        %v1108 = vrot.slane %v915, 1
        %v1109 = vrot.slane %v916, 1
        %v1110 = vrot.slane %v917, 1
        %v1111 = vrot.slane %v918, 1
        %v1112 = vrot.slane %v919, 1
        %v1113 = vrot.slane %v920, 1
        %v1114 = vrot.slane %v921, 1
        %v1115 = vrot.slane %v922, 1
        %v1116 = vrot.slane %v923, 1
        %v1117 = vrot.slane %v924, 1
        %v1118 = vrot.slane %v925, 1
        %v1119 = vrot.slane %v926, 1
        %v1120 = vrot.slane %v927, 1
        %v1121 = vrot.slane %v928, 1
        %v1122 = vrot.slane %v929, 1
        %v1123 = vrot.slane %v930, 1
        %v1124 = vrot.slane %v931, 1
        %v1125 = vrot.slane %v932, 1
        %v1126 = vrot.slane %v933, 1
        %v1127 = vrot.slane %v934, 1
        %v1128 = vrot.slane %v935, 1
        %v1129 = vrot.slane %v936, 1
        %v1130 = vrot.slane %v937, 1
        %v1131 = vrot.slane %v938, 1
        %vm1132 = vcmp.lt.s32.totalorder %v427, 7
        %v1133 = vsel %vm1132, %v1130, %v1131
        %v1134 = vsel %vm1132, %v1129, %v1130
        %v1135 = vsel %vm1132, %v1128, %v1129
        %v1136 = vsel %vm1132, %v1127, %v1128
        %v1137 = vsel %vm1132, %v1126, %v1127
        %v1138 = vsel %vm1132, %v1125, %v1126
        %v1139 = vsel %vm1132, %v1124, %v1125
        %v1140 = vsel %vm1132, %v1123, %v1124
        %v1141 = vsel %vm1132, %v1122, %v1123
        %v1142 = vsel %vm1132, %v1121, %v1122
        %v1143 = vsel %vm1132, %v1120, %v1121
        %v1144 = vsel %vm1132, %v1119, %v1120
        %v1145 = vsel %vm1132, %v1118, %v1119
        %v1146 = vsel %vm1132, %v1117, %v1118
        %v1147 = vsel %vm1132, %v1116, %v1117
        %v1148 = vsel %vm1132, %v1115, %v1116
        %v1149 = vsel %vm1132, %v1114, %v1115
        %v1150 = vsel %vm1132, %v1113, %v1114
        %v1151 = vsel %vm1132, %v1112, %v1113
        %v1152 = vsel %vm1132, %v1111, %v1112
        %v1153 = vsel %vm1132, %v1110, %v1111
        %v1154 = vsel %vm1132, %v1109, %v1110
        %v1155 = vsel %vm1132, %v1108, %v1109
        %v1156 = vsel %vm1132, %v1107, %v1108
        %v1157 = vsel %vm1132, %v1106, %v1107
        %v1158 = vsel %vm1132, %v1105, %v1106
        %v1159 = vsel %vm1132, %v1104, %v1105
        %v1160 = vsel %vm1132, %v1103, %v1104
        %v1161 = vsel %vm1132, %v1102, %v1103
        %v1162 = vsel %vm1132, %v1101, %v1102
        %v1163 = vsel %vm1132, %v1100, %v1101
        %v1164 = vsel %vm1132, %v1131, %v1100
        %v1165 = vsel %vm875, 1, 0
        %v1166 = vsel %vm876, 1, 0
        %v1167 = vsel %vm877, 1, 0
        %v1168 = vsel %vm878, 1, 0
        %v1169 = vsel %vm879, 1, 0
        %v1170 = vsel %vm880, 1, 0
        %v1171 = vsel %vm881, 1, 0
        %v1172 = vsel %vm882, 1, 0
        %v1173 = vsel %vm883, 1, 0
        %v1174 = vsel %vm884, 1, 0
        %v1175 = vsel %vm885, 1, 0
        %v1176 = vsel %vm886, 1, 0
        %v1177 = vsel %vm887, 1, 0
        %v1178 = vsel %vm888, 1, 0
        %v1179 = vsel %vm889, 1, 0
        %v1180 = vsel %vm890, 1, 0
        %v1181 = vsel %vm891, 1, 0
        %v1182 = vsel %vm892, 1, 0
        %v1183 = vsel %vm893, 1, 0
        %v1184 = vsel %vm894, 1, 0
        %v1185 = vsel %vm895, 1, 0
        %v1186 = vsel %vm896, 1, 0
        %v1187 = vsel %vm897, 1, 0
        %v1188 = vsel %vm898, 1, 0
        %v1189 = vsel %vm899, 1, 0
        %v1190 = vsel %vm900, 1, 0
        %v1191 = vsel %vm901, 1, 0
        %v1192 = vsel %vm902, 1, 0
        %v1193 = vsel %vm903, 1, 0
        %v1194 = vsel %vm904, 1, 0
        %v1195 = vsel %vm905, 1, 0
        %v1196 = vsel %vm906, 1, 0
        %vm1197 = vcmp.eq.s32.totalorder %v1165, 1
        %vm1198 = vcmp.eq.s32.totalorder %v1166, 1
        %vm1199 = vcmp.eq.s32.totalorder %v1167, 1
        %vm1200 = vcmp.eq.s32.totalorder %v1168, 1
        %vm1201 = vcmp.eq.s32.totalorder %v1169, 1
        %vm1202 = vcmp.eq.s32.totalorder %v1170, 1
        %vm1203 = vcmp.eq.s32.totalorder %v1171, 1
        %vm1204 = vcmp.eq.s32.totalorder %v1172, 1
        %vm1205 = vcmp.eq.s32.totalorder %v1173, 1
        %vm1206 = vcmp.eq.s32.totalorder %v1174, 1
        %vm1207 = vcmp.eq.s32.totalorder %v1175, 1
        %vm1208 = vcmp.eq.s32.totalorder %v1176, 1
        %vm1209 = vcmp.eq.s32.totalorder %v1177, 1
        %vm1210 = vcmp.eq.s32.totalorder %v1178, 1
        %vm1211 = vcmp.eq.s32.totalorder %v1179, 1
        %vm1212 = vcmp.eq.s32.totalorder %v1180, 1
        %vm1213 = vcmp.eq.s32.totalorder %v1181, 1
        %vm1214 = vcmp.eq.s32.totalorder %v1182, 1
        %vm1215 = vcmp.eq.s32.totalorder %v1183, 1
        %vm1216 = vcmp.eq.s32.totalorder %v1184, 1
        %vm1217 = vcmp.eq.s32.totalorder %v1185, 1
        %vm1218 = vcmp.eq.s32.totalorder %v1186, 1
        %vm1219 = vcmp.eq.s32.totalorder %v1187, 1
        %vm1220 = vcmp.eq.s32.totalorder %v1188, 1
        %vm1221 = vcmp.eq.s32.totalorder %v1189, 1
        %vm1222 = vcmp.eq.s32.totalorder %v1190, 1
        %vm1223 = vcmp.eq.s32.totalorder %v1191, 1
        %vm1224 = vcmp.eq.s32.totalorder %v1192, 1
        %vm1225 = vcmp.eq.s32.totalorder %v1193, 1
        %vm1226 = vcmp.eq.s32.totalorder %v1194, 1
        %vm1227 = vcmp.eq.s32.totalorder %v1195, 1
        %vm1228 = vcmp.eq.s32.totalorder %v1196, 1
        %v1229 = vsel %vm1197, %v1163, 0.0
        %v1230 = vsel %vm1198, %v1162, 0.0
        %v1231 = vsel %vm1199, %v1161, 0.0
        %v1232 = vsel %vm1200, %v1160, 0.0
        %v1233 = vsel %vm1201, %v1159, 0.0
        %v1234 = vsel %vm1202, %v1158, 0.0
        %v1235 = vsel %vm1203, %v1157, 0.0
        %v1236 = vsel %vm1204, %v1156, 0.0
        %v1237 = vsel %vm1205, %v1155, 0.0
        %v1238 = vsel %vm1206, %v1154, 0.0
        %v1239 = vsel %vm1207, %v1153, 0.0
        %v1240 = vsel %vm1208, %v1152, 0.0
        %v1241 = vsel %vm1209, %v1151, 0.0
        %v1242 = vsel %vm1210, %v1150, 0.0
        %v1243 = vsel %vm1211, %v1149, 0.0
        %v1244 = vsel %vm1212, %v1148, 0.0
        %v1245 = vsel %vm1213, %v1147, 0.0
        %v1246 = vsel %vm1214, %v1146, 0.0
        %v1247 = vsel %vm1215, %v1145, 0.0
        %v1248 = vsel %vm1216, %v1144, 0.0
        %v1249 = vsel %vm1217, %v1143, 0.0
        %v1250 = vsel %vm1218, %v1142, 0.0
        %v1251 = vsel %vm1219, %v1141, 0.0
        %v1252 = vsel %vm1220, %v1140, 0.0
        %v1253 = vsel %vm1221, %v1139, 0.0
        %v1254 = vsel %vm1222, %v1138, 0.0
        %v1255 = vsel %vm1223, %v1137, 0.0
        %v1256 = vsel %vm1224, %v1136, 0.0
        %v1257 = vsel %vm1225, %v1135, 0.0
        %v1258 = vsel %vm1226, %v1134, 0.0
        %v1259 = vsel %vm1227, %v1133, 0.0
        %v1260 = vsel %vm1228, %v1164, 0.0
        %v1261 = vpack.c.bf16 %v907, %v1068
        %v1262 = vpack.c.bf16 %v1229, %v1229
        %v1263 = vpack.c.bf16 %v908, %v1069
        %v1264 = vpack.c.bf16 %v1230, %v1230
        %v1265 = vpack.c.bf16 %v909, %v1070
        %v1266 = vpack.c.bf16 %v1231, %v1231
        %v1267 = vpack.c.bf16 %v910, %v1071
        %v1268 = vpack.c.bf16 %v1232, %v1232
        %v1269 = vpack.c.bf16 %v911, %v1072
        %v1270 = vpack.c.bf16 %v1233, %v1233
        %v1271 = vpack.c.bf16 %v912, %v1073
        %v1272 = vpack.c.bf16 %v1234, %v1234
        %v1273 = vpack.c.bf16 %v913, %v1074
        %v1274 = vpack.c.bf16 %v1235, %v1235
        %v1275 = vpack.c.bf16 %v914, %v1075
        %v1276 = vpack.c.bf16 %v1236, %v1236
        %v1277 = vpack.c.bf16 %v915, %v1076
        %v1278 = vpack.c.bf16 %v1237, %v1237
        %v1279 = vpack.c.bf16 %v916, %v1077
        %v1280 = vpack.c.bf16 %v1238, %v1238
        %v1281 = vpack.c.bf16 %v917, %v1078
        %v1282 = vpack.c.bf16 %v1239, %v1239
        %v1283 = vpack.c.bf16 %v918, %v1079
        %v1284 = vpack.c.bf16 %v1240, %v1240
        %v1285 = vpack.c.bf16 %v919, %v1080
        %v1286 = vpack.c.bf16 %v1241, %v1241
        %v1287 = vpack.c.bf16 %v920, %v1081
        %v1288 = vpack.c.bf16 %v1242, %v1242
        %v1289 = vpack.c.bf16 %v921, %v1082
        %v1290 = vpack.c.bf16 %v1243, %v1243
        %v1291 = vpack.c.bf16 %v922, %v1083
        %v1292 = vpack.c.bf16 %v1244, %v1244
        %v1293 = vpack.c.bf16 %v923, %v1084
        %v1294 = vpack.c.bf16 %v1245, %v1245
        %v1295 = vpack.c.bf16 %v924, %v1085
        %v1296 = vpack.c.bf16 %v1246, %v1246
        %v1297 = vpack.c.bf16 %v925, %v1086
        %v1298 = vpack.c.bf16 %v1247, %v1247
        %v1299 = vpack.c.bf16 %v926, %v1087
        %v1300 = vpack.c.bf16 %v1248, %v1248
        %v1301 = vpack.c.bf16 %v927, %v1088
        %v1302 = vpack.c.bf16 %v1249, %v1249
        %v1303 = vpack.c.bf16 %v928, %v1089
        %v1304 = vpack.c.bf16 %v1250, %v1250
        %v1305 = vpack.c.bf16 %v929, %v1090
        %v1306 = vpack.c.bf16 %v1251, %v1251
        %v1307 = vpack.c.bf16 %v930, %v1091
        %v1308 = vpack.c.bf16 %v1252, %v1252
        %v1309 = vpack.c.bf16 %v931, %v1092
        %v1310 = vpack.c.bf16 %v1253, %v1253
        %v1311 = vpack.c.bf16 %v932, %v1093
        %v1312 = vpack.c.bf16 %v1254, %v1254
        %v1313 = vpack.c.bf16 %v933, %v1094
        %v1314 = vpack.c.bf16 %v1255, %v1255
        %v1315 = vpack.c.bf16 %v934, %v1095
        %v1316 = vpack.c.bf16 %v1256, %v1256
        %v1317 = vpack.c.bf16 %v935, %v1096
        %v1318 = vpack.c.bf16 %v1257, %v1257
        %v1319 = vpack.c.bf16 %v936, %v1097
        %v1320 = vpack.c.bf16 %v1258, %v1258
        %v1321 = vpack.c.bf16 %v937, %v1098
        %v1322 = vpack.c.bf16 %v1259, %v1259
        %v1323 = vpack.c.bf16 %v938, %v1099
        %v1324 = vpack.c.bf16 %v1260, %v1260
        %1325 = vst [vmem:[#allocation2 + $0x18] sm:$0xff] %v1261
        %1326 = vst [vmem:[#allocation2 + $0x20] sm:$0xf] %v1262
        %1327 = vst [vmem:[#allocation2 + $0x24] sm:$0xff] %v1263
        %1328 = vst [vmem:[#allocation2 + $0x2c] sm:$0xf] %v1264
        %1329 = vst [vmem:[#allocation2 + $0x30] sm:$0xff] %v1265
        %1330 = vst [vmem:[#allocation2 + $0x38] sm:$0xf] %v1266
        %1331 = vst [vmem:[#allocation2 + $0x3c] sm:$0xff] %v1267
        %1332 = vst [vmem:[#allocation2 + $0x44] sm:$0xf] %v1268
        %1333 = vst [vmem:[#allocation2 + $0x48] sm:$0xff] %v1269
        %1334 = vst [vmem:[#allocation2 + $0x50] sm:$0xf] %v1270
        %1335 = vst [vmem:[#allocation2 + $0x54] sm:$0xff] %v1271
        %1336 = vst [vmem:[#allocation2 + $0x5c] sm:$0xf] %v1272
        %1337 = vst [vmem:[#allocation2 + $0x60] sm:$0xff] %v1273
        %1338 = vst [vmem:[#allocation2 + $0x68] sm:$0xf] %v1274
        %1339 = vst [vmem:[#allocation2 + $0x6c] sm:$0xff] %v1275
        %1340 = vst [vmem:[#allocation2 + $0x74] sm:$0xf] %v1276
        %1341 = vst [vmem:[#allocation2 + $0x78] sm:$0xff] %v1277
        %1342 = vst [vmem:[#allocation2 + $0x80] sm:$0xf] %v1278
        %1343 = vst [vmem:[#allocation2 + $0x84] sm:$0xff] %v1279
        %1344 = vst [vmem:[#allocation2 + $0x8c] sm:$0xf] %v1280
        %1345 = vst [vmem:[#allocation2 + $0x90] sm:$0xff] %v1281
        %1346 = vst [vmem:[#allocation2 + $0x98] sm:$0xf] %v1282
        %1347 = vst [vmem:[#allocation2 + $0x9c] sm:$0xff] %v1283
        %1348 = vst [vmem:[#allocation2 + $0xa4] sm:$0xf] %v1284
        %1349 = vst [vmem:[#allocation2 + $0xa8] sm:$0xff] %v1285
        %1350 = vst [vmem:[#allocation2 + $0xb0] sm:$0xf] %v1286
        %1351 = vst [vmem:[#allocation2 + $0xb4] sm:$0xff] %v1287
        %1352 = vst [vmem:[#allocation2 + $0xbc] sm:$0xf] %v1288
        %1353 = vst [vmem:[#allocation2 + $0xc0] sm:$0xff] %v1289
        %1354 = vst [vmem:[#allocation2 + $0xc8] sm:$0xf] %v1290
        %1355 = vst [vmem:[#allocation2 + $0xcc] sm:$0xff] %v1291
        %1356 = vst [vmem:[#allocation2 + $0xd4] sm:$0xf] %v1292
        %1357 = vst [vmem:[#allocation2 + $0xd8] sm:$0xff] %v1293
        %1358 = vst [vmem:[#allocation2 + $0xe0] sm:$0xf] %v1294
        %1359 = vst [vmem:[#allocation2 + $0xe4] sm:$0xff] %v1295
        %1360 = vst [vmem:[#allocation2 + $0xec] sm:$0xf] %v1296
        %1361 = vst [vmem:[#allocation2 + $0xf0] sm:$0xff] %v1297
        %1362 = vst [vmem:[#allocation2 + $0xf8] sm:$0xf] %v1298
        %1363 = vst [vmem:[#allocation2 + $0xfc] sm:$0xff] %v1299
        %1364 = vst [vmem:[#allocation2 + $0x104] sm:$0xf] %v1300
        %1365 = vst [vmem:[#allocation2 + $0x108] sm:$0xff] %v1301
        %1366 = vst [vmem:[#allocation2 + $0x110] sm:$0xf] %v1302
        %1367 = vst [vmem:[#allocation2 + $0x114] sm:$0xff] %v1303
        %1368 = vst [vmem:[#allocation2 + $0x11c] sm:$0xf] %v1304
        %1369 = vst [vmem:[#allocation2 + $0x120] sm:$0xff] %v1305
        %1370 = vst [vmem:[#allocation2 + $0x128] sm:$0xf] %v1306
        %1371 = vst [vmem:[#allocation2 + $0x12c] sm:$0xff] %v1307
        %1372 = vst [vmem:[#allocation2 + $0x134] sm:$0xf] %v1308
        %1373 = vst [vmem:[#allocation2 + $0x138] sm:$0xff] %v1309
        %1374 = vst [vmem:[#allocation2 + $0x140] sm:$0xf] %v1310
        %1375 = vst [vmem:[#allocation2 + $0x144] sm:$0xff] %v1311
        %1376 = vst [vmem:[#allocation2 + $0x14c] sm:$0xf] %v1312
        %1377 = vst [vmem:[#allocation2 + $0x150] sm:$0xff] %v1313
        %1378 = vst [vmem:[#allocation2 + $0x158] sm:$0xf] %v1314
        %1379 = vst [vmem:[#allocation2 + $0x15c] sm:$0xff] %v1315
        %1380 = vst [vmem:[#allocation2 + $0x164] sm:$0xf] %v1316
        %1381 = vst [vmem:[#allocation2 + $0x168] sm:$0xff] %v1317
        %1382 = vst [vmem:[#allocation2 + $0x170] sm:$0xf] %v1318
        %1383 = vst [vmem:[#allocation2 + $0x174] sm:$0xff] %v1319
        %1384 = vst [vmem:[#allocation2 + $0x17c] sm:$0xf] %v1320
        %1385 = vst [vmem:[#allocation2 + $0x180] sm:$0xff] %v1321
        %1386 = vst [vmem:[#allocation2 + $0x188] sm:$0xf] %v1322
        %1387 = vst [vmem:[#allocation2 + $0x18c] sm:$0xff] %v1323
        %1388 = vst [vmem:[#allocation2 + $0x194] sm:$0xf] %v1324
        %v1389 = vld [vmem:[#allocation2] sm:$0xff]
        %v1390 = vld [vmem:[#allocation2 + $0x8] sm:$0xf]
        %v1391 = vld [vmem:[#allocation2 + $0xc] sm:$0xff]
        %v1392 = vld [vmem:[#allocation2 + $0x14] sm:$0xf]
        %v1393 = vld [vmem:[#allocation2 + $0x18] sm:$0xff]
        %v1394 = vld [vmem:[#allocation2 + $0x20] sm:$0xf]
        %v1395 = vld [vmem:[#allocation2 + $0x24] sm:$0xff]
        %v1396 = vld [vmem:[#allocation2 + $0x2c] sm:$0xf]
        %v1397 = vld [vmem:[#allocation2 + $0x30] sm:$0xff]
        %v1398 = vld [vmem:[#allocation2 + $0x38] sm:$0xf]
        %v1399 = vld [vmem:[#allocation2 + $0x3c] sm:$0xff]
        %v1400 = vld [vmem:[#allocation2 + $0x44] sm:$0xf]
        %v1401 = vld [vmem:[#allocation2 + $0x48] sm:$0xff]
        %v1402 = vld [vmem:[#allocation2 + $0x50] sm:$0xf]
        %v1403 = vld [vmem:[#allocation2 + $0x54] sm:$0xff]
        %v1404 = vld [vmem:[#allocation2 + $0x5c] sm:$0xf]
        %v1405 = vld [vmem:[#allocation2 + $0x60] sm:$0xff]
        %v1406 = vld [vmem:[#allocation2 + $0x68] sm:$0xf]
        %v1407 = vld [vmem:[#allocation2 + $0x6c] sm:$0xff]
        %v1408 = vld [vmem:[#allocation2 + $0x74] sm:$0xf]
        %v1409 = vld [vmem:[#allocation2 + $0x78] sm:$0xff]
        %v1410 = vld [vmem:[#allocation2 + $0x80] sm:$0xf]
        %v1411 = vld [vmem:[#allocation2 + $0x84] sm:$0xff]
        %v1412 = vld [vmem:[#allocation2 + $0x8c] sm:$0xf]
        %v1413 = vld [vmem:[#allocation2 + $0x90] sm:$0xff]
        %v1414 = vld [vmem:[#allocation2 + $0x98] sm:$0xf]
        %v1415 = vld [vmem:[#allocation2 + $0x9c] sm:$0xff]
        %v1416 = vld [vmem:[#allocation2 + $0xa4] sm:$0xf]
        %v1417 = vld [vmem:[#allocation2 + $0xa8] sm:$0xff]
        %v1418 = vld [vmem:[#allocation2 + $0xb0] sm:$0xf]
        %v1419 = vld [vmem:[#allocation2 + $0xb4] sm:$0xff]
        %v1420 = vld [vmem:[#allocation2 + $0xbc] sm:$0xf]
        %v1421 = vld [vmem:[#allocation2 + $0xc0] sm:$0xff]
        %v1422 = vld [vmem:[#allocation2 + $0xc8] sm:$0xf]
        %v1423 = vld [vmem:[#allocation2 + $0xcc] sm:$0xff]
        %v1424 = vld [vmem:[#allocation2 + $0xd4] sm:$0xf]
        %v1425 = vld [vmem:[#allocation2 + $0xd8] sm:$0xff]
        %v1426 = vld [vmem:[#allocation2 + $0xe0] sm:$0xf]
        %v1427 = vld [vmem:[#allocation2 + $0xe4] sm:$0xff]
        %v1428 = vld [vmem:[#allocation2 + $0xec] sm:$0xf]
        %v1429 = vld [vmem:[#allocation2 + $0xf0] sm:$0xff]
        %v1430 = vld [vmem:[#allocation2 + $0xf8] sm:$0xf]
        %v1431 = vld [vmem:[#allocation2 + $0xfc] sm:$0xff]
        %v1432 = vld [vmem:[#allocation2 + $0x104] sm:$0xf]
        %v1433 = vld [vmem:[#allocation2 + $0x108] sm:$0xff]
        %v1434 = vld [vmem:[#allocation2 + $0x110] sm:$0xf]
        %v1435 = vld [vmem:[#allocation2 + $0x114] sm:$0xff]
        %v1436 = vld [vmem:[#allocation2 + $0x11c] sm:$0xf]
        %v1437 = vld [vmem:[#allocation2 + $0x120] sm:$0xff]
        %v1438 = vld [vmem:[#allocation2 + $0x128] sm:$0xf]
        %v1439 = vld [vmem:[#allocation2 + $0x12c] sm:$0xff]
        %v1440 = vld [vmem:[#allocation2 + $0x134] sm:$0xf]
        %v1441 = vld [vmem:[#allocation2 + $0x138] sm:$0xff]
        %v1442 = vld [vmem:[#allocation2 + $0x140] sm:$0xf]
        %v1443 = vld [vmem:[#allocation2 + $0x144] sm:$0xff]
        %v1444 = vld [vmem:[#allocation2 + $0x14c] sm:$0xf]
        %v1445 = vld [vmem:[#allocation2 + $0x150] sm:$0xff]
        %v1446 = vld [vmem:[#allocation2 + $0x158] sm:$0xf]
        %v1447 = vld [vmem:[#allocation2 + $0x15c] sm:$0xff]
        %v1448 = vld [vmem:[#allocation2 + $0x164] sm:$0xf]
        %v1449 = vld [vmem:[#allocation2 + $0x168] sm:$0xff]
        %v1450 = vld [vmem:[#allocation2 + $0x170] sm:$0xf]
        %v1451 = vld [vmem:[#allocation2 + $0x174] sm:$0xff]
        %v1452 = vld [vmem:[#allocation2 + $0x17c] sm:$0xf]
        %v1453 = vld [vmem:[#allocation9] sm:$0xf]
        %v1454 = vld [vmem:[#allocation9 + $0x4] sm:$0xf]
        %v1455 = vld [vmem:[#allocation9 + $0x8] sm:$0xf]
        %v1456 = vld [vmem:[#allocation9 + $0xc] sm:$0xf]
        %v1457 = vld [vmem:[#allocation9 + $0x10] sm:$0xf]
        %v1458 = vld [vmem:[#allocation9 + $0x14] sm:$0xf]
        %v1459 = vld [vmem:[#allocation9 + $0x18] sm:$0xf]
        %v1460 = vld [vmem:[#allocation9 + $0x1c] sm:$0xf]
        %v1461 = vld [vmem:[#allocation9 + $0x20] sm:$0xf]
        %v1462 = vld [vmem:[#allocation9 + $0x24] sm:$0xf]
        %v1463 = vld [vmem:[#allocation9 + $0x28] sm:$0xf]
        %v1464 = vld [vmem:[#allocation9 + $0x2c] sm:$0xf]
        %v1465 = vld [vmem:[#allocation9 + $0x30] sm:$0xf]
        %v1466 = vld [vmem:[#allocation9 + $0x34] sm:$0xf]
        %v1467 = vld [vmem:[#allocation9 + $0x38] sm:$0xf]
        %v1468 = vld [vmem:[#allocation9 + $0x3c] sm:$0xf]
        %v1469 = vld [vmem:[#allocation9 + $0x40] sm:$0xf]
        %v1470 = vld [vmem:[#allocation9 + $0x44] sm:$0xf]
        %v1471 = vld [vmem:[#allocation9 + $0x48] sm:$0xf]
        %v1472 = vld [vmem:[#allocation9 + $0x4c] sm:$0xf]
        %v1473 = vld [vmem:[#allocation9 + $0x50] sm:$0xf]
        %v1474 = vld [vmem:[#allocation9 + $0x54] sm:$0xf]
        %v1475 = vld [vmem:[#allocation9 + $0x58] sm:$0xf]
        %v1476 = vld [vmem:[#allocation9 + $0x5c] sm:$0xf]
        %v1477 = vld [vmem:[#allocation9 + $0x60] sm:$0xf]
        %v1478 = vld [vmem:[#allocation9 + $0x64] sm:$0xf]
        %v1479 = vld [vmem:[#allocation9 + $0x68] sm:$0xf]
        %v1480 = vld [vmem:[#allocation9 + $0x6c] sm:$0xf]
        %v1481 = vld [vmem:[#allocation9 + $0x70] sm:$0xf]
        %v1482 = vld [vmem:[#allocation9 + $0x74] sm:$0xf]
        %v1483 = vld [vmem:[#allocation9 + $0x78] sm:$0xf]
        %v1484 = vld [vmem:[#allocation9 + $0x7c] sm:$0xf]
        %v1485 = vld [vmem:[#allocation9 + $0x80] sm:$0xf]
        %v1486 = vld [vmem:[#allocation9 + $0x84] sm:$0xf]
        %v1487 = vld [vmem:[#allocation9 + $0x88] sm:$0xf]
        %v1488 = vld [vmem:[#allocation9 + $0x8c] sm:$0xf]
        %v1489 = vld [vmem:[#allocation9 + $0x90] sm:$0xf]
        %v1490 = vld [vmem:[#allocation9 + $0x94] sm:$0xf]
        %v1491 = vld [vmem:[#allocation9 + $0x98] sm:$0xf]
        %v1492 = vld [vmem:[#allocation9 + $0x9c] sm:$0xf]
        %v1493 = vld [vmem:[#allocation9 + $0xa0] sm:$0xf]
        %v1494 = vld [vmem:[#allocation9 + $0xa4] sm:$0xf]
        %v1495 = vld [vmem:[#allocation9 + $0xa8] sm:$0xf]
        %v1496 = vld [vmem:[#allocation9 + $0xac] sm:$0xf]
        %v1497 = vld [vmem:[#allocation9 + $0xb0] sm:$0xf]
        %v1498 = vld [vmem:[#allocation9 + $0xb4] sm:$0xf]
        %v1499 = vld [vmem:[#allocation9 + $0xb8] sm:$0xf]
        %v1500 = vld [vmem:[#allocation9 + $0xbc] sm:$0xf]
        %v1501 = vld [vmem:[#allocation2 + $0x180] sm:$0xff]
        %v1502 = vld [vmem:[#allocation2 + $0x188] sm:$0xf]
        %v1503 = vld [vmem:[#allocation2 + $0x18c] sm:$0xff]
        %v1504 = vld [vmem:[#allocation2 + $0x194] sm:$0xf]
        %s1505 = scalar_lea.vmem [#allocation9], 192
        %v1506 = vld [vmem:[%s1505] sm:$0xf]
        %v1507 = vld [vmem:[%s1505 + $0x4] sm:$0xf]
        %v1508 = vld [vmem:[%s1505 + $0x8] sm:$0xf]
        %v1509 = vld [vmem:[%s1505 + $0xc] sm:$0xf]
        %v1510 = vld [vmem:[%s1505 + $0x10] sm:$0xf]
        %v1511 = vld [vmem:[%s1505 + $0x14] sm:$0xf]
        %v1512 = vld [vmem:[%s1505 + $0x18] sm:$0xf]
        %v1513 = vld [vmem:[%s1505 + $0x1c] sm:$0xf]
        %v1514 = vld [vmem:[%s1505 + $0x20] sm:$0xf]
        %v1515 = vld [vmem:[%s1505 + $0x24] sm:$0xf]
        %v1516 = vld [vmem:[%s1505 + $0x28] sm:$0xf]
        %v1517 = vld [vmem:[%s1505 + $0x2c] sm:$0xf]
        %v1518 = vld [vmem:[%s1505 + $0x30] sm:$0xf]
        %v1519 = vld [vmem:[%s1505 + $0x34] sm:$0xf]
        %v1520 = vld [vmem:[%s1505 + $0x38] sm:$0xf]
        %v1521 = vld [vmem:[%s1505 + $0x3c] sm:$0xf]
        %v1522 = vld [vmem:[%s1505 + $0x40] sm:$0xf]
        %v1523 = vld [vmem:[%s1505 + $0x44] sm:$0xf]
        %v1524 = vld [vmem:[%s1505 + $0x48] sm:$0xf]
        %v1525 = vld [vmem:[%s1505 + $0x4c] sm:$0xf]
        %v1526 = vld [vmem:[%s1505 + $0x50] sm:$0xf]
        %v1527 = vld [vmem:[%s1505 + $0x54] sm:$0xf]
        %v1528 = vld [vmem:[%s1505 + $0x58] sm:$0xf]
        %v1529 = vld [vmem:[%s1505 + $0x5c] sm:$0xf]
        %v1530 = vld [vmem:[%s1505 + $0x60] sm:$0xf]
        %v1531 = vld [vmem:[%s1505 + $0x64] sm:$0xf]
        %v1532 = vld [vmem:[%s1505 + $0x68] sm:$0xf]
        %v1533 = vld [vmem:[%s1505 + $0x6c] sm:$0xf]
        %v1534 = vld [vmem:[%s1505 + $0x70] sm:$0xf]
        %v1535 = vld [vmem:[%s1505 + $0x74] sm:$0xf]
        %v1536 = vld [vmem:[%s1505 + $0x78] sm:$0xf]
        %v1537 = vld [vmem:[%s1505 + $0x7c] sm:$0xf]
        %v1538 = vld [vmem:[%s1505 + $0x80] sm:$0xf]
        %v1539 = vld [vmem:[%s1505 + $0x84] sm:$0xf]
        %v1540 = vld [vmem:[%s1505 + $0x88] sm:$0xf]
        %v1541 = vld [vmem:[%s1505 + $0x8c] sm:$0xf]
        %v1542 = vld [vmem:[%s1505 + $0x90] sm:$0xf]
        %v1543 = vld [vmem:[%s1505 + $0x94] sm:$0xf]
        %v1544 = vld [vmem:[%s1505 + $0x98] sm:$0xf]
        %v1545 = vld [vmem:[%s1505 + $0x9c] sm:$0xf]
        %v1546 = vld [vmem:[%s1505 + $0xa0] sm:$0xf]
        %v1547 = vld [vmem:[%s1505 + $0xa4] sm:$0xf]
        %v1548 = vld [vmem:[%s1505 + $0xa8] sm:$0xf]
        %v1549 = vld [vmem:[%s1505 + $0xac] sm:$0xf]
        %v1550 = vld [vmem:[%s1505 + $0xb0] sm:$0xf]
        %v1551 = vld [vmem:[%s1505 + $0xb4] sm:$0xf]
        %v1552 = vld [vmem:[%s1505 + $0xb8] sm:$0xf]
        %v1553 = vld [vmem:[%s1505 + $0xbc] sm:$0xf]
        %v1618 = vunpack.c.l.b16 %v1393
        %v1619 = vunpack.c.h.b16 %v1393
        %v1620 = vunpack.c.l.b16 %v1394
        %v1621 = vunpack.c.l.b16 %v1395
        %v1622 = vunpack.c.h.b16 %v1395
        %v1623 = vunpack.c.l.b16 %v1396
        %v1624 = vunpack.c.l.b16 %v1397
        %v1625 = vunpack.c.h.b16 %v1397
        %v1626 = vunpack.c.l.b16 %v1398
        %v1627 = vunpack.c.l.b16 %v1399
        %v1628 = vunpack.c.h.b16 %v1399
        %v1629 = vunpack.c.l.b16 %v1400
        %v1630 = vunpack.c.l.b16 %v1401
        %v1631 = vunpack.c.h.b16 %v1401
        %v1632 = vunpack.c.l.b16 %v1402
        %v1633 = vunpack.c.l.b16 %v1403
        %v1634 = vunpack.c.h.b16 %v1403
        %v1635 = vunpack.c.l.b16 %v1404
        %v1636 = vunpack.c.l.b16 %v1405
        %v1637 = vunpack.c.h.b16 %v1405
        %v1638 = vunpack.c.l.b16 %v1406
        %v1639 = vunpack.c.l.b16 %v1407
        %v1640 = vunpack.c.h.b16 %v1407
        %v1641 = vunpack.c.l.b16 %v1408
        %v1642 = vunpack.c.l.b16 %v1409
        %v1643 = vunpack.c.h.b16 %v1409
        %v1644 = vunpack.c.l.b16 %v1410
        %v1645 = vunpack.c.l.b16 %v1411
        %v1646 = vunpack.c.h.b16 %v1411
        %v1647 = vunpack.c.l.b16 %v1412
        %v1648 = vunpack.c.l.b16 %v1413
        %v1649 = vunpack.c.h.b16 %v1413
        %v1650 = vunpack.c.l.b16 %v1414
        %v1651 = vunpack.c.l.b16 %v1415
        %v1652 = vunpack.c.h.b16 %v1415
        %v1653 = vunpack.c.l.b16 %v1416
        %v1654 = vunpack.c.l.b16 %v1417
        %v1655 = vunpack.c.h.b16 %v1417
        %v1656 = vunpack.c.l.b16 %v1418
        %v1657 = vunpack.c.l.b16 %v1419
        %v1658 = vunpack.c.h.b16 %v1419
        %v1659 = vunpack.c.l.b16 %v1420
        %v1660 = vunpack.c.l.b16 %v1421
        %v1661 = vunpack.c.h.b16 %v1421
        %v1662 = vunpack.c.l.b16 %v1422
        %v1663 = vunpack.c.l.b16 %v1423
        %v1664 = vunpack.c.h.b16 %v1423
        %v1665 = vunpack.c.l.b16 %v1424
        %v1666 = vunpack.c.l.b16 %v1425
        %v1667 = vunpack.c.h.b16 %v1425
        %v1668 = vunpack.c.l.b16 %v1426
        %v1669 = vunpack.c.l.b16 %v1427
        %v1670 = vunpack.c.h.b16 %v1427
        %v1671 = vunpack.c.l.b16 %v1428
        %v1672 = vunpack.c.l.b16 %v1429
        %v1673 = vunpack.c.h.b16 %v1429
        %v1674 = vunpack.c.l.b16 %v1430
        %v1675 = vunpack.c.l.b16 %v1431
        %v1676 = vunpack.c.h.b16 %v1431
        %v1677 = vunpack.c.l.b16 %v1432
        %v1678 = vunpack.c.l.b16 %v1433
        %v1679 = vunpack.c.h.b16 %v1433
        %v1680 = vunpack.c.l.b16 %v1434
        %v1681 = vunpack.c.l.b16 %v1435
        %v1682 = vunpack.c.h.b16 %v1435
        %v1683 = vunpack.c.l.b16 %v1436
        %v1684 = vunpack.c.l.b16 %v1437
        %v1685 = vunpack.c.h.b16 %v1437
        %v1686 = vunpack.c.l.b16 %v1438
        %v1687 = vunpack.c.l.b16 %v1439
        %v1688 = vunpack.c.h.b16 %v1439
        %v1689 = vunpack.c.l.b16 %v1440
        %v1690 = vunpack.c.l.b16 %v1441
        %v1691 = vunpack.c.h.b16 %v1441
        %v1692 = vunpack.c.l.b16 %v1442
        %v1693 = vunpack.c.l.b16 %v1443
        %v1694 = vunpack.c.h.b16 %v1443
        %v1695 = vunpack.c.l.b16 %v1444
        %v1696 = vunpack.c.l.b16 %v1445
        %v1697 = vunpack.c.h.b16 %v1445
        %v1698 = vunpack.c.l.b16 %v1446
        %v1699 = vunpack.c.l.b16 %v1447
        %v1700 = vunpack.c.h.b16 %v1447
        %v1701 = vunpack.c.l.b16 %v1448
        %v1702 = vunpack.c.l.b16 %v1449
        %v1703 = vunpack.c.h.b16 %v1449
        %v1704 = vunpack.c.l.b16 %v1450
        %v1705 = vunpack.c.l.b16 %v1451
        %v1706 = vunpack.c.h.b16 %v1451
        %v1707 = vunpack.c.l.b16 %v1452
        %v1708 = vunpack.c.l.b16 %v1501
        %v1709 = vunpack.c.h.b16 %v1501
        %v1710 = vunpack.c.l.b16 %v1502
        %v1711 = vunpack.c.l.b16 %v1503
        %v1712 = vunpack.c.h.b16 %v1503
        %v1713 = vunpack.c.l.b16 %v1504
        %v1714 = vpack.c.b16 %v1621, %v1618
        %v1715 = vpack.c.b16 %v1622, %v1619
        %v1716 = vpack.c.b16 %v1623, %v1620
        %v1717 = vpack.c.b16 %v1627, %v1624
        %v1718 = vpack.c.b16 %v1628, %v1625
        %v1719 = vpack.c.b16 %v1629, %v1626
        %v1720 = vpack.c.b16 %v1633, %v1630
        %v1721 = vpack.c.b16 %v1634, %v1631
        %v1722 = vpack.c.b16 %v1635, %v1632
        %v1723 = vpack.c.b16 %v1639, %v1636
        %v1724 = vpack.c.b16 %v1640, %v1637
        %v1725 = vpack.c.b16 %v1641, %v1638
        %v1726 = vpack.c.b16 %v1645, %v1642
        %v1727 = vpack.c.b16 %v1646, %v1643
        %v1728 = vpack.c.b16 %v1647, %v1644
        %v1729 = vpack.c.b16 %v1651, %v1648
        %v1730 = vpack.c.b16 %v1652, %v1649
        %v1731 = vpack.c.b16 %v1653, %v1650
        %v1732 = vpack.c.b16 %v1657, %v1654
        %v1733 = vpack.c.b16 %v1658, %v1655
        %v1734 = vpack.c.b16 %v1659, %v1656
        %v1735 = vpack.c.b16 %v1663, %v1660
        %v1736 = vpack.c.b16 %v1664, %v1661
        %v1737 = vpack.c.b16 %v1665, %v1662
        %v1738 = vpack.c.b16 %v1669, %v1666
        %v1739 = vpack.c.b16 %v1670, %v1667
        %v1740 = vpack.c.b16 %v1671, %v1668
        %v1741 = vpack.c.b16 %v1675, %v1672
        %v1742 = vpack.c.b16 %v1676, %v1673
        %v1743 = vpack.c.b16 %v1677, %v1674
        %v1744 = vpack.c.b16 %v1681, %v1678
        %v1745 = vpack.c.b16 %v1682, %v1679
        %v1746 = vpack.c.b16 %v1683, %v1680
        %v1747 = vpack.c.b16 %v1687, %v1684
        %v1748 = vpack.c.b16 %v1688, %v1685
        %v1749 = vpack.c.b16 %v1689, %v1686
        %v1750 = vpack.c.b16 %v1693, %v1690
        %v1751 = vpack.c.b16 %v1694, %v1691
        %v1752 = vpack.c.b16 %v1695, %v1692
        %v1753 = vpack.c.b16 %v1699, %v1696
        %v1754 = vpack.c.b16 %v1700, %v1697
        %v1755 = vpack.c.b16 %v1701, %v1698
        %v1756 = vpack.c.b16 %v1705, %v1702
        %v1757 = vpack.c.b16 %v1706, %v1703
        %v1758 = vpack.c.b16 %v1707, %v1704
        %v1759 = vpack.c.b16 %v1711, %v1708
        %v1760 = vpack.c.b16 %v1712, %v1709
        %v1761 = vpack.c.b16 %v1713, %v1710
        %v1858 = vunpack.c.l.b16 %v1506
        %v1859 = vunpack.c.l.b16 %v1507
        %v1860 = vunpack.c.l.b16 %v1508
        %v1861 = vunpack.c.l.b16 %v1509
        %v1862 = vunpack.c.l.b16 %v1510
        %v1863 = vunpack.c.l.b16 %v1511
        %v1864 = vunpack.c.l.b16 %v1512
        %v1865 = vunpack.c.l.b16 %v1513
        %v1866 = vunpack.c.l.b16 %v1514
        %v1867 = vunpack.c.l.b16 %v1515
        %v1868 = vunpack.c.l.b16 %v1516
        %v1869 = vunpack.c.l.b16 %v1517
        %v1870 = vunpack.c.l.b16 %v1518
        %v1871 = vunpack.c.l.b16 %v1519
        %v1872 = vunpack.c.l.b16 %v1520
        %v1873 = vunpack.c.l.b16 %v1521
        %v1874 = vunpack.c.l.b16 %v1522
        %v1875 = vunpack.c.l.b16 %v1523
        %v1876 = vunpack.c.l.b16 %v1524
        %v1877 = vunpack.c.l.b16 %v1525
        %v1878 = vunpack.c.l.b16 %v1526
        %v1879 = vunpack.c.l.b16 %v1527
        %v1880 = vunpack.c.l.b16 %v1528
        %v1881 = vunpack.c.l.b16 %v1529
        %v1882 = vunpack.c.l.b16 %v1530
        %v1883 = vunpack.c.l.b16 %v1531
        %v1884 = vunpack.c.l.b16 %v1532
        %v1885 = vunpack.c.l.b16 %v1533
        %v1886 = vunpack.c.l.b16 %v1534
        %v1887 = vunpack.c.l.b16 %v1535
        %v1888 = vunpack.c.l.b16 %v1536
        %v1889 = vunpack.c.l.b16 %v1537
        %v1890 = vunpack.c.l.b16 %v1538
        %v1891 = vunpack.c.l.b16 %v1539
        %v1892 = vunpack.c.l.b16 %v1540
        %v1893 = vunpack.c.l.b16 %v1541
        %v1894 = vunpack.c.l.b16 %v1542
        %v1895 = vunpack.c.l.b16 %v1543
        %v1896 = vunpack.c.l.b16 %v1544
        %v1897 = vunpack.c.l.b16 %v1545
        %v1898 = vunpack.c.l.b16 %v1546
        %v1899 = vunpack.c.l.b16 %v1547
        %v1900 = vunpack.c.l.b16 %v1548
        %v1901 = vunpack.c.l.b16 %v1549
        %v1902 = vunpack.c.l.b16 %v1550
        %v1903 = vunpack.c.l.b16 %v1551
        %v1904 = vunpack.c.l.b16 %v1552
        %v1905 = vunpack.c.l.b16 %v1553
        %v1906 = vpack.c.b16 %v1859, %v1858
        %v1907 = vpack.c.b16 %v1861, %v1860
        %v1908 = vpack.c.b16 %v1863, %v1862
        %v1909 = vpack.c.b16 %v1865, %v1864
        %v1910 = vpack.c.b16 %v1867, %v1866
        %v1911 = vpack.c.b16 %v1869, %v1868
        %v1912 = vpack.c.b16 %v1871, %v1870
        %v1913 = vpack.c.b16 %v1873, %v1872
        %v1914 = vpack.c.b16 %v1875, %v1874
        %v1915 = vpack.c.b16 %v1877, %v1876
        %v1916 = vpack.c.b16 %v1879, %v1878
        %v1917 = vpack.c.b16 %v1881, %v1880
        %v1918 = vpack.c.b16 %v1883, %v1882
        %v1919 = vpack.c.b16 %v1885, %v1884
        %v1920 = vpack.c.b16 %v1887, %v1886
        %v1921 = vpack.c.b16 %v1889, %v1888
        %v1922 = vpack.c.b16 %v1891, %v1890
        %v1923 = vpack.c.b16 %v1893, %v1892
        %v1924 = vpack.c.b16 %v1895, %v1894
        %v1925 = vpack.c.b16 %v1897, %v1896
        %v1926 = vpack.c.b16 %v1899, %v1898
        %v1927 = vpack.c.b16 %v1901, %v1900
        %v1928 = vpack.c.b16 %v1903, %v1902
        %v1929 = vpack.c.b16 %v1905, %v1904
        %1954 = vmatpush.bf16.msra.mxu0 %v1913
        %1955 = vmatpush.bf16.msra.mxu0 %v1912
        %1956 = vmatpush.bf16.msra.mxu0 %v1911
        %1957 = vmatpush.bf16.msra.mxu0 %v1910
        %1958 = vmatpush.bf16.msra.mxu0 %v1909
        %1959 = vmatpush.bf16.msra.mxu0 %v1908
        %1960 = vmatpush.bf16.msra.mxu0 %v1907
        %1961 = vmatpush.bf16.msra.mxu0 %v1906
        %1962 = vmatmul.bf16.gmra.mxu0 %v1714
        %v1963 = vpop.f32.mrf.mxu0
        %v1964 = vadd.f32 0.0, %v1963
        %v1965 = vpop.f32.mrf.mxu0
        %v1966 = vadd.f32 0.0, %v1965
        %1967 = vmatmul.bf16.gmra.mxu0 %v1717
        %v1968 = vpop.f32.mrf.mxu0
        %v1969 = vadd.f32 0.0, %v1968
        %v1970 = vpop.f32.mrf.mxu0
        %v1971 = vadd.f32 0.0, %v1970
        %1972 = vmatmul.bf16.gmra.mxu0 %v1720
        %v1973 = vpop.f32.mrf.mxu0
        %v1974 = vadd.f32 0.0, %v1973
        %v1975 = vpop.f32.mrf.mxu0
        %v1976 = vadd.f32 0.0, %v1975
        %1977 = vmatmul.bf16.gmra.mxu0 %v1723
        %v1978 = vpop.f32.mrf.mxu0
        %v1979 = vadd.f32 0.0, %v1978
        %v1980 = vpop.f32.mrf.mxu0
        %v1981 = vadd.f32 0.0, %v1980
        %1982 = vmatmul.bf16.gmra.mxu0 %v1726
        %v1983 = vpop.f32.mrf.mxu0
        %v1984 = vadd.f32 0.0, %v1983
        %v1985 = vpop.f32.mrf.mxu0
        %v1986 = vadd.f32 0.0, %v1985
        %1987 = vmatmul.bf16.gmra.mxu0 %v1729
        %v1988 = vpop.f32.mrf.mxu0
        %v1989 = vadd.f32 0.0, %v1988
        %v1990 = vpop.f32.mrf.mxu0
        %v1991 = vadd.f32 0.0, %v1990
        %1992 = vmatmul.bf16.gmra.mxu0 %v1732
        %v1993 = vpop.f32.mrf.mxu0
        %v1994 = vadd.f32 0.0, %v1993
        %v1995 = vpop.f32.mrf.mxu0
        %v1996 = vadd.f32 0.0, %v1995
        %1997 = vmatmul.bf16.gmra.mxu0 %v1735
        %v1998 = vpop.f32.mrf.mxu0
        %v1999 = vadd.f32 0.0, %v1998
        %v2000 = vpop.f32.mrf.mxu0
        %v2001 = vadd.f32 0.0, %v2000
        %2002 = vmatmul.bf16.gmra.mxu0 %v1738
        %v2003 = vpop.f32.mrf.mxu0
        %v2004 = vadd.f32 0.0, %v2003
        %v2005 = vpop.f32.mrf.mxu0
        %v2006 = vadd.f32 0.0, %v2005
        %2007 = vmatmul.bf16.gmra.mxu0 %v1741
        %v2008 = vpop.f32.mrf.mxu0
        %v2009 = vadd.f32 0.0, %v2008
        %v2010 = vpop.f32.mrf.mxu0
        %v2011 = vadd.f32 0.0, %v2010
        %2012 = vmatmul.bf16.gmra.mxu0 %v1744
        %v2013 = vpop.f32.mrf.mxu0
        %v2014 = vadd.f32 0.0, %v2013
        %v2015 = vpop.f32.mrf.mxu0
        %v2016 = vadd.f32 0.0, %v2015
        %2017 = vmatmul.bf16.gmra.mxu0 %v1747
        %v2018 = vpop.f32.mrf.mxu0
        %v2019 = vadd.f32 0.0, %v2018
        %v2020 = vpop.f32.mrf.mxu0
        %v2021 = vadd.f32 0.0, %v2020
        %2022 = vmatmul.bf16.gmra.mxu0 %v1750
        %v2023 = vpop.f32.mrf.mxu0
        %v2024 = vadd.f32 0.0, %v2023
        %v2025 = vpop.f32.mrf.mxu0
        %v2026 = vadd.f32 0.0, %v2025
        %2027 = vmatmul.bf16.gmra.mxu0 %v1753
        %v2028 = vpop.f32.mrf.mxu0
        %v2029 = vadd.f32 0.0, %v2028
        %v2030 = vpop.f32.mrf.mxu0
        %v2031 = vadd.f32 0.0, %v2030
        %2032 = vmatmul.bf16.gmra.mxu0 %v1756
        %v2033 = vpop.f32.mrf.mxu0
        %v2034 = vadd.f32 0.0, %v2033
        %v2035 = vpop.f32.mrf.mxu0
        %v2036 = vadd.f32 0.0, %v2035
        %2037 = vmatmul.bf16.gmra.mxu0 %v1759
        %v2038 = vpop.f32.mrf.mxu0
        %v2039 = vadd.f32 0.0, %v2038
        %v2040 = vpop.f32.mrf.mxu0
        %v2041 = vadd.f32 0.0, %v2040
        %2042 = vdwg.mxu0
        %2043 = vmatpush.bf16.msra.mxu0 %v1921
        %2044 = vmatpush.bf16.msra.mxu0 %v1920
        %2045 = vmatpush.bf16.msra.mxu0 %v1919
        %2046 = vmatpush.bf16.msra.mxu0 %v1918
        %2047 = vmatpush.bf16.msra.mxu0 %v1917
        %2048 = vmatpush.bf16.msra.mxu0 %v1916
        %2049 = vmatpush.bf16.msra.mxu0 %v1915
        %2050 = vmatpush.bf16.msra.mxu0 %v1914
        %2051 = vmatmul.bf16.gmra.mxu0 %v1715
        %v2052 = vpop.f32.mrf.mxu0
        %v2053 = vadd.f32 %v1964, %v2052
        %v2054 = vpop.f32.mrf.mxu0
        %v2055 = vadd.f32 %v1966, %v2054
        %2056 = vmatmul.bf16.gmra.mxu0 %v1718
        %v2057 = vpop.f32.mrf.mxu0
        %v2058 = vadd.f32 %v1969, %v2057
        %v2059 = vpop.f32.mrf.mxu0
        %v2060 = vadd.f32 %v1971, %v2059
        %2061 = vmatmul.bf16.gmra.mxu0 %v1721
        %v2062 = vpop.f32.mrf.mxu0
        %v2063 = vadd.f32 %v1974, %v2062
        %v2064 = vpop.f32.mrf.mxu0
        %v2065 = vadd.f32 %v1976, %v2064
        %2066 = vmatmul.bf16.gmra.mxu0 %v1724
        %v2067 = vpop.f32.mrf.mxu0
        %v2068 = vadd.f32 %v1979, %v2067
        %v2069 = vpop.f32.mrf.mxu0
        %v2070 = vadd.f32 %v1981, %v2069
        %2071 = vmatmul.bf16.gmra.mxu0 %v1727
        %v2072 = vpop.f32.mrf.mxu0
        %v2073 = vadd.f32 %v1984, %v2072
        %v2074 = vpop.f32.mrf.mxu0
        %v2075 = vadd.f32 %v1986, %v2074
        %2076 = vmatmul.bf16.gmra.mxu0 %v1730
        %v2077 = vpop.f32.mrf.mxu0
        %v2078 = vadd.f32 %v1989, %v2077
        %v2079 = vpop.f32.mrf.mxu0
        %v2080 = vadd.f32 %v1991, %v2079
        %2081 = vmatmul.bf16.gmra.mxu0 %v1733
        %v2082 = vpop.f32.mrf.mxu0
        %v2083 = vadd.f32 %v1994, %v2082
        %v2084 = vpop.f32.mrf.mxu0
        %v2085 = vadd.f32 %v1996, %v2084
        %2086 = vmatmul.bf16.gmra.mxu0 %v1736
        %v2087 = vpop.f32.mrf.mxu0
        %v2088 = vadd.f32 %v1999, %v2087
        %v2089 = vpop.f32.mrf.mxu0
        %v2090 = vadd.f32 %v2001, %v2089
        %2091 = vmatmul.bf16.gmra.mxu0 %v1739
        %v2092 = vpop.f32.mrf.mxu0
        %v2093 = vadd.f32 %v2004, %v2092
        %v2094 = vpop.f32.mrf.mxu0
        %v2095 = vadd.f32 %v2006, %v2094
        %2096 = vmatmul.bf16.gmra.mxu0 %v1742
        %v2097 = vpop.f32.mrf.mxu0
        %v2098 = vadd.f32 %v2009, %v2097
        %v2099 = vpop.f32.mrf.mxu0
        %v2100 = vadd.f32 %v2011, %v2099
        %2101 = vmatmul.bf16.gmra.mxu0 %v1745
        %v2102 = vpop.f32.mrf.mxu0
        %v2103 = vadd.f32 %v2014, %v2102
        %v2104 = vpop.f32.mrf.mxu0
        %v2105 = vadd.f32 %v2016, %v2104
        %2106 = vmatmul.bf16.gmra.mxu0 %v1748
        %v2107 = vpop.f32.mrf.mxu0
        %v2108 = vadd.f32 %v2019, %v2107
        %v2109 = vpop.f32.mrf.mxu0
        %v2110 = vadd.f32 %v2021, %v2109
        %2111 = vmatmul.bf16.gmra.mxu0 %v1751
        %v2112 = vpop.f32.mrf.mxu0
        %v2113 = vadd.f32 %v2024, %v2112
        %v2114 = vpop.f32.mrf.mxu0
        %v2115 = vadd.f32 %v2026, %v2114
        %2116 = vmatmul.bf16.gmra.mxu0 %v1754
        %v2117 = vpop.f32.mrf.mxu0
        %v2118 = vadd.f32 %v2029, %v2117
        %v2119 = vpop.f32.mrf.mxu0
        %v2120 = vadd.f32 %v2031, %v2119
        %2121 = vmatmul.bf16.gmra.mxu0 %v1757
        %v2122 = vpop.f32.mrf.mxu0
        %v2123 = vadd.f32 %v2034, %v2122
        %v2124 = vpop.f32.mrf.mxu0
        %v2125 = vadd.f32 %v2036, %v2124
        %2126 = vmatmul.bf16.gmra.mxu0 %v1760
        %v2127 = vpop.f32.mrf.mxu0
        %v2128 = vadd.f32 %v2039, %v2127
        %v2129 = vpop.f32.mrf.mxu0
        %v2130 = vadd.f32 %v2041, %v2129
        %2131 = vdwg.mxu0
        %2132 = vmatpush.bf16.msra.mxu0 %v1929
        %2133 = vmatpush.bf16.msra.mxu0 %v1928
        %2134 = vmatpush.bf16.msra.mxu0 %v1927
        %2135 = vmatpush.bf16.msra.mxu0 %v1926
        %2136 = vmatpush.bf16.msra.mxu0 %v1925
        %2137 = vmatpush.bf16.msra.mxu0 %v1924
        %2138 = vmatpush.bf16.msra.mxu0 %v1923
        %2139 = vmatpush.bf16.msra.mxu0 %v1922
        %2140 = vmatmul.bf16.gmra.mxu0 %v1716
        %v2141 = vpop.f32.mrf.mxu0
        %v2142 = vadd.f32 %v2053, %v2141
        %v2143 = vpop.f32.mrf.mxu0
        %v2144 = vadd.f32 %v2055, %v2143
        %2145 = vmatmul.bf16.gmra.mxu0 %v1719
        %v2146 = vpop.f32.mrf.mxu0
        %v2147 = vadd.f32 %v2058, %v2146
        %v2148 = vpop.f32.mrf.mxu0
        %v2149 = vadd.f32 %v2060, %v2148
        %2150 = vmatmul.bf16.gmra.mxu0 %v1722
        %v2151 = vpop.f32.mrf.mxu0
        %v2152 = vadd.f32 %v2063, %v2151
        %v2153 = vpop.f32.mrf.mxu0
        %v2154 = vadd.f32 %v2065, %v2153
        %2155 = vmatmul.bf16.gmra.mxu0 %v1725
        %v2156 = vpop.f32.mrf.mxu0
        %v2157 = vadd.f32 %v2068, %v2156
        %v2158 = vpop.f32.mrf.mxu0
        %v2159 = vadd.f32 %v2070, %v2158
        %2160 = vmatmul.bf16.gmra.mxu0 %v1728
        %v2161 = vpop.f32.mrf.mxu0
        %v2162 = vadd.f32 %v2073, %v2161
        %v2163 = vpop.f32.mrf.mxu0
        %v2164 = vadd.f32 %v2075, %v2163
        %2165 = vmatmul.bf16.gmra.mxu0 %v1731
        %v2166 = vpop.f32.mrf.mxu0
        %v2167 = vadd.f32 %v2078, %v2166
        %v2168 = vpop.f32.mrf.mxu0
        %v2169 = vadd.f32 %v2080, %v2168
        %2170 = vmatmul.bf16.gmra.mxu0 %v1734
        %v2171 = vpop.f32.mrf.mxu0
        %v2172 = vadd.f32 %v2083, %v2171
        %v2173 = vpop.f32.mrf.mxu0
        %v2174 = vadd.f32 %v2085, %v2173
        %2175 = vmatmul.bf16.gmra.mxu0 %v1737
        %v2176 = vpop.f32.mrf.mxu0
        %v2177 = vadd.f32 %v2088, %v2176
        %v2178 = vpop.f32.mrf.mxu0
        %v2179 = vadd.f32 %v2090, %v2178
        %2180 = vmatmul.bf16.gmra.mxu0 %v1740
        %v2181 = vpop.f32.mrf.mxu0
        %v2182 = vadd.f32 %v2093, %v2181
        %v2183 = vpop.f32.mrf.mxu0
        %v2184 = vadd.f32 %v2095, %v2183
        %2185 = vmatmul.bf16.gmra.mxu0 %v1743
        %v2186 = vpop.f32.mrf.mxu0
        %v2187 = vadd.f32 %v2098, %v2186
        %v2188 = vpop.f32.mrf.mxu0
        %v2189 = vadd.f32 %v2100, %v2188
        %2190 = vmatmul.bf16.gmra.mxu0 %v1746
        %v2191 = vpop.f32.mrf.mxu0
        %v2192 = vadd.f32 %v2103, %v2191
        %v2193 = vpop.f32.mrf.mxu0
        %v2194 = vadd.f32 %v2105, %v2193
        %2195 = vmatmul.bf16.gmra.mxu0 %v1749
        %v2196 = vpop.f32.mrf.mxu0
        %v2197 = vadd.f32 %v2108, %v2196
        %v2198 = vpop.f32.mrf.mxu0
        %v2199 = vadd.f32 %v2110, %v2198
        %2200 = vmatmul.bf16.gmra.mxu0 %v1752
        %v2201 = vpop.f32.mrf.mxu0
        %v2202 = vadd.f32 %v2113, %v2201
        %v2203 = vpop.f32.mrf.mxu0
        %v2204 = vadd.f32 %v2115, %v2203
        %2205 = vmatmul.bf16.gmra.mxu0 %v1755
        %v2206 = vpop.f32.mrf.mxu0
        %v2207 = vadd.f32 %v2118, %v2206
        %v2208 = vpop.f32.mrf.mxu0
        %v2209 = vadd.f32 %v2120, %v2208
        %2210 = vmatmul.bf16.gmra.mxu0 %v1758
        %v2211 = vpop.f32.mrf.mxu0
        %v2212 = vadd.f32 %v2123, %v2211
        %v2213 = vpop.f32.mrf.mxu0
        %v2214 = vadd.f32 %v2125, %v2213
        %2215 = vmatmul.bf16.gmra.mxu0 %v1761
        %v2216 = vpop.f32.mrf.mxu0
        %v2217 = vadd.f32 %v2128, %v2216
        %v2218 = vpop.f32.mrf.mxu0
        %v2219 = vadd.f32 %v2130, %v2218
        %2220 = vdwg.mxu0
        %v2225 = vunpack.c.l.b16 %v1389
        %v2226 = vunpack.c.h.b16 %v1389
        %v2227 = vunpack.c.l.b16 %v1390
        %v2228 = vunpack.c.l.b16 %v1391
        %v2229 = vunpack.c.h.b16 %v1391
        %v2230 = vunpack.c.l.b16 %v1392
        %v2231 = vpack.c.b16 %v2228, %v2225
        %v2232 = vpack.c.b16 %v2229, %v2226
        %v2233 = vpack.c.b16 %v2230, %v2227
        %v2285 = vunpack.c.l.b16 %v1453
        %v2286 = vunpack.c.l.b16 %v1454
        %v2287 = vunpack.c.l.b16 %v1455
        %v2288 = vunpack.c.l.b16 %v1456
        %v2289 = vunpack.c.l.b16 %v1457
        %v2290 = vunpack.c.l.b16 %v1458
        %v2291 = vunpack.c.l.b16 %v1459
        %v2292 = vunpack.c.l.b16 %v1460
        %v2293 = vunpack.c.l.b16 %v1461
        %v2294 = vunpack.c.l.b16 %v1462
        %v2295 = vunpack.c.l.b16 %v1463
        %v2296 = vunpack.c.l.b16 %v1464
        %v2297 = vunpack.c.l.b16 %v1465
        %v2298 = vunpack.c.l.b16 %v1466
        %v2299 = vunpack.c.l.b16 %v1467
        %v2300 = vunpack.c.l.b16 %v1468
        %v2301 = vunpack.c.l.b16 %v1469
        %v2302 = vunpack.c.l.b16 %v1470
        %v2303 = vunpack.c.l.b16 %v1471
        %v2304 = vunpack.c.l.b16 %v1472
        %v2305 = vunpack.c.l.b16 %v1473
        %v2306 = vunpack.c.l.b16 %v1474
        %v2307 = vunpack.c.l.b16 %v1475
        %v2308 = vunpack.c.l.b16 %v1476
        %v2309 = vunpack.c.l.b16 %v1477
        %v2310 = vunpack.c.l.b16 %v1478
        %v2311 = vunpack.c.l.b16 %v1479
        %v2312 = vunpack.c.l.b16 %v1480
        %v2313 = vunpack.c.l.b16 %v1481
        %v2314 = vunpack.c.l.b16 %v1482
        %v2315 = vunpack.c.l.b16 %v1483
        %v2316 = vunpack.c.l.b16 %v1484
        %v2317 = vunpack.c.l.b16 %v1485
        %v2318 = vunpack.c.l.b16 %v1486
        %v2319 = vunpack.c.l.b16 %v1487
        %v2320 = vunpack.c.l.b16 %v1488
        %v2321 = vunpack.c.l.b16 %v1489
        %v2322 = vunpack.c.l.b16 %v1490
        %v2323 = vunpack.c.l.b16 %v1491
        %v2324 = vunpack.c.l.b16 %v1492
        %v2325 = vunpack.c.l.b16 %v1493
        %v2326 = vunpack.c.l.b16 %v1494
        %v2327 = vunpack.c.l.b16 %v1495
        %v2328 = vunpack.c.l.b16 %v1496
        %v2329 = vunpack.c.l.b16 %v1497
        %v2330 = vunpack.c.l.b16 %v1498
        %v2331 = vunpack.c.l.b16 %v1499
        %v2332 = vunpack.c.l.b16 %v1500
        %v2333 = vpack.c.b16 %v2286, %v2285
        %v2334 = vpack.c.b16 %v2288, %v2287
        %v2335 = vpack.c.b16 %v2290, %v2289
        %v2336 = vpack.c.b16 %v2292, %v2291
        %v2337 = vpack.c.b16 %v2294, %v2293
        %v2338 = vpack.c.b16 %v2296, %v2295
        %v2339 = vpack.c.b16 %v2298, %v2297
        %v2340 = vpack.c.b16 %v2300, %v2299
        %v2341 = vpack.c.b16 %v2302, %v2301
        %v2342 = vpack.c.b16 %v2304, %v2303
        %v2343 = vpack.c.b16 %v2306, %v2305
        %v2344 = vpack.c.b16 %v2308, %v2307
        %v2345 = vpack.c.b16 %v2310, %v2309
        %v2346 = vpack.c.b16 %v2312, %v2311
        %v2347 = vpack.c.b16 %v2314, %v2313
        %v2348 = vpack.c.b16 %v2316, %v2315
        %v2349 = vpack.c.b16 %v2318, %v2317
        %v2350 = vpack.c.b16 %v2320, %v2319
        %v2351 = vpack.c.b16 %v2322, %v2321
        %v2352 = vpack.c.b16 %v2324, %v2323
        %v2353 = vpack.c.b16 %v2326, %v2325
        %v2354 = vpack.c.b16 %v2328, %v2327
        %v2355 = vpack.c.b16 %v2330, %v2329
        %v2356 = vpack.c.b16 %v2332, %v2331
        %2381 = vmatpush.bf16.msra.mxu0 %v2340
        %2382 = vmatpush.bf16.msra.mxu0 %v2339
        %2383 = vmatpush.bf16.msra.mxu0 %v2338
        %2384 = vmatpush.bf16.msra.mxu0 %v2337
        %2385 = vmatpush.bf16.msra.mxu0 %v2336
        %2386 = vmatpush.bf16.msra.mxu0 %v2335
        %2387 = vmatpush.bf16.msra.mxu0 %v2334
        %2388 = vmatpush.bf16.msra.mxu0 %v2333
        %2389 = vmatmul.bf16.gmra.mxu0 %v2231
        %v2390 = vpop.f32.mrf.mxu0
        %v2391 = vadd.f32 %v2142, %v2390
        %v2392 = vpop.f32.mrf.mxu0
        %v2393 = vadd.f32 %v2144, %v2392
        %2394 = vmatmul.bf16.gmra.mxu0 %v1714
        %v2395 = vpop.f32.mrf.mxu0
        %v2396 = vadd.f32 %v2147, %v2395
        %v2397 = vpop.f32.mrf.mxu0
        %v2398 = vadd.f32 %v2149, %v2397
        %2399 = vmatmul.bf16.gmra.mxu0 %v1717
        %v2400 = vpop.f32.mrf.mxu0
        %v2401 = vadd.f32 %v2152, %v2400
        %v2402 = vpop.f32.mrf.mxu0
        %v2403 = vadd.f32 %v2154, %v2402
        %2404 = vmatmul.bf16.gmra.mxu0 %v1720
        %v2405 = vpop.f32.mrf.mxu0
        %v2406 = vadd.f32 %v2157, %v2405
        %v2407 = vpop.f32.mrf.mxu0
        %v2408 = vadd.f32 %v2159, %v2407
        %2409 = vmatmul.bf16.gmra.mxu0 %v1723
        %v2410 = vpop.f32.mrf.mxu0
        %v2411 = vadd.f32 %v2162, %v2410
        %v2412 = vpop.f32.mrf.mxu0
        %v2413 = vadd.f32 %v2164, %v2412
        %2414 = vmatmul.bf16.gmra.mxu0 %v1726
        %v2415 = vpop.f32.mrf.mxu0
        %v2416 = vadd.f32 %v2167, %v2415
        %v2417 = vpop.f32.mrf.mxu0
        %v2418 = vadd.f32 %v2169, %v2417
        %2419 = vmatmul.bf16.gmra.mxu0 %v1729
        %v2420 = vpop.f32.mrf.mxu0
        %v2421 = vadd.f32 %v2172, %v2420
        %v2422 = vpop.f32.mrf.mxu0
        %v2423 = vadd.f32 %v2174, %v2422
        %2424 = vmatmul.bf16.gmra.mxu0 %v1732
        %v2425 = vpop.f32.mrf.mxu0
        %v2426 = vadd.f32 %v2177, %v2425
        %v2427 = vpop.f32.mrf.mxu0
        %v2428 = vadd.f32 %v2179, %v2427
        %2429 = vmatmul.bf16.gmra.mxu0 %v1735
        %v2430 = vpop.f32.mrf.mxu0
        %v2431 = vadd.f32 %v2182, %v2430
        %v2432 = vpop.f32.mrf.mxu0
        %v2433 = vadd.f32 %v2184, %v2432
        %2434 = vmatmul.bf16.gmra.mxu0 %v1738
        %v2435 = vpop.f32.mrf.mxu0
        %v2436 = vadd.f32 %v2187, %v2435
        %v2437 = vpop.f32.mrf.mxu0
        %v2438 = vadd.f32 %v2189, %v2437
        %2439 = vmatmul.bf16.gmra.mxu0 %v1741
        %v2440 = vpop.f32.mrf.mxu0
        %v2441 = vadd.f32 %v2192, %v2440
        %v2442 = vpop.f32.mrf.mxu0
        %v2443 = vadd.f32 %v2194, %v2442
        %2444 = vmatmul.bf16.gmra.mxu0 %v1744
        %v2445 = vpop.f32.mrf.mxu0
        %v2446 = vadd.f32 %v2197, %v2445
        %v2447 = vpop.f32.mrf.mxu0
        %v2448 = vadd.f32 %v2199, %v2447
        %2449 = vmatmul.bf16.gmra.mxu0 %v1747
        %v2450 = vpop.f32.mrf.mxu0
        %v2451 = vadd.f32 %v2202, %v2450
        %v2452 = vpop.f32.mrf.mxu0
        %v2453 = vadd.f32 %v2204, %v2452
        %2454 = vmatmul.bf16.gmra.mxu0 %v1750
        %v2455 = vpop.f32.mrf.mxu0
        %v2456 = vadd.f32 %v2207, %v2455
        %v2457 = vpop.f32.mrf.mxu0
        %v2458 = vadd.f32 %v2209, %v2457
        %2459 = vmatmul.bf16.gmra.mxu0 %v1753
        %v2460 = vpop.f32.mrf.mxu0
        %v2461 = vadd.f32 %v2212, %v2460
        %v2462 = vpop.f32.mrf.mxu0
        %v2463 = vadd.f32 %v2214, %v2462
        %2464 = vmatmul.bf16.gmra.mxu0 %v1756
        %v2465 = vpop.f32.mrf.mxu0
        %v2466 = vadd.f32 %v2217, %v2465
        %v2467 = vpop.f32.mrf.mxu0
        %v2468 = vadd.f32 %v2219, %v2467
        %2469 = vdwg.mxu0
        %2470 = vmatpush.bf16.msra.mxu0 %v2348
        %2471 = vmatpush.bf16.msra.mxu0 %v2347
        %2472 = vmatpush.bf16.msra.mxu0 %v2346
        %2473 = vmatpush.bf16.msra.mxu0 %v2345
        %2474 = vmatpush.bf16.msra.mxu0 %v2344
        %2475 = vmatpush.bf16.msra.mxu0 %v2343
        %2476 = vmatpush.bf16.msra.mxu0 %v2342
        %2477 = vmatpush.bf16.msra.mxu0 %v2341
        %2478 = vmatmul.bf16.gmra.mxu0 %v2232
        %v2479 = vpop.f32.mrf.mxu0
        %v2480 = vadd.f32 %v2391, %v2479
        %v2481 = vpop.f32.mrf.mxu0
        %v2482 = vadd.f32 %v2393, %v2481
        %2483 = vmatmul.bf16.gmra.mxu0 %v1715
        %v2484 = vpop.f32.mrf.mxu0
        %v2485 = vadd.f32 %v2396, %v2484
        %v2486 = vpop.f32.mrf.mxu0
        %v2487 = vadd.f32 %v2398, %v2486
        %2488 = vmatmul.bf16.gmra.mxu0 %v1718
        %v2489 = vpop.f32.mrf.mxu0
        %v2490 = vadd.f32 %v2401, %v2489
        %v2491 = vpop.f32.mrf.mxu0
        %v2492 = vadd.f32 %v2403, %v2491
        %2493 = vmatmul.bf16.gmra.mxu0 %v1721
        %v2494 = vpop.f32.mrf.mxu0
        %v2495 = vadd.f32 %v2406, %v2494
        %v2496 = vpop.f32.mrf.mxu0
        %v2497 = vadd.f32 %v2408, %v2496
        %2498 = vmatmul.bf16.gmra.mxu0 %v1724
        %v2499 = vpop.f32.mrf.mxu0
        %v2500 = vadd.f32 %v2411, %v2499
        %v2501 = vpop.f32.mrf.mxu0
        %v2502 = vadd.f32 %v2413, %v2501
        %2503 = vmatmul.bf16.gmra.mxu0 %v1727
        %v2504 = vpop.f32.mrf.mxu0
        %v2505 = vadd.f32 %v2416, %v2504
        %v2506 = vpop.f32.mrf.mxu0
        %v2507 = vadd.f32 %v2418, %v2506
        %2508 = vmatmul.bf16.gmra.mxu0 %v1730
        %v2509 = vpop.f32.mrf.mxu0
        %v2510 = vadd.f32 %v2421, %v2509
        %v2511 = vpop.f32.mrf.mxu0
        %v2512 = vadd.f32 %v2423, %v2511
        %2513 = vmatmul.bf16.gmra.mxu0 %v1733
        %v2514 = vpop.f32.mrf.mxu0
        %v2515 = vadd.f32 %v2426, %v2514
        %v2516 = vpop.f32.mrf.mxu0
        %v2517 = vadd.f32 %v2428, %v2516
        %2518 = vmatmul.bf16.gmra.mxu0 %v1736
        %v2519 = vpop.f32.mrf.mxu0
        %v2520 = vadd.f32 %v2431, %v2519
        %v2521 = vpop.f32.mrf.mxu0
        %v2522 = vadd.f32 %v2433, %v2521
        %2523 = vmatmul.bf16.gmra.mxu0 %v1739
        %v2524 = vpop.f32.mrf.mxu0
        %v2525 = vadd.f32 %v2436, %v2524
        %v2526 = vpop.f32.mrf.mxu0
        %v2527 = vadd.f32 %v2438, %v2526
        %2528 = vmatmul.bf16.gmra.mxu0 %v1742
        %v2529 = vpop.f32.mrf.mxu0
        %v2530 = vadd.f32 %v2441, %v2529
        %v2531 = vpop.f32.mrf.mxu0
        %v2532 = vadd.f32 %v2443, %v2531
        %2533 = vmatmul.bf16.gmra.mxu0 %v1745
        %v2534 = vpop.f32.mrf.mxu0
        %v2535 = vadd.f32 %v2446, %v2534
        %v2536 = vpop.f32.mrf.mxu0
        %v2537 = vadd.f32 %v2448, %v2536
        %2538 = vmatmul.bf16.gmra.mxu0 %v1748
        %v2539 = vpop.f32.mrf.mxu0
        %v2540 = vadd.f32 %v2451, %v2539
        %v2541 = vpop.f32.mrf.mxu0
        %v2542 = vadd.f32 %v2453, %v2541
        %2543 = vmatmul.bf16.gmra.mxu0 %v1751
        %v2544 = vpop.f32.mrf.mxu0
        %v2545 = vadd.f32 %v2456, %v2544
        %v2546 = vpop.f32.mrf.mxu0
        %v2547 = vadd.f32 %v2458, %v2546
        %2548 = vmatmul.bf16.gmra.mxu0 %v1754
        %v2549 = vpop.f32.mrf.mxu0
        %v2550 = vadd.f32 %v2461, %v2549
        %v2551 = vpop.f32.mrf.mxu0
        %v2552 = vadd.f32 %v2463, %v2551
        %2553 = vmatmul.bf16.gmra.mxu0 %v1757
        %v2554 = vpop.f32.mrf.mxu0
        %v2555 = vadd.f32 %v2466, %v2554
        %v2556 = vpop.f32.mrf.mxu0
        %v2557 = vadd.f32 %v2468, %v2556
        %2558 = vdwg.mxu0
        %2559 = vmatpush.bf16.msra.mxu0 %v2356
        %2560 = vmatpush.bf16.msra.mxu0 %v2355
        %2561 = vmatpush.bf16.msra.mxu0 %v2354
        %2562 = vmatpush.bf16.msra.mxu0 %v2353
        %2563 = vmatpush.bf16.msra.mxu0 %v2352
        %2564 = vmatpush.bf16.msra.mxu0 %v2351
        %2565 = vmatpush.bf16.msra.mxu0 %v2350
        %2566 = vmatpush.bf16.msra.mxu0 %v2349
        %2567 = vmatmul.bf16.gmra.mxu0 %v2233
        %v2568 = vpop.f32.mrf.mxu0
        %v2569 = vadd.f32 %v2480, %v2568
        %v2570 = vpop.f32.mrf.mxu0
        %v2571 = vadd.f32 %v2482, %v2570
        %2572 = vmatmul.bf16.gmra.mxu0 %v1716
        %v2573 = vpop.f32.mrf.mxu0
        %v2574 = vadd.f32 %v2485, %v2573
        %v2575 = vpop.f32.mrf.mxu0
        %v2576 = vadd.f32 %v2487, %v2575
        %2577 = vmatmul.bf16.gmra.mxu0 %v1719
        %v2578 = vpop.f32.mrf.mxu0
        %v2579 = vadd.f32 %v2490, %v2578
        %v2580 = vpop.f32.mrf.mxu0
        %v2581 = vadd.f32 %v2492, %v2580
        %2582 = vmatmul.bf16.gmra.mxu0 %v1722
        %v2583 = vpop.f32.mrf.mxu0
        %v2584 = vadd.f32 %v2495, %v2583
        %v2585 = vpop.f32.mrf.mxu0
        %v2586 = vadd.f32 %v2497, %v2585
        %2587 = vmatmul.bf16.gmra.mxu0 %v1725
        %v2588 = vpop.f32.mrf.mxu0
        %v2589 = vadd.f32 %v2500, %v2588
        %v2590 = vpop.f32.mrf.mxu0
        %v2591 = vadd.f32 %v2502, %v2590
        %2592 = vmatmul.bf16.gmra.mxu0 %v1728
        %v2593 = vpop.f32.mrf.mxu0
        %v2594 = vadd.f32 %v2505, %v2593
        %v2595 = vpop.f32.mrf.mxu0
        %v2596 = vadd.f32 %v2507, %v2595
        %2597 = vmatmul.bf16.gmra.mxu0 %v1731
        %v2598 = vpop.f32.mrf.mxu0
        %v2599 = vadd.f32 %v2510, %v2598
        %v2600 = vpop.f32.mrf.mxu0
        %v2601 = vadd.f32 %v2512, %v2600
        %2602 = vmatmul.bf16.gmra.mxu0 %v1734
        %v2603 = vpop.f32.mrf.mxu0
        %v2604 = vadd.f32 %v2515, %v2603
        %v2605 = vpop.f32.mrf.mxu0
        %v2606 = vadd.f32 %v2517, %v2605
        %2607 = vmatmul.bf16.gmra.mxu0 %v1737
        %v2608 = vpop.f32.mrf.mxu0
        %v2609 = vadd.f32 %v2520, %v2608
        %v2610 = vpop.f32.mrf.mxu0
        %v2611 = vadd.f32 %v2522, %v2610
        %2612 = vmatmul.bf16.gmra.mxu0 %v1740
        %v2613 = vpop.f32.mrf.mxu0
        %v2614 = vadd.f32 %v2525, %v2613
        %v2615 = vpop.f32.mrf.mxu0
        %v2616 = vadd.f32 %v2527, %v2615
        %2617 = vmatmul.bf16.gmra.mxu0 %v1743
        %v2618 = vpop.f32.mrf.mxu0
        %v2619 = vadd.f32 %v2530, %v2618
        %v2620 = vpop.f32.mrf.mxu0
        %v2621 = vadd.f32 %v2532, %v2620
        %2622 = vmatmul.bf16.gmra.mxu0 %v1746
        %v2623 = vpop.f32.mrf.mxu0
        %v2624 = vadd.f32 %v2535, %v2623
        %v2625 = vpop.f32.mrf.mxu0
        %v2626 = vadd.f32 %v2537, %v2625
        %2627 = vmatmul.bf16.gmra.mxu0 %v1749
        %v2628 = vpop.f32.mrf.mxu0
        %v2629 = vadd.f32 %v2540, %v2628
        %v2630 = vpop.f32.mrf.mxu0
        %v2631 = vadd.f32 %v2542, %v2630
        %2632 = vmatmul.bf16.gmra.mxu0 %v1752
        %v2633 = vpop.f32.mrf.mxu0
        %v2634 = vadd.f32 %v2545, %v2633
        %v2635 = vpop.f32.mrf.mxu0
        %v2636 = vadd.f32 %v2547, %v2635
        %2637 = vmatmul.bf16.gmra.mxu0 %v1755
        %v2638 = vpop.f32.mrf.mxu0
        %v2639 = vadd.f32 %v2550, %v2638
        %v2640 = vpop.f32.mrf.mxu0
        %v2641 = vadd.f32 %v2552, %v2640
        %2642 = vmatmul.bf16.gmra.mxu0 %v1758
        %v2643 = vpop.f32.mrf.mxu0
        %v2644 = vadd.f32 %v2555, %v2643
        %v2645 = vpop.f32.mrf.mxu0
        %v2646 = vadd.f32 %v2557, %v2645
        %2647 = vdwg.mxu0
        %v2648 = vld [vmem:[#allocation2 + $0x30] sm:$0xff]
        %v2649 = vld [vmem:[#allocation2 + $0x38] sm:$0xf]
        %v2650 = vld [vmem:[#allocation2 + $0x3c] sm:$0xff]
        %v2651 = vld [vmem:[#allocation2 + $0x44] sm:$0xf]
        %v2652 = vld [vmem:[#allocation2 + $0x48] sm:$0xff]
        %v2653 = vld [vmem:[#allocation2 + $0x50] sm:$0xf]
        %v2654 = vld [vmem:[#allocation2 + $0x54] sm:$0xff]
        %v2655 = vld [vmem:[#allocation2 + $0x5c] sm:$0xf]
        %v2656 = vld [vmem:[#allocation2 + $0x60] sm:$0xff]
        %v2657 = vld [vmem:[#allocation2 + $0x68] sm:$0xf]
        %v2658 = vld [vmem:[#allocation2 + $0x6c] sm:$0xff]
        %v2659 = vld [vmem:[#allocation2 + $0x74] sm:$0xf]
        %v2660 = vld [vmem:[#allocation2 + $0x78] sm:$0xff]
        %v2661 = vld [vmem:[#allocation2 + $0x80] sm:$0xf]
        %v2662 = vld [vmem:[#allocation2 + $0x84] sm:$0xff]
        %v2663 = vld [vmem:[#allocation2 + $0x8c] sm:$0xf]
        %v2664 = vld [vmem:[#allocation2 + $0x90] sm:$0xff]
        %v2665 = vld [vmem:[#allocation2 + $0x98] sm:$0xf]
        %v2666 = vld [vmem:[#allocation2 + $0x9c] sm:$0xff]
        %v2667 = vld [vmem:[#allocation2 + $0xa4] sm:$0xf]
        %v2668 = vld [vmem:[#allocation2 + $0xa8] sm:$0xff]
        %v2669 = vld [vmem:[#allocation2 + $0xb0] sm:$0xf]
        %v2670 = vld [vmem:[#allocation2 + $0xb4] sm:$0xff]
        %v2671 = vld [vmem:[#allocation2 + $0xbc] sm:$0xf]
        %v2672 = vld [vmem:[#allocation2 + $0xc0] sm:$0xff]
        %v2673 = vld [vmem:[#allocation2 + $0xc8] sm:$0xf]
        %v2674 = vld [vmem:[#allocation2 + $0xcc] sm:$0xff]
        %v2675 = vld [vmem:[#allocation2 + $0xd4] sm:$0xf]
        %v2676 = vld [vmem:[#allocation2 + $0xd8] sm:$0xff]
        %v2677 = vld [vmem:[#allocation2 + $0xe0] sm:$0xf]
        %v2678 = vld [vmem:[#allocation2 + $0xe4] sm:$0xff]
        %v2679 = vld [vmem:[#allocation2 + $0xec] sm:$0xf]
        %v2680 = vld [vmem:[#allocation2 + $0xf0] sm:$0xff]
        %v2681 = vld [vmem:[#allocation2 + $0xf8] sm:$0xf]
        %v2682 = vld [vmem:[#allocation2 + $0xfc] sm:$0xff]
        %v2683 = vld [vmem:[#allocation2 + $0x104] sm:$0xf]
        %v2684 = vld [vmem:[#allocation2 + $0x108] sm:$0xff]
        %v2685 = vld [vmem:[#allocation2 + $0x110] sm:$0xf]
        %v2686 = vld [vmem:[#allocation2 + $0x114] sm:$0xff]
        %v2687 = vld [vmem:[#allocation2 + $0x11c] sm:$0xf]
        %v2688 = vld [vmem:[#allocation2 + $0x120] sm:$0xff]
        %v2689 = vld [vmem:[#allocation2 + $0x128] sm:$0xf]
        %v2690 = vld [vmem:[#allocation2 + $0x12c] sm:$0xff]
        %v2691 = vld [vmem:[#allocation2 + $0x134] sm:$0xf]
        %v2692 = vld [vmem:[#allocation2 + $0x138] sm:$0xff]
        %v2693 = vld [vmem:[#allocation2 + $0x140] sm:$0xf]
        %v2694 = vld [vmem:[#allocation2 + $0x144] sm:$0xff]
        %v2695 = vld [vmem:[#allocation2 + $0x14c] sm:$0xf]
        %v2696 = vld [vmem:[#allocation2 + $0x150] sm:$0xff]
        %v2697 = vld [vmem:[#allocation2 + $0x158] sm:$0xf]
        %v2698 = vld [vmem:[#allocation2 + $0x15c] sm:$0xff]
        %v2699 = vld [vmem:[#allocation2 + $0x164] sm:$0xf]
        %v2700 = vld [vmem:[#allocation2 + $0x168] sm:$0xff]
        %v2701 = vld [vmem:[#allocation2 + $0x170] sm:$0xf]
        %v2702 = vld [vmem:[#allocation2 + $0x174] sm:$0xff]
        %v2703 = vld [vmem:[#allocation2 + $0x17c] sm:$0xf]
        %v2704 = vld [vmem:[#allocation2 + $0x180] sm:$0xff]
        %v2705 = vld [vmem:[#allocation2 + $0x188] sm:$0xf]
        %v2706 = vld [vmem:[#allocation2 + $0x18c] sm:$0xff]
        %v2707 = vld [vmem:[#allocation2 + $0x194] sm:$0xf]
        %v2708 = vld [vmem:[#allocation2 + $0x198] sm:$0xff]
        %v2709 = vld [vmem:[#allocation2 + $0x1a0] sm:$0xf]
        %v2710 = vld [vmem:[#allocation2 + $0x1a4] sm:$0xff]
        %v2711 = vld [vmem:[#allocation2 + $0x1ac] sm:$0xf]
        %s2712 = scalar_lea.vmem [#allocation9], 384
        %v2713 = vld [vmem:[%s2712] sm:$0xf]
        %v2714 = vld [vmem:[%s2712 + $0x4] sm:$0xf]
        %v2715 = vld [vmem:[%s2712 + $0x8] sm:$0xf]
        %v2716 = vld [vmem:[%s2712 + $0xc] sm:$0xf]
        %v2717 = vld [vmem:[%s2712 + $0x10] sm:$0xf]
        %v2718 = vld [vmem:[%s2712 + $0x14] sm:$0xf]
        %v2719 = vld [vmem:[%s2712 + $0x18] sm:$0xf]
        %v2720 = vld [vmem:[%s2712 + $0x1c] sm:$0xf]
        %v2721 = vld [vmem:[%s2712 + $0x20] sm:$0xf]
        %v2722 = vld [vmem:[%s2712 + $0x24] sm:$0xf]
        %v2723 = vld [vmem:[%s2712 + $0x28] sm:$0xf]
        %v2724 = vld [vmem:[%s2712 + $0x2c] sm:$0xf]
        %v2725 = vld [vmem:[%s2712 + $0x30] sm:$0xf]
        %v2726 = vld [vmem:[%s2712 + $0x34] sm:$0xf]
        %v2727 = vld [vmem:[%s2712 + $0x38] sm:$0xf]
        %v2728 = vld [vmem:[%s2712 + $0x3c] sm:$0xf]
        %v2729 = vld [vmem:[%s2712 + $0x40] sm:$0xf]
        %v2730 = vld [vmem:[%s2712 + $0x44] sm:$0xf]
        %v2731 = vld [vmem:[%s2712 + $0x48] sm:$0xf]
        %v2732 = vld [vmem:[%s2712 + $0x4c] sm:$0xf]
        %v2733 = vld [vmem:[%s2712 + $0x50] sm:$0xf]
        %v2734 = vld [vmem:[%s2712 + $0x54] sm:$0xf]
        %v2735 = vld [vmem:[%s2712 + $0x58] sm:$0xf]
        %v2736 = vld [vmem:[%s2712 + $0x5c] sm:$0xf]
        %v2737 = vld [vmem:[%s2712 + $0x60] sm:$0xf]
        %v2738 = vld [vmem:[%s2712 + $0x64] sm:$0xf]
        %v2739 = vld [vmem:[%s2712 + $0x68] sm:$0xf]
        %v2740 = vld [vmem:[%s2712 + $0x6c] sm:$0xf]
        %v2741 = vld [vmem:[%s2712 + $0x70] sm:$0xf]
        %v2742 = vld [vmem:[%s2712 + $0x74] sm:$0xf]
        %v2743 = vld [vmem:[%s2712 + $0x78] sm:$0xf]
        %v2744 = vld [vmem:[%s2712 + $0x7c] sm:$0xf]
        %v2745 = vld [vmem:[%s2712 + $0x80] sm:$0xf]
        %v2746 = vld [vmem:[%s2712 + $0x84] sm:$0xf]
        %v2747 = vld [vmem:[%s2712 + $0x88] sm:$0xf]
        %v2748 = vld [vmem:[%s2712 + $0x8c] sm:$0xf]
        %v2749 = vld [vmem:[%s2712 + $0x90] sm:$0xf]
        %v2750 = vld [vmem:[%s2712 + $0x94] sm:$0xf]
        %v2751 = vld [vmem:[%s2712 + $0x98] sm:$0xf]
        %v2752 = vld [vmem:[%s2712 + $0x9c] sm:$0xf]
        %v2753 = vld [vmem:[%s2712 + $0xa0] sm:$0xf]
        %v2754 = vld [vmem:[%s2712 + $0xa4] sm:$0xf]
        %v2755 = vld [vmem:[%s2712 + $0xa8] sm:$0xf]
        %v2756 = vld [vmem:[%s2712 + $0xac] sm:$0xf]
        %v2757 = vld [vmem:[%s2712 + $0xb0] sm:$0xf]
        %v2758 = vld [vmem:[%s2712 + $0xb4] sm:$0xf]
        %v2759 = vld [vmem:[%s2712 + $0xb8] sm:$0xf]
        %v2760 = vld [vmem:[%s2712 + $0xbc] sm:$0xf]
        %v2825 = vunpack.c.l.b16 %v2648
        %v2826 = vunpack.c.h.b16 %v2648
        %v2827 = vunpack.c.l.b16 %v2649
        %v2828 = vunpack.c.l.b16 %v2650
        %v2829 = vunpack.c.h.b16 %v2650
        %v2830 = vunpack.c.l.b16 %v2651
        %v2831 = vunpack.c.l.b16 %v2652
        %v2832 = vunpack.c.h.b16 %v2652
        %v2833 = vunpack.c.l.b16 %v2653
        %v2834 = vunpack.c.l.b16 %v2654
        %v2835 = vunpack.c.h.b16 %v2654
        %v2836 = vunpack.c.l.b16 %v2655
        %v2837 = vunpack.c.l.b16 %v2656
        %v2838 = vunpack.c.h.b16 %v2656
        %v2839 = vunpack.c.l.b16 %v2657
        %v2840 = vunpack.c.l.b16 %v2658
        %v2841 = vunpack.c.h.b16 %v2658
        %v2842 = vunpack.c.l.b16 %v2659
        %v2843 = vunpack.c.l.b16 %v2660
        %v2844 = vunpack.c.h.b16 %v2660
        %v2845 = vunpack.c.l.b16 %v2661
        %v2846 = vunpack.c.l.b16 %v2662
        %v2847 = vunpack.c.h.b16 %v2662
        %v2848 = vunpack.c.l.b16 %v2663
        %v2849 = vunpack.c.l.b16 %v2664
        %v2850 = vunpack.c.h.b16 %v2664
        %v2851 = vunpack.c.l.b16 %v2665
        %v2852 = vunpack.c.l.b16 %v2666
        %v2853 = vunpack.c.h.b16 %v2666
        %v2854 = vunpack.c.l.b16 %v2667
        %v2855 = vunpack.c.l.b16 %v2668
        %v2856 = vunpack.c.h.b16 %v2668
        %v2857 = vunpack.c.l.b16 %v2669
        %v2858 = vunpack.c.l.b16 %v2670
        %v2859 = vunpack.c.h.b16 %v2670
        %v2860 = vunpack.c.l.b16 %v2671
        %v2861 = vunpack.c.l.b16 %v2672
        %v2862 = vunpack.c.h.b16 %v2672
        %v2863 = vunpack.c.l.b16 %v2673
        %v2864 = vunpack.c.l.b16 %v2674
        %v2865 = vunpack.c.h.b16 %v2674
        %v2866 = vunpack.c.l.b16 %v2675
        %v2867 = vunpack.c.l.b16 %v2676
        %v2868 = vunpack.c.h.b16 %v2676
        %v2869 = vunpack.c.l.b16 %v2677
        %v2870 = vunpack.c.l.b16 %v2678
        %v2871 = vunpack.c.h.b16 %v2678
        %v2872 = vunpack.c.l.b16 %v2679
        %v2873 = vunpack.c.l.b16 %v2680
        %v2874 = vunpack.c.h.b16 %v2680
        %v2875 = vunpack.c.l.b16 %v2681
        %v2876 = vunpack.c.l.b16 %v2682
        %v2877 = vunpack.c.h.b16 %v2682
        %v2878 = vunpack.c.l.b16 %v2683
        %v2879 = vunpack.c.l.b16 %v2684
        %v2880 = vunpack.c.h.b16 %v2684
        %v2881 = vunpack.c.l.b16 %v2685
        %v2882 = vunpack.c.l.b16 %v2686
        %v2883 = vunpack.c.h.b16 %v2686
        %v2884 = vunpack.c.l.b16 %v2687
        %v2885 = vunpack.c.l.b16 %v2688
        %v2886 = vunpack.c.h.b16 %v2688
        %v2887 = vunpack.c.l.b16 %v2689
        %v2888 = vunpack.c.l.b16 %v2690
        %v2889 = vunpack.c.h.b16 %v2690
        %v2890 = vunpack.c.l.b16 %v2691
        %v2891 = vunpack.c.l.b16 %v2692
        %v2892 = vunpack.c.h.b16 %v2692
        %v2893 = vunpack.c.l.b16 %v2693
        %v2894 = vunpack.c.l.b16 %v2694
        %v2895 = vunpack.c.h.b16 %v2694
        %v2896 = vunpack.c.l.b16 %v2695
        %v2897 = vunpack.c.l.b16 %v2696
        %v2898 = vunpack.c.h.b16 %v2696
        %v2899 = vunpack.c.l.b16 %v2697
        %v2900 = vunpack.c.l.b16 %v2698
        %v2901 = vunpack.c.h.b16 %v2698
        %v2902 = vunpack.c.l.b16 %v2699
        %v2903 = vunpack.c.l.b16 %v2700
        %v2904 = vunpack.c.h.b16 %v2700
        %v2905 = vunpack.c.l.b16 %v2701
        %v2906 = vunpack.c.l.b16 %v2702
        %v2907 = vunpack.c.h.b16 %v2702
        %v2908 = vunpack.c.l.b16 %v2703
        %v2909 = vunpack.c.l.b16 %v2704
        %v2910 = vunpack.c.h.b16 %v2704
        %v2911 = vunpack.c.l.b16 %v2705
        %v2912 = vunpack.c.l.b16 %v2706
        %v2913 = vunpack.c.h.b16 %v2706
        %v2914 = vunpack.c.l.b16 %v2707
        %v2915 = vunpack.c.l.b16 %v2708
        %v2916 = vunpack.c.h.b16 %v2708
        %v2917 = vunpack.c.l.b16 %v2709
        %v2918 = vunpack.c.l.b16 %v2710
        %v2919 = vunpack.c.h.b16 %v2710
        %v2920 = vunpack.c.l.b16 %v2711
        %v2921 = vpack.c.b16 %v2828, %v2825
        %v2922 = vpack.c.b16 %v2829, %v2826
        %v2923 = vpack.c.b16 %v2830, %v2827
        %v2924 = vpack.c.b16 %v2834, %v2831
        %v2925 = vpack.c.b16 %v2835, %v2832
        %v2926 = vpack.c.b16 %v2836, %v2833
        %v2927 = vpack.c.b16 %v2840, %v2837
        %v2928 = vpack.c.b16 %v2841, %v2838
        %v2929 = vpack.c.b16 %v2842, %v2839
        %v2930 = vpack.c.b16 %v2846, %v2843
        %v2931 = vpack.c.b16 %v2847, %v2844
        %v2932 = vpack.c.b16 %v2848, %v2845
        %v2933 = vpack.c.b16 %v2852, %v2849
        %v2934 = vpack.c.b16 %v2853, %v2850
        %v2935 = vpack.c.b16 %v2854, %v2851
        %v2936 = vpack.c.b16 %v2858, %v2855
        %v2937 = vpack.c.b16 %v2859, %v2856
        %v2938 = vpack.c.b16 %v2860, %v2857
        %v2939 = vpack.c.b16 %v2864, %v2861
        %v2940 = vpack.c.b16 %v2865, %v2862
        %v2941 = vpack.c.b16 %v2866, %v2863
        %v2942 = vpack.c.b16 %v2870, %v2867
        %v2943 = vpack.c.b16 %v2871, %v2868
        %v2944 = vpack.c.b16 %v2872, %v2869
        %v2945 = vpack.c.b16 %v2876, %v2873
        %v2946 = vpack.c.b16 %v2877, %v2874
        %v2947 = vpack.c.b16 %v2878, %v2875
        %v2948 = vpack.c.b16 %v2882, %v2879
        %v2949 = vpack.c.b16 %v2883, %v2880
        %v2950 = vpack.c.b16 %v2884, %v2881
        %v2951 = vpack.c.b16 %v2888, %v2885
        %v2952 = vpack.c.b16 %v2889, %v2886
        %v2953 = vpack.c.b16 %v2890, %v2887
        %v2954 = vpack.c.b16 %v2894, %v2891
        %v2955 = vpack.c.b16 %v2895, %v2892
        %v2956 = vpack.c.b16 %v2896, %v2893
        %v2957 = vpack.c.b16 %v2900, %v2897
        %v2958 = vpack.c.b16 %v2901, %v2898
        %v2959 = vpack.c.b16 %v2902, %v2899
        %v2960 = vpack.c.b16 %v2906, %v2903
        %v2961 = vpack.c.b16 %v2907, %v2904
        %v2962 = vpack.c.b16 %v2908, %v2905
        %v2963 = vpack.c.b16 %v2912, %v2909
        %v2964 = vpack.c.b16 %v2913, %v2910
        %v2965 = vpack.c.b16 %v2914, %v2911
        %v2966 = vpack.c.b16 %v2918, %v2915
        %v2967 = vpack.c.b16 %v2919, %v2916
        %v2968 = vpack.c.b16 %v2920, %v2917
        %v3065 = vunpack.c.l.b16 %v2713
        %v3066 = vunpack.c.l.b16 %v2714
        %v3067 = vunpack.c.l.b16 %v2715
        %v3068 = vunpack.c.l.b16 %v2716
        %v3069 = vunpack.c.l.b16 %v2717
        %v3070 = vunpack.c.l.b16 %v2718
        %v3071 = vunpack.c.l.b16 %v2719
        %v3072 = vunpack.c.l.b16 %v2720
        %v3073 = vunpack.c.l.b16 %v2721
        %v3074 = vunpack.c.l.b16 %v2722
        %v3075 = vunpack.c.l.b16 %v2723
        %v3076 = vunpack.c.l.b16 %v2724
        %v3077 = vunpack.c.l.b16 %v2725
        %v3078 = vunpack.c.l.b16 %v2726
        %v3079 = vunpack.c.l.b16 %v2727
        %v3080 = vunpack.c.l.b16 %v2728
        %v3081 = vunpack.c.l.b16 %v2729
        %v3082 = vunpack.c.l.b16 %v2730
        %v3083 = vunpack.c.l.b16 %v2731
        %v3084 = vunpack.c.l.b16 %v2732
        %v3085 = vunpack.c.l.b16 %v2733
        %v3086 = vunpack.c.l.b16 %v2734
        %v3087 = vunpack.c.l.b16 %v2735
        %v3088 = vunpack.c.l.b16 %v2736
        %v3089 = vunpack.c.l.b16 %v2737
        %v3090 = vunpack.c.l.b16 %v2738
        %v3091 = vunpack.c.l.b16 %v2739
        %v3092 = vunpack.c.l.b16 %v2740
        %v3093 = vunpack.c.l.b16 %v2741
        %v3094 = vunpack.c.l.b16 %v2742
        %v3095 = vunpack.c.l.b16 %v2743
        %v3096 = vunpack.c.l.b16 %v2744
        %v3097 = vunpack.c.l.b16 %v2745
        %v3098 = vunpack.c.l.b16 %v2746
        %v3099 = vunpack.c.l.b16 %v2747
        %v3100 = vunpack.c.l.b16 %v2748
        %v3101 = vunpack.c.l.b16 %v2749
        %v3102 = vunpack.c.l.b16 %v2750
        %v3103 = vunpack.c.l.b16 %v2751
        %v3104 = vunpack.c.l.b16 %v2752
        %v3105 = vunpack.c.l.b16 %v2753
        %v3106 = vunpack.c.l.b16 %v2754
        %v3107 = vunpack.c.l.b16 %v2755
        %v3108 = vunpack.c.l.b16 %v2756
        %v3109 = vunpack.c.l.b16 %v2757
        %v3110 = vunpack.c.l.b16 %v2758
        %v3111 = vunpack.c.l.b16 %v2759
        %v3112 = vunpack.c.l.b16 %v2760
        %v3113 = vpack.c.b16 %v3066, %v3065
        %v3114 = vpack.c.b16 %v3068, %v3067
        %v3115 = vpack.c.b16 %v3070, %v3069
        %v3116 = vpack.c.b16 %v3072, %v3071
        %v3117 = vpack.c.b16 %v3074, %v3073
        %v3118 = vpack.c.b16 %v3076, %v3075
        %v3119 = vpack.c.b16 %v3078, %v3077
        %v3120 = vpack.c.b16 %v3080, %v3079
        %v3121 = vpack.c.b16 %v3082, %v3081
        %v3122 = vpack.c.b16 %v3084, %v3083
        %v3123 = vpack.c.b16 %v3086, %v3085
        %v3124 = vpack.c.b16 %v3088, %v3087
        %v3125 = vpack.c.b16 %v3090, %v3089
        %v3126 = vpack.c.b16 %v3092, %v3091
        %v3127 = vpack.c.b16 %v3094, %v3093
        %v3128 = vpack.c.b16 %v3096, %v3095
        %v3129 = vpack.c.b16 %v3098, %v3097
        %v3130 = vpack.c.b16 %v3100, %v3099
        %v3131 = vpack.c.b16 %v3102, %v3101
        %v3132 = vpack.c.b16 %v3104, %v3103
        %v3133 = vpack.c.b16 %v3106, %v3105
        %v3134 = vpack.c.b16 %v3108, %v3107
        %v3135 = vpack.c.b16 %v3110, %v3109
        %v3136 = vpack.c.b16 %v3112, %v3111
        %3161 = vmatpush.bf16.msra.mxu0 %v3120
        %3162 = vmatpush.bf16.msra.mxu0 %v3119
        %3163 = vmatpush.bf16.msra.mxu0 %v3118
        %3164 = vmatpush.bf16.msra.mxu0 %v3117
        %3165 = vmatpush.bf16.msra.mxu0 %v3116
        %3166 = vmatpush.bf16.msra.mxu0 %v3115
        %3167 = vmatpush.bf16.msra.mxu0 %v3114
        %3168 = vmatpush.bf16.msra.mxu0 %v3113
        %3169 = vmatmul.bf16.gmra.mxu0 %v2921
        %v3170 = vpop.f32.mrf.mxu0
        %v3171 = vadd.f32 0.0, %v3170
        %v3172 = vpop.f32.mrf.mxu0
        %v3173 = vadd.f32 0.0, %v3172
        %3174 = vmatmul.bf16.gmra.mxu0 %v2924
        %v3175 = vpop.f32.mrf.mxu0
        %v3176 = vadd.f32 0.0, %v3175
        %v3177 = vpop.f32.mrf.mxu0
        %v3178 = vadd.f32 0.0, %v3177
        %3179 = vmatmul.bf16.gmra.mxu0 %v2927
        %v3180 = vpop.f32.mrf.mxu0
        %v3181 = vadd.f32 0.0, %v3180
        %v3182 = vpop.f32.mrf.mxu0
        %v3183 = vadd.f32 0.0, %v3182
        %3184 = vmatmul.bf16.gmra.mxu0 %v2930
        %v3185 = vpop.f32.mrf.mxu0
        %v3186 = vadd.f32 0.0, %v3185
        %v3187 = vpop.f32.mrf.mxu0
        %v3188 = vadd.f32 0.0, %v3187
        %3189 = vmatmul.bf16.gmra.mxu0 %v2933
        %v3190 = vpop.f32.mrf.mxu0
        %v3191 = vadd.f32 0.0, %v3190
        %v3192 = vpop.f32.mrf.mxu0
        %v3193 = vadd.f32 0.0, %v3192
        %3194 = vmatmul.bf16.gmra.mxu0 %v2936
        %v3195 = vpop.f32.mrf.mxu0
        %v3196 = vadd.f32 0.0, %v3195
        %v3197 = vpop.f32.mrf.mxu0
        %v3198 = vadd.f32 0.0, %v3197
        %3199 = vmatmul.bf16.gmra.mxu0 %v2939
        %v3200 = vpop.f32.mrf.mxu0
        %v3201 = vadd.f32 0.0, %v3200
        %v3202 = vpop.f32.mrf.mxu0
        %v3203 = vadd.f32 0.0, %v3202
        %3204 = vmatmul.bf16.gmra.mxu0 %v2942
        %v3205 = vpop.f32.mrf.mxu0
        %v3206 = vadd.f32 0.0, %v3205
        %v3207 = vpop.f32.mrf.mxu0
        %v3208 = vadd.f32 0.0, %v3207
        %3209 = vmatmul.bf16.gmra.mxu0 %v2945
        %v3210 = vpop.f32.mrf.mxu0
        %v3211 = vadd.f32 0.0, %v3210
        %v3212 = vpop.f32.mrf.mxu0
        %v3213 = vadd.f32 0.0, %v3212
        %3214 = vmatmul.bf16.gmra.mxu0 %v2948
        %v3215 = vpop.f32.mrf.mxu0
        %v3216 = vadd.f32 0.0, %v3215
        %v3217 = vpop.f32.mrf.mxu0
        %v3218 = vadd.f32 0.0, %v3217
        %3219 = vmatmul.bf16.gmra.mxu0 %v2951
        %v3220 = vpop.f32.mrf.mxu0
        %v3221 = vadd.f32 0.0, %v3220
        %v3222 = vpop.f32.mrf.mxu0
        %v3223 = vadd.f32 0.0, %v3222
        %3224 = vmatmul.bf16.gmra.mxu0 %v2954
        %v3225 = vpop.f32.mrf.mxu0
        %v3226 = vadd.f32 0.0, %v3225
        %v3227 = vpop.f32.mrf.mxu0
        %v3228 = vadd.f32 0.0, %v3227
        %3229 = vmatmul.bf16.gmra.mxu0 %v2957
        %v3230 = vpop.f32.mrf.mxu0
        %v3231 = vadd.f32 0.0, %v3230
        %v3232 = vpop.f32.mrf.mxu0
        %v3233 = vadd.f32 0.0, %v3232
        %3234 = vmatmul.bf16.gmra.mxu0 %v2960
        %v3235 = vpop.f32.mrf.mxu0
        %v3236 = vadd.f32 0.0, %v3235
        %v3237 = vpop.f32.mrf.mxu0
        %v3238 = vadd.f32 0.0, %v3237
        %3239 = vmatmul.bf16.gmra.mxu0 %v2963
        %v3240 = vpop.f32.mrf.mxu0
        %v3241 = vadd.f32 0.0, %v3240
        %v3242 = vpop.f32.mrf.mxu0
        %v3243 = vadd.f32 0.0, %v3242
        %3244 = vmatmul.bf16.gmra.mxu0 %v2966
        %v3245 = vpop.f32.mrf.mxu0
        %v3246 = vadd.f32 0.0, %v3245
        %v3247 = vpop.f32.mrf.mxu0
        %v3248 = vadd.f32 0.0, %v3247
        %3249 = vdwg.mxu0
        %3250 = vmatpush.bf16.msra.mxu0 %v3128
        %3251 = vmatpush.bf16.msra.mxu0 %v3127
        %3252 = vmatpush.bf16.msra.mxu0 %v3126
        %3253 = vmatpush.bf16.msra.mxu0 %v3125
        %3254 = vmatpush.bf16.msra.mxu0 %v3124
        %3255 = vmatpush.bf16.msra.mxu0 %v3123
        %3256 = vmatpush.bf16.msra.mxu0 %v3122
        %3257 = vmatpush.bf16.msra.mxu0 %v3121
        %3258 = vmatmul.bf16.gmra.mxu0 %v2922
        %v3259 = vpop.f32.mrf.mxu0
        %v3260 = vadd.f32 %v3171, %v3259
        %v3261 = vpop.f32.mrf.mxu0
        %v3262 = vadd.f32 %v3173, %v3261
        %3263 = vmatmul.bf16.gmra.mxu0 %v2925
        %v3264 = vpop.f32.mrf.mxu0
        %v3265 = vadd.f32 %v3176, %v3264
        %v3266 = vpop.f32.mrf.mxu0
        %v3267 = vadd.f32 %v3178, %v3266
        %3268 = vmatmul.bf16.gmra.mxu0 %v2928
        %v3269 = vpop.f32.mrf.mxu0
        %v3270 = vadd.f32 %v3181, %v3269
        %v3271 = vpop.f32.mrf.mxu0
        %v3272 = vadd.f32 %v3183, %v3271
        %3273 = vmatmul.bf16.gmra.mxu0 %v2931
        %v3274 = vpop.f32.mrf.mxu0
        %v3275 = vadd.f32 %v3186, %v3274
        %v3276 = vpop.f32.mrf.mxu0
        %v3277 = vadd.f32 %v3188, %v3276
        %3278 = vmatmul.bf16.gmra.mxu0 %v2934
        %v3279 = vpop.f32.mrf.mxu0
        %v3280 = vadd.f32 %v3191, %v3279
        %v3281 = vpop.f32.mrf.mxu0
        %v3282 = vadd.f32 %v3193, %v3281
        %3283 = vmatmul.bf16.gmra.mxu0 %v2937
        %v3284 = vpop.f32.mrf.mxu0
        %v3285 = vadd.f32 %v3196, %v3284
        %v3286 = vpop.f32.mrf.mxu0
        %v3287 = vadd.f32 %v3198, %v3286
        %3288 = vmatmul.bf16.gmra.mxu0 %v2940
        %v3289 = vpop.f32.mrf.mxu0
        %v3290 = vadd.f32 %v3201, %v3289
        %v3291 = vpop.f32.mrf.mxu0
        %v3292 = vadd.f32 %v3203, %v3291
        %3293 = vmatmul.bf16.gmra.mxu0 %v2943
        %v3294 = vpop.f32.mrf.mxu0
        %v3295 = vadd.f32 %v3206, %v3294
        %v3296 = vpop.f32.mrf.mxu0
        %v3297 = vadd.f32 %v3208, %v3296
        %3298 = vmatmul.bf16.gmra.mxu0 %v2946
        %v3299 = vpop.f32.mrf.mxu0
        %v3300 = vadd.f32 %v3211, %v3299
        %v3301 = vpop.f32.mrf.mxu0
        %v3302 = vadd.f32 %v3213, %v3301
        %3303 = vmatmul.bf16.gmra.mxu0 %v2949
        %v3304 = vpop.f32.mrf.mxu0
        %v3305 = vadd.f32 %v3216, %v3304
        %v3306 = vpop.f32.mrf.mxu0
        %v3307 = vadd.f32 %v3218, %v3306
        %3308 = vmatmul.bf16.gmra.mxu0 %v2952
        %v3309 = vpop.f32.mrf.mxu0
        %v3310 = vadd.f32 %v3221, %v3309
        %v3311 = vpop.f32.mrf.mxu0
        %v3312 = vadd.f32 %v3223, %v3311
        %3313 = vmatmul.bf16.gmra.mxu0 %v2955
        %v3314 = vpop.f32.mrf.mxu0
        %v3315 = vadd.f32 %v3226, %v3314
        %v3316 = vpop.f32.mrf.mxu0
        %v3317 = vadd.f32 %v3228, %v3316
        %3318 = vmatmul.bf16.gmra.mxu0 %v2958
        %v3319 = vpop.f32.mrf.mxu0
        %v3320 = vadd.f32 %v3231, %v3319
        %v3321 = vpop.f32.mrf.mxu0
        %v3322 = vadd.f32 %v3233, %v3321
        %3323 = vmatmul.bf16.gmra.mxu0 %v2961
        %v3324 = vpop.f32.mrf.mxu0
        %v3325 = vadd.f32 %v3236, %v3324
        %v3326 = vpop.f32.mrf.mxu0
        %v3327 = vadd.f32 %v3238, %v3326
        %3328 = vmatmul.bf16.gmra.mxu0 %v2964
        %v3329 = vpop.f32.mrf.mxu0
        %v3330 = vadd.f32 %v3241, %v3329
        %v3331 = vpop.f32.mrf.mxu0
        %v3332 = vadd.f32 %v3243, %v3331
        %3333 = vmatmul.bf16.gmra.mxu0 %v2967
        %v3334 = vpop.f32.mrf.mxu0
        %v3335 = vadd.f32 %v3246, %v3334
        %v3336 = vpop.f32.mrf.mxu0
        %v3337 = vadd.f32 %v3248, %v3336
        %3338 = vdwg.mxu0
        %3339 = vmatpush.bf16.msra.mxu0 %v3136
        %3340 = vmatpush.bf16.msra.mxu0 %v3135
        %3341 = vmatpush.bf16.msra.mxu0 %v3134
        %3342 = vmatpush.bf16.msra.mxu0 %v3133
        %3343 = vmatpush.bf16.msra.mxu0 %v3132
        %3344 = vmatpush.bf16.msra.mxu0 %v3131
        %3345 = vmatpush.bf16.msra.mxu0 %v3130
        %3346 = vmatpush.bf16.msra.mxu0 %v3129
        %3347 = vmatmul.bf16.gmra.mxu0 %v2923
        %v3348 = vpop.f32.mrf.mxu0
        %v3349 = vadd.f32 %v3260, %v3348
        %v3350 = vpop.f32.mrf.mxu0
        %v3351 = vadd.f32 %v3262, %v3350
        %3352 = vmatmul.bf16.gmra.mxu0 %v2926
        %v3353 = vpop.f32.mrf.mxu0
        %v3354 = vadd.f32 %v3265, %v3353
        %v3355 = vpop.f32.mrf.mxu0
        %v3356 = vadd.f32 %v3267, %v3355
        %3357 = vmatmul.bf16.gmra.mxu0 %v2929
        %v3358 = vpop.f32.mrf.mxu0
        %v3359 = vadd.f32 %v3270, %v3358
        %v3360 = vpop.f32.mrf.mxu0
        %v3361 = vadd.f32 %v3272, %v3360
        %3362 = vmatmul.bf16.gmra.mxu0 %v2932
        %v3363 = vpop.f32.mrf.mxu0
        %v3364 = vadd.f32 %v3275, %v3363
        %v3365 = vpop.f32.mrf.mxu0
        %v3366 = vadd.f32 %v3277, %v3365
        %3367 = vmatmul.bf16.gmra.mxu0 %v2935
        %v3368 = vpop.f32.mrf.mxu0
        %v3369 = vadd.f32 %v3280, %v3368
        %v3370 = vpop.f32.mrf.mxu0
        %v3371 = vadd.f32 %v3282, %v3370
        %3372 = vmatmul.bf16.gmra.mxu0 %v2938
        %v3373 = vpop.f32.mrf.mxu0
        %v3374 = vadd.f32 %v3285, %v3373
        %v3375 = vpop.f32.mrf.mxu0
        %v3376 = vadd.f32 %v3287, %v3375
        %3377 = vmatmul.bf16.gmra.mxu0 %v2941
        %v3378 = vpop.f32.mrf.mxu0
        %v3379 = vadd.f32 %v3290, %v3378
        %v3380 = vpop.f32.mrf.mxu0
        %v3381 = vadd.f32 %v3292, %v3380
        %3382 = vmatmul.bf16.gmra.mxu0 %v2944
        %v3383 = vpop.f32.mrf.mxu0
        %v3384 = vadd.f32 %v3295, %v3383
        %v3385 = vpop.f32.mrf.mxu0
        %v3386 = vadd.f32 %v3297, %v3385
        %3387 = vmatmul.bf16.gmra.mxu0 %v2947
        %v3388 = vpop.f32.mrf.mxu0
        %v3389 = vadd.f32 %v3300, %v3388
        %v3390 = vpop.f32.mrf.mxu0
        %v3391 = vadd.f32 %v3302, %v3390
        %3392 = vmatmul.bf16.gmra.mxu0 %v2950
        %v3393 = vpop.f32.mrf.mxu0
        %v3394 = vadd.f32 %v3305, %v3393
        %v3395 = vpop.f32.mrf.mxu0
        %v3396 = vadd.f32 %v3307, %v3395
        %3397 = vmatmul.bf16.gmra.mxu0 %v2953
        %v3398 = vpop.f32.mrf.mxu0
        %v3399 = vadd.f32 %v3310, %v3398
        %v3400 = vpop.f32.mrf.mxu0
        %v3401 = vadd.f32 %v3312, %v3400
        %3402 = vmatmul.bf16.gmra.mxu0 %v2956
        %v3403 = vpop.f32.mrf.mxu0
        %v3404 = vadd.f32 %v3315, %v3403
        %v3405 = vpop.f32.mrf.mxu0
        %v3406 = vadd.f32 %v3317, %v3405
        %3407 = vmatmul.bf16.gmra.mxu0 %v2959
        %v3408 = vpop.f32.mrf.mxu0
        %v3409 = vadd.f32 %v3320, %v3408
        %v3410 = vpop.f32.mrf.mxu0
        %v3411 = vadd.f32 %v3322, %v3410
        %3412 = vmatmul.bf16.gmra.mxu0 %v2962
        %v3413 = vpop.f32.mrf.mxu0
        %v3414 = vadd.f32 %v3325, %v3413
        %v3415 = vpop.f32.mrf.mxu0
        %v3416 = vadd.f32 %v3327, %v3415
        %3417 = vmatmul.bf16.gmra.mxu0 %v2965
        %v3418 = vpop.f32.mrf.mxu0
        %v3419 = vadd.f32 %v3330, %v3418
        %v3420 = vpop.f32.mrf.mxu0
        %v3421 = vadd.f32 %v3332, %v3420
        %3422 = vmatmul.bf16.gmra.mxu0 %v2968
        %v3423 = vpop.f32.mrf.mxu0
        %v3424 = vadd.f32 %v3335, %v3423
        %v3425 = vpop.f32.mrf.mxu0
        %v3426 = vadd.f32 %v3337, %v3425
        %3427 = vdwg.mxu0
        %v3428 = vadd.f32 %v2569, %v3349
        %v3429 = vadd.f32 %v2571, %v3351
        %v3430 = vadd.f32 %v2574, %v3354
        %v3431 = vadd.f32 %v2576, %v3356
        %v3432 = vadd.f32 %v2579, %v3359
        %v3433 = vadd.f32 %v2581, %v3361
        %v3434 = vadd.f32 %v2584, %v3364
        %v3435 = vadd.f32 %v2586, %v3366
        %v3436 = vadd.f32 %v2589, %v3369
        %v3437 = vadd.f32 %v2591, %v3371
        %v3438 = vadd.f32 %v2594, %v3374
        %v3439 = vadd.f32 %v2596, %v3376
        %v3440 = vadd.f32 %v2599, %v3379
        %v3441 = vadd.f32 %v2601, %v3381
        %v3442 = vadd.f32 %v2604, %v3384
        %v3443 = vadd.f32 %v2606, %v3386
        %v3444 = vadd.f32 %v2609, %v3389
        %v3445 = vadd.f32 %v2611, %v3391
        %v3446 = vadd.f32 %v2614, %v3394
        %v3447 = vadd.f32 %v2616, %v3396
        %v3448 = vadd.f32 %v2619, %v3399
        %v3449 = vadd.f32 %v2621, %v3401
        %v3450 = vadd.f32 %v2624, %v3404
        %v3451 = vadd.f32 %v2626, %v3406
        %v3452 = vadd.f32 %v2629, %v3409
        %v3453 = vadd.f32 %v2631, %v3411
        %v3454 = vadd.f32 %v2634, %v3414
        %v3455 = vadd.f32 %v2636, %v3416
        %v3456 = vadd.f32 %v2639, %v3419
        %v3457 = vadd.f32 %v2641, %v3421
        %v3458 = vadd.f32 %v2644, %v3424
        %v3459 = vadd.f32 %v2646, %v3426
        %v3460 = vld [vmem:[%s3] sm:$0x1]
        %v3462 = vperm.slane %v3460, 0
        %v3464 = vadd.f32 %v3428, %v3462
        %v3465 = vadd.f32 %v3429, %v3462
        %v3466 = vadd.f32 %v3430, %v3462
        %v3467 = vadd.f32 %v3431, %v3462
        %v3468 = vadd.f32 %v3432, %v3462
        %v3469 = vadd.f32 %v3433, %v3462
        %v3470 = vadd.f32 %v3434, %v3462
        %v3471 = vadd.f32 %v3435, %v3462
        %v3472 = vadd.f32 %v3436, %v3462
        %v3473 = vadd.f32 %v3437, %v3462
        %v3474 = vadd.f32 %v3438, %v3462
        %v3475 = vadd.f32 %v3439, %v3462
        %v3476 = vadd.f32 %v3440, %v3462
        %v3477 = vadd.f32 %v3441, %v3462
        %v3478 = vadd.f32 %v3442, %v3462
        %v3479 = vadd.f32 %v3443, %v3462
        %v3480 = vadd.f32 %v3444, %v3462
        %v3481 = vadd.f32 %v3445, %v3462
        %v3482 = vadd.f32 %v3446, %v3462
        %v3483 = vadd.f32 %v3447, %v3462
        %v3484 = vadd.f32 %v3448, %v3462
        %v3485 = vadd.f32 %v3449, %v3462
        %v3486 = vadd.f32 %v3450, %v3462
        %v3487 = vadd.f32 %v3451, %v3462
        %v3488 = vadd.f32 %v3452, %v3462
        %v3489 = vadd.f32 %v3453, %v3462
        %v3490 = vadd.f32 %v3454, %v3462
        %v3491 = vadd.f32 %v3455, %v3462
        %v3492 = vadd.f32 %v3456, %v3462
        %v3493 = vadd.f32 %v3457, %v3462
        %v3494 = vadd.f32 %v3458, %v3462
        %v3495 = vadd.f32 %v3459, %v3462
        %v3496 = vmax.f32 %v3464, 0.0
        %v3497 = vmax.f32 %v3465, 0.0
        %v3498 = vmax.f32 %v3466, 0.0
        %v3499 = vmax.f32 %v3467, 0.0
        %v3500 = vmax.f32 %v3468, 0.0
        %v3501 = vmax.f32 %v3469, 0.0
        %v3502 = vmax.f32 %v3470, 0.0
        %v3503 = vmax.f32 %v3471, 0.0
        %v3504 = vmax.f32 %v3472, 0.0
        %v3505 = vmax.f32 %v3473, 0.0
        %v3506 = vmax.f32 %v3474, 0.0
        %v3507 = vmax.f32 %v3475, 0.0
        %v3508 = vmax.f32 %v3476, 0.0
        %v3509 = vmax.f32 %v3477, 0.0
        %v3510 = vmax.f32 %v3478, 0.0
        %v3511 = vmax.f32 %v3479, 0.0
        %v3512 = vmax.f32 %v3480, 0.0
        %v3513 = vmax.f32 %v3481, 0.0
        %v3514 = vmax.f32 %v3482, 0.0
        %v3515 = vmax.f32 %v3483, 0.0
        %v3516 = vmax.f32 %v3484, 0.0
        %v3517 = vmax.f32 %v3485, 0.0
        %v3518 = vmax.f32 %v3486, 0.0
        %v3519 = vmax.f32 %v3487, 0.0
        %v3520 = vmax.f32 %v3488, 0.0
        %v3521 = vmax.f32 %v3489, 0.0
        %v3522 = vmax.f32 %v3490, 0.0
        %v3523 = vmax.f32 %v3491, 0.0
        %v3524 = vmax.f32 %v3492, 0.0
        %v3525 = vmax.f32 %v3493, 0.0
        %v3526 = vmax.f32 %v3494, 0.0
        %v3527 = vmax.f32 %v3495, 0.0
        %v3528 = vrot.slane %v3496, 7
        %v3529 = vrot.slane %v3497, 7
        %v3530 = vrot.slane %v3498, 7
        %v3531 = vrot.slane %v3499, 7
        %v3532 = vrot.slane %v3500, 7
        %v3533 = vrot.slane %v3501, 7
        %v3534 = vrot.slane %v3502, 7
        %v3535 = vrot.slane %v3503, 7
        %v3536 = vrot.slane %v3504, 7
        %v3537 = vrot.slane %v3505, 7
        %v3538 = vrot.slane %v3506, 7
        %v3539 = vrot.slane %v3507, 7
        %v3540 = vrot.slane %v3508, 7
        %v3541 = vrot.slane %v3509, 7
        %v3542 = vrot.slane %v3510, 7
        %v3543 = vrot.slane %v3511, 7
        %v3544 = vrot.slane %v3512, 7
        %v3545 = vrot.slane %v3513, 7
        %v3546 = vrot.slane %v3514, 7
        %v3547 = vrot.slane %v3515, 7
        %v3548 = vrot.slane %v3516, 7
        %v3549 = vrot.slane %v3517, 7
        %v3550 = vrot.slane %v3518, 7
        %v3551 = vrot.slane %v3519, 7
        %v3552 = vrot.slane %v3520, 7
        %v3553 = vrot.slane %v3521, 7
        %v3554 = vrot.slane %v3522, 7
        %v3555 = vrot.slane %v3523, 7
        %v3556 = vrot.slane %v3524, 7
        %v3557 = vrot.slane %v3525, 7
        %v3558 = vrot.slane %v3526, 7
        %v3559 = vrot.slane %v3527, 7
        %v3560 = vsel %vm971, %v3558, %v3559
        %v3561 = vsel %vm971, %v3557, %v3558
        %v3562 = vsel %vm971, %v3556, %v3557
        %v3563 = vsel %vm971, %v3555, %v3556
        %v3564 = vsel %vm971, %v3554, %v3555
        %v3565 = vsel %vm971, %v3553, %v3554
        %v3566 = vsel %vm971, %v3552, %v3553
        %v3567 = vsel %vm971, %v3551, %v3552
        %v3568 = vsel %vm971, %v3550, %v3551
        %v3569 = vsel %vm971, %v3549, %v3550
        %v3570 = vsel %vm971, %v3548, %v3549
        %v3571 = vsel %vm971, %v3547, %v3548
        %v3572 = vsel %vm971, %v3546, %v3547
        %v3573 = vsel %vm971, %v3545, %v3546
        %v3574 = vsel %vm971, %v3544, %v3545
        %v3575 = vsel %vm971, %v3543, %v3544
        %v3576 = vsel %vm971, %v3542, %v3543
        %v3577 = vsel %vm971, %v3541, %v3542
        %v3578 = vsel %vm971, %v3540, %v3541
        %v3579 = vsel %vm971, %v3539, %v3540
        %v3580 = vsel %vm971, %v3538, %v3539
        %v3581 = vsel %vm971, %v3537, %v3538
        %v3582 = vsel %vm971, %v3536, %v3537
        %v3583 = vsel %vm971, %v3535, %v3536
        %v3584 = vsel %vm971, %v3534, %v3535
        %v3585 = vsel %vm971, %v3533, %v3534
        %v3586 = vsel %vm971, %v3532, %v3533
        %v3587 = vsel %vm971, %v3531, %v3532
        %v3588 = vsel %vm971, %v3530, %v3531
        %v3589 = vsel %vm971, %v3529, %v3530
        %v3590 = vsel %vm971, %v3528, %v3529
        %v3591 = vsel %vm971, %v3559, %v3528
        %v3592 = vsel %vm1036, %v3591, 0.0
        %v3593 = vsel %vm1037, %v3590, 0.0
        %v3594 = vsel %vm1038, %v3589, 0.0
        %v3595 = vsel %vm1039, %v3588, 0.0
        %v3596 = vsel %vm1040, %v3587, 0.0
        %v3597 = vsel %vm1041, %v3586, 0.0
        %v3598 = vsel %vm1042, %v3585, 0.0
        %v3599 = vsel %vm1043, %v3584, 0.0
        %v3600 = vsel %vm1044, %v3583, 0.0
        %v3601 = vsel %vm1045, %v3582, 0.0
        %v3602 = vsel %vm1046, %v3581, 0.0
        %v3603 = vsel %vm1047, %v3580, 0.0
        %v3604 = vsel %vm1048, %v3579, 0.0
        %v3605 = vsel %vm1049, %v3578, 0.0
        %v3606 = vsel %vm1050, %v3577, 0.0
        %v3607 = vsel %vm1051, %v3576, 0.0
        %v3608 = vsel %vm1052, %v3575, 0.0
        %v3609 = vsel %vm1053, %v3574, 0.0
        %v3610 = vsel %vm1054, %v3573, 0.0
        %v3611 = vsel %vm1055, %v3572, 0.0
        %v3612 = vsel %vm1056, %v3571, 0.0
        %v3613 = vsel %vm1057, %v3570, 0.0
        %v3614 = vsel %vm1058, %v3569, 0.0
        %v3615 = vsel %vm1059, %v3568, 0.0
        %v3616 = vsel %vm1060, %v3567, 0.0
        %v3617 = vsel %vm1061, %v3566, 0.0
        %v3618 = vsel %vm1062, %v3565, 0.0
        %v3619 = vsel %vm1063, %v3564, 0.0
        %v3620 = vsel %vm1064, %v3563, 0.0
        %v3621 = vsel %vm1065, %v3562, 0.0
        %v3622 = vsel %vm1066, %v3561, 0.0
        %v3623 = vsel %vm1067, %v3560, 0.0
        %v3624 = vrot.slane %v3496, 1
        %v3625 = vrot.slane %v3497, 1
        %v3626 = vrot.slane %v3498, 1
        %v3627 = vrot.slane %v3499, 1
        %v3628 = vrot.slane %v3500, 1
        %v3629 = vrot.slane %v3501, 1
        %v3630 = vrot.slane %v3502, 1
        %v3631 = vrot.slane %v3503, 1
        %v3632 = vrot.slane %v3504, 1
        %v3633 = vrot.slane %v3505, 1
        %v3634 = vrot.slane %v3506, 1
        %v3635 = vrot.slane %v3507, 1
        %v3636 = vrot.slane %v3508, 1
        %v3637 = vrot.slane %v3509, 1
        %v3638 = vrot.slane %v3510, 1
        %v3639 = vrot.slane %v3511, 1
        %v3640 = vrot.slane %v3512, 1
        %v3641 = vrot.slane %v3513, 1
        %v3642 = vrot.slane %v3514, 1
        %v3643 = vrot.slane %v3515, 1
        %v3644 = vrot.slane %v3516, 1
        %v3645 = vrot.slane %v3517, 1
        %v3646 = vrot.slane %v3518, 1
        %v3647 = vrot.slane %v3519, 1
        %v3648 = vrot.slane %v3520, 1
        %v3649 = vrot.slane %v3521, 1
        %v3650 = vrot.slane %v3522, 1
        %v3651 = vrot.slane %v3523, 1
        %v3652 = vrot.slane %v3524, 1
        %v3653 = vrot.slane %v3525, 1
        %v3654 = vrot.slane %v3526, 1
        %v3655 = vrot.slane %v3527, 1
        %v3656 = vsel %vm1132, %v3654, %v3655
        %v3657 = vsel %vm1132, %v3653, %v3654
        %v3658 = vsel %vm1132, %v3652, %v3653
        %v3659 = vsel %vm1132, %v3651, %v3652
        %v3660 = vsel %vm1132, %v3650, %v3651
        %v3661 = vsel %vm1132, %v3649, %v3650
        %v3662 = vsel %vm1132, %v3648, %v3649
        %v3663 = vsel %vm1132, %v3647, %v3648
        %v3664 = vsel %vm1132, %v3646, %v3647
        %v3665 = vsel %vm1132, %v3645, %v3646
        %v3666 = vsel %vm1132, %v3644, %v3645
        %v3667 = vsel %vm1132, %v3643, %v3644
        %v3668 = vsel %vm1132, %v3642, %v3643
        %v3669 = vsel %vm1132, %v3641, %v3642
        %v3670 = vsel %vm1132, %v3640, %v3641
        %v3671 = vsel %vm1132, %v3639, %v3640
        %v3672 = vsel %vm1132, %v3638, %v3639
        %v3673 = vsel %vm1132, %v3637, %v3638
        %v3674 = vsel %vm1132, %v3636, %v3637
        %v3675 = vsel %vm1132, %v3635, %v3636
        %v3676 = vsel %vm1132, %v3634, %v3635
        %v3677 = vsel %vm1132, %v3633, %v3634
        %v3678 = vsel %vm1132, %v3632, %v3633
        %v3679 = vsel %vm1132, %v3631, %v3632
        %v3680 = vsel %vm1132, %v3630, %v3631
        %v3681 = vsel %vm1132, %v3629, %v3630
        %v3682 = vsel %vm1132, %v3628, %v3629
        %v3683 = vsel %vm1132, %v3627, %v3628
        %v3684 = vsel %vm1132, %v3626, %v3627
        %v3685 = vsel %vm1132, %v3625, %v3626
        %v3686 = vsel %vm1132, %v3624, %v3625
        %v3687 = vsel %vm1132, %v3655, %v3624
        %v3688 = vsel %vm1197, %v3686, 0.0
        %v3689 = vsel %vm1198, %v3685, 0.0
        %v3690 = vsel %vm1199, %v3684, 0.0
        %v3691 = vsel %vm1200, %v3683, 0.0
        %v3692 = vsel %vm1201, %v3682, 0.0
        %v3693 = vsel %vm1202, %v3681, 0.0
        %v3694 = vsel %vm1203, %v3680, 0.0
        %v3695 = vsel %vm1204, %v3679, 0.0
        %v3696 = vsel %vm1205, %v3678, 0.0
        %v3697 = vsel %vm1206, %v3677, 0.0
        %v3698 = vsel %vm1207, %v3676, 0.0
        %v3699 = vsel %vm1208, %v3675, 0.0
        %v3700 = vsel %vm1209, %v3674, 0.0
        %v3701 = vsel %vm1210, %v3673, 0.0
        %v3702 = vsel %vm1211, %v3672, 0.0
        %v3703 = vsel %vm1212, %v3671, 0.0
        %v3704 = vsel %vm1213, %v3670, 0.0
        %v3705 = vsel %vm1214, %v3669, 0.0
        %v3706 = vsel %vm1215, %v3668, 0.0
        %v3707 = vsel %vm1216, %v3667, 0.0
        %v3708 = vsel %vm1217, %v3666, 0.0
        %v3709 = vsel %vm1218, %v3665, 0.0
        %v3710 = vsel %vm1219, %v3664, 0.0
        %v3711 = vsel %vm1220, %v3663, 0.0
        %v3712 = vsel %vm1221, %v3662, 0.0
        %v3713 = vsel %vm1222, %v3661, 0.0
        %v3714 = vsel %vm1223, %v3660, 0.0
        %v3715 = vsel %vm1224, %v3659, 0.0
        %v3716 = vsel %vm1225, %v3658, 0.0
        %v3717 = vsel %vm1226, %v3657, 0.0
        %v3718 = vsel %vm1227, %v3656, 0.0
        %v3719 = vsel %vm1228, %v3687, 0.0
        %v3720 = vpack.c.bf16 %v3496, %v3592
        %v3721 = vpack.c.bf16 %v3688, %v3688
        %v3722 = vpack.c.bf16 %v3497, %v3593
        %v3723 = vpack.c.bf16 %v3689, %v3689
        %v3724 = vpack.c.bf16 %v3498, %v3594
        %v3725 = vpack.c.bf16 %v3690, %v3690
        %v3726 = vpack.c.bf16 %v3499, %v3595
        %v3727 = vpack.c.bf16 %v3691, %v3691
        %v3728 = vpack.c.bf16 %v3500, %v3596
        %v3729 = vpack.c.bf16 %v3692, %v3692
        %v3730 = vpack.c.bf16 %v3501, %v3597
        %v3731 = vpack.c.bf16 %v3693, %v3693
        %v3732 = vpack.c.bf16 %v3502, %v3598
        %v3733 = vpack.c.bf16 %v3694, %v3694
        %v3734 = vpack.c.bf16 %v3503, %v3599
        %v3735 = vpack.c.bf16 %v3695, %v3695
        %v3736 = vpack.c.bf16 %v3504, %v3600
        %v3737 = vpack.c.bf16 %v3696, %v3696
        %v3738 = vpack.c.bf16 %v3505, %v3601
        %v3739 = vpack.c.bf16 %v3697, %v3697
        %v3740 = vpack.c.bf16 %v3506, %v3602
        %v3741 = vpack.c.bf16 %v3698, %v3698
        %v3742 = vpack.c.bf16 %v3507, %v3603
        %v3743 = vpack.c.bf16 %v3699, %v3699
        %v3744 = vpack.c.bf16 %v3508, %v3604
        %v3745 = vpack.c.bf16 %v3700, %v3700
        %v3746 = vpack.c.bf16 %v3509, %v3605
        %v3747 = vpack.c.bf16 %v3701, %v3701
        %v3748 = vpack.c.bf16 %v3510, %v3606
        %v3749 = vpack.c.bf16 %v3702, %v3702
        %v3750 = vpack.c.bf16 %v3511, %v3607
        %v3751 = vpack.c.bf16 %v3703, %v3703
        %v3752 = vpack.c.bf16 %v3512, %v3608
        %v3753 = vpack.c.bf16 %v3704, %v3704
        %v3754 = vpack.c.bf16 %v3513, %v3609
        %v3755 = vpack.c.bf16 %v3705, %v3705
        %v3756 = vpack.c.bf16 %v3514, %v3610
        %v3757 = vpack.c.bf16 %v3706, %v3706
        %v3758 = vpack.c.bf16 %v3515, %v3611
        %v3759 = vpack.c.bf16 %v3707, %v3707
        %v3760 = vpack.c.bf16 %v3516, %v3612
        %v3761 = vpack.c.bf16 %v3708, %v3708
        %v3762 = vpack.c.bf16 %v3517, %v3613
        %v3763 = vpack.c.bf16 %v3709, %v3709
        %v3764 = vpack.c.bf16 %v3518, %v3614
        %v3765 = vpack.c.bf16 %v3710, %v3710
        %v3766 = vpack.c.bf16 %v3519, %v3615
        %v3767 = vpack.c.bf16 %v3711, %v3711
        %v3768 = vpack.c.bf16 %v3520, %v3616
        %v3769 = vpack.c.bf16 %v3712, %v3712
        %v3770 = vpack.c.bf16 %v3521, %v3617
        %v3771 = vpack.c.bf16 %v3713, %v3713
        %v3772 = vpack.c.bf16 %v3522, %v3618
        %v3773 = vpack.c.bf16 %v3714, %v3714
        %v3774 = vpack.c.bf16 %v3523, %v3619
        %v3775 = vpack.c.bf16 %v3715, %v3715
        %v3776 = vpack.c.bf16 %v3524, %v3620
        %v3777 = vpack.c.bf16 %v3716, %v3716
        %v3778 = vpack.c.bf16 %v3525, %v3621
        %v3779 = vpack.c.bf16 %v3717, %v3717
        %v3780 = vpack.c.bf16 %v3526, %v3622
        %v3781 = vpack.c.bf16 %v3718, %v3718
        %v3782 = vpack.c.bf16 %v3527, %v3623
        %v3783 = vpack.c.bf16 %v3719, %v3719
        %3784 = vst [vmem:[#allocation2 + $0x18] sm:$0xff] %v3720
        %3785 = vst [vmem:[#allocation2 + $0x20] sm:$0xf] %v3721
        %3786 = vst [vmem:[#allocation2 + $0x24] sm:$0xff] %v3722
        %3787 = vst [vmem:[#allocation2 + $0x2c] sm:$0xf] %v3723
        %3788 = vst [vmem:[#allocation2 + $0x30] sm:$0xff] %v3724
        %3789 = vst [vmem:[#allocation2 + $0x38] sm:$0xf] %v3725
        %3790 = vst [vmem:[#allocation2 + $0x3c] sm:$0xff] %v3726
        %3791 = vst [vmem:[#allocation2 + $0x44] sm:$0xf] %v3727
        %3792 = vst [vmem:[#allocation2 + $0x48] sm:$0xff] %v3728
        %3793 = vst [vmem:[#allocation2 + $0x50] sm:$0xf] %v3729
        %3794 = vst [vmem:[#allocation2 + $0x54] sm:$0xff] %v3730
        %3795 = vst [vmem:[#allocation2 + $0x5c] sm:$0xf] %v3731
        %3796 = vst [vmem:[#allocation2 + $0x60] sm:$0xff] %v3732
        %3797 = vst [vmem:[#allocation2 + $0x68] sm:$0xf] %v3733
        %3798 = vst [vmem:[#allocation2 + $0x6c] sm:$0xff] %v3734
        %3799 = vst [vmem:[#allocation2 + $0x74] sm:$0xf] %v3735
        %3800 = vst [vmem:[#allocation2 + $0x78] sm:$0xff] %v3736
        %3801 = vst [vmem:[#allocation2 + $0x80] sm:$0xf] %v3737
        %3802 = vst [vmem:[#allocation2 + $0x84] sm:$0xff] %v3738
        %3803 = vst [vmem:[#allocation2 + $0x8c] sm:$0xf] %v3739
        %3804 = vst [vmem:[#allocation2 + $0x90] sm:$0xff] %v3740
        %3805 = vst [vmem:[#allocation2 + $0x98] sm:$0xf] %v3741
        %3806 = vst [vmem:[#allocation2 + $0x9c] sm:$0xff] %v3742
        %3807 = vst [vmem:[#allocation2 + $0xa4] sm:$0xf] %v3743
        %3808 = vst [vmem:[#allocation2 + $0xa8] sm:$0xff] %v3744
        %3809 = vst [vmem:[#allocation2 + $0xb0] sm:$0xf] %v3745
        %3810 = vst [vmem:[#allocation2 + $0xb4] sm:$0xff] %v3746
        %3811 = vst [vmem:[#allocation2 + $0xbc] sm:$0xf] %v3747
        %3812 = vst [vmem:[#allocation2 + $0xc0] sm:$0xff] %v3748
        %3813 = vst [vmem:[#allocation2 + $0xc8] sm:$0xf] %v3749
        %3814 = vst [vmem:[#allocation2 + $0xcc] sm:$0xff] %v3750
        %3815 = vst [vmem:[#allocation2 + $0xd4] sm:$0xf] %v3751
        %3816 = vst [vmem:[#allocation2 + $0xd8] sm:$0xff] %v3752
        %3817 = vst [vmem:[#allocation2 + $0xe0] sm:$0xf] %v3753
        %3818 = vst [vmem:[#allocation2 + $0xe4] sm:$0xff] %v3754
        %3819 = vst [vmem:[#allocation2 + $0xec] sm:$0xf] %v3755
        %3820 = vst [vmem:[#allocation2 + $0xf0] sm:$0xff] %v3756
        %3821 = vst [vmem:[#allocation2 + $0xf8] sm:$0xf] %v3757
        %3822 = vst [vmem:[#allocation2 + $0xfc] sm:$0xff] %v3758
        %3823 = vst [vmem:[#allocation2 + $0x104] sm:$0xf] %v3759
        %3824 = vst [vmem:[#allocation2 + $0x108] sm:$0xff] %v3760
        %3825 = vst [vmem:[#allocation2 + $0x110] sm:$0xf] %v3761
        %3826 = vst [vmem:[#allocation2 + $0x114] sm:$0xff] %v3762
        %3827 = vst [vmem:[#allocation2 + $0x11c] sm:$0xf] %v3763
        %3828 = vst [vmem:[#allocation2 + $0x120] sm:$0xff] %v3764
        %3829 = vst [vmem:[#allocation2 + $0x128] sm:$0xf] %v3765
        %3830 = vst [vmem:[#allocation2 + $0x12c] sm:$0xff] %v3766
        %3831 = vst [vmem:[#allocation2 + $0x134] sm:$0xf] %v3767
        %3832 = vst [vmem:[#allocation2 + $0x138] sm:$0xff] %v3768
        %3833 = vst [vmem:[#allocation2 + $0x140] sm:$0xf] %v3769
        %3834 = vst [vmem:[#allocation2 + $0x144] sm:$0xff] %v3770
        %3835 = vst [vmem:[#allocation2 + $0x14c] sm:$0xf] %v3771
        %3836 = vst [vmem:[#allocation2 + $0x150] sm:$0xff] %v3772
        %3837 = vst [vmem:[#allocation2 + $0x158] sm:$0xf] %v3773
        %3838 = vst [vmem:[#allocation2 + $0x15c] sm:$0xff] %v3774
        %3839 = vst [vmem:[#allocation2 + $0x164] sm:$0xf] %v3775
        %3840 = vst [vmem:[#allocation2 + $0x168] sm:$0xff] %v3776
        %3841 = vst [vmem:[#allocation2 + $0x170] sm:$0xf] %v3777
        %3842 = vst [vmem:[#allocation2 + $0x174] sm:$0xff] %v3778
        %3843 = vst [vmem:[#allocation2 + $0x17c] sm:$0xf] %v3779
        %3844 = vst [vmem:[#allocation2 + $0x180] sm:$0xff] %v3780
        %3845 = vst [vmem:[#allocation2 + $0x188] sm:$0xf] %v3781
        %3846 = vst [vmem:[#allocation2 + $0x18c] sm:$0xff] %v3782
        %3847 = vst [vmem:[#allocation2 + $0x194] sm:$0xf] %v3783
        %v3848 = vld [vmem:[#allocation2] sm:$0xff]
        %v3849 = vld [vmem:[#allocation2 + $0x8] sm:$0xf]
        %v3850 = vld [vmem:[#allocation2 + $0xc] sm:$0xff]
        %v3851 = vld [vmem:[#allocation2 + $0x14] sm:$0xf]
        %v3852 = vld [vmem:[#allocation2 + $0x18] sm:$0xff]
        %v3853 = vld [vmem:[#allocation2 + $0x20] sm:$0xf]
        %v3854 = vld [vmem:[#allocation2 + $0x24] sm:$0xff]
        %v3855 = vld [vmem:[#allocation2 + $0x2c] sm:$0xf]
        %v3856 = vld [vmem:[#allocation2 + $0x30] sm:$0xff]
        %v3857 = vld [vmem:[#allocation2 + $0x38] sm:$0xf]
        %v3858 = vld [vmem:[#allocation2 + $0x3c] sm:$0xff]
        %v3859 = vld [vmem:[#allocation2 + $0x44] sm:$0xf]
        %v3860 = vld [vmem:[#allocation2 + $0x48] sm:$0xff]
        %v3861 = vld [vmem:[#allocation2 + $0x50] sm:$0xf]
        %v3862 = vld [vmem:[#allocation2 + $0x54] sm:$0xff]
        %v3863 = vld [vmem:[#allocation2 + $0x5c] sm:$0xf]
        %v3864 = vld [vmem:[#allocation2 + $0x60] sm:$0xff]
        %v3865 = vld [vmem:[#allocation2 + $0x68] sm:$0xf]
        %v3866 = vld [vmem:[#allocation2 + $0x6c] sm:$0xff]
        %v3867 = vld [vmem:[#allocation2 + $0x74] sm:$0xf]
        %v3868 = vld [vmem:[#allocation2 + $0x78] sm:$0xff]
        %v3869 = vld [vmem:[#allocation2 + $0x80] sm:$0xf]
        %v3870 = vld [vmem:[#allocation2 + $0x84] sm:$0xff]
        %v3871 = vld [vmem:[#allocation2 + $0x8c] sm:$0xf]
        %v3872 = vld [vmem:[#allocation2 + $0x90] sm:$0xff]
        %v3873 = vld [vmem:[#allocation2 + $0x98] sm:$0xf]
        %v3874 = vld [vmem:[#allocation2 + $0x9c] sm:$0xff]
        %v3875 = vld [vmem:[#allocation2 + $0xa4] sm:$0xf]
        %v3876 = vld [vmem:[#allocation2 + $0xa8] sm:$0xff]
        %v3877 = vld [vmem:[#allocation2 + $0xb0] sm:$0xf]
        %v3878 = vld [vmem:[#allocation2 + $0xb4] sm:$0xff]
        %v3879 = vld [vmem:[#allocation2 + $0xbc] sm:$0xf]
        %v3880 = vld [vmem:[#allocation2 + $0xc0] sm:$0xff]
        %v3881 = vld [vmem:[#allocation2 + $0xc8] sm:$0xf]
        %v3882 = vld [vmem:[#allocation2 + $0xcc] sm:$0xff]
        %v3883 = vld [vmem:[#allocation2 + $0xd4] sm:$0xf]
        %v3884 = vld [vmem:[#allocation2 + $0xd8] sm:$0xff]
        %v3885 = vld [vmem:[#allocation2 + $0xe0] sm:$0xf]
        %v3886 = vld [vmem:[#allocation2 + $0xe4] sm:$0xff]
        %v3887 = vld [vmem:[#allocation2 + $0xec] sm:$0xf]
        %v3888 = vld [vmem:[#allocation2 + $0xf0] sm:$0xff]
        %v3889 = vld [vmem:[#allocation2 + $0xf8] sm:$0xf]
        %v3890 = vld [vmem:[#allocation2 + $0xfc] sm:$0xff]
        %v3891 = vld [vmem:[#allocation2 + $0x104] sm:$0xf]
        %v3892 = vld [vmem:[#allocation2 + $0x108] sm:$0xff]
        %v3893 = vld [vmem:[#allocation2 + $0x110] sm:$0xf]
        %v3894 = vld [vmem:[#allocation2 + $0x114] sm:$0xff]
        %v3895 = vld [vmem:[#allocation2 + $0x11c] sm:$0xf]
        %v3896 = vld [vmem:[#allocation2 + $0x120] sm:$0xff]
        %v3897 = vld [vmem:[#allocation2 + $0x128] sm:$0xf]
        %v3898 = vld [vmem:[#allocation2 + $0x12c] sm:$0xff]
        %v3899 = vld [vmem:[#allocation2 + $0x134] sm:$0xf]
        %v3900 = vld [vmem:[#allocation2 + $0x138] sm:$0xff]
        %v3901 = vld [vmem:[#allocation2 + $0x140] sm:$0xf]
        %v3902 = vld [vmem:[#allocation2 + $0x144] sm:$0xff]
        %v3903 = vld [vmem:[#allocation2 + $0x14c] sm:$0xf]
        %v3904 = vld [vmem:[#allocation2 + $0x150] sm:$0xff]
        %v3905 = vld [vmem:[#allocation2 + $0x158] sm:$0xf]
        %v3906 = vld [vmem:[#allocation2 + $0x15c] sm:$0xff]
        %v3907 = vld [vmem:[#allocation2 + $0x164] sm:$0xf]
        %v3908 = vld [vmem:[#allocation2 + $0x168] sm:$0xff]
        %v3909 = vld [vmem:[#allocation2 + $0x170] sm:$0xf]
        %v3910 = vld [vmem:[#allocation2 + $0x174] sm:$0xff]
        %v3911 = vld [vmem:[#allocation2 + $0x17c] sm:$0xf]
        %v3912 = vld [vmem:[#allocation10] sm:$0xf]
        %v3913 = vld [vmem:[#allocation10 + $0x4] sm:$0xf]
        %v3914 = vld [vmem:[#allocation10 + $0x8] sm:$0xf]
        %v3915 = vld [vmem:[#allocation10 + $0xc] sm:$0xf]
        %v3916 = vld [vmem:[#allocation10 + $0x10] sm:$0xf]
        %v3917 = vld [vmem:[#allocation10 + $0x14] sm:$0xf]
        %v3918 = vld [vmem:[#allocation10 + $0x18] sm:$0xf]
        %v3919 = vld [vmem:[#allocation10 + $0x1c] sm:$0xf]
        %v3920 = vld [vmem:[#allocation10 + $0x20] sm:$0xf]
        %v3921 = vld [vmem:[#allocation10 + $0x24] sm:$0xf]
        %v3922 = vld [vmem:[#allocation10 + $0x28] sm:$0xf]
        %v3923 = vld [vmem:[#allocation10 + $0x2c] sm:$0xf]
        %v3924 = vld [vmem:[#allocation10 + $0x30] sm:$0xf]
        %v3925 = vld [vmem:[#allocation10 + $0x34] sm:$0xf]
        %v3926 = vld [vmem:[#allocation10 + $0x38] sm:$0xf]
        %v3927 = vld [vmem:[#allocation10 + $0x3c] sm:$0xf]
        %v3928 = vld [vmem:[#allocation10 + $0x40] sm:$0xf]
        %v3929 = vld [vmem:[#allocation10 + $0x44] sm:$0xf]
        %v3930 = vld [vmem:[#allocation10 + $0x48] sm:$0xf]
        %v3931 = vld [vmem:[#allocation10 + $0x4c] sm:$0xf]
        %v3932 = vld [vmem:[#allocation10 + $0x50] sm:$0xf]
        %v3933 = vld [vmem:[#allocation10 + $0x54] sm:$0xf]
        %v3934 = vld [vmem:[#allocation10 + $0x58] sm:$0xf]
        %v3935 = vld [vmem:[#allocation10 + $0x5c] sm:$0xf]
        %v3936 = vld [vmem:[#allocation10 + $0x60] sm:$0xf]
        %v3937 = vld [vmem:[#allocation10 + $0x64] sm:$0xf]
        %v3938 = vld [vmem:[#allocation10 + $0x68] sm:$0xf]
        %v3939 = vld [vmem:[#allocation10 + $0x6c] sm:$0xf]
        %v3940 = vld [vmem:[#allocation10 + $0x70] sm:$0xf]
        %v3941 = vld [vmem:[#allocation10 + $0x74] sm:$0xf]
        %v3942 = vld [vmem:[#allocation10 + $0x78] sm:$0xf]
        %v3943 = vld [vmem:[#allocation10 + $0x7c] sm:$0xf]
        %v3944 = vld [vmem:[#allocation10 + $0x80] sm:$0xf]
        %v3945 = vld [vmem:[#allocation10 + $0x84] sm:$0xf]
        %v3946 = vld [vmem:[#allocation10 + $0x88] sm:$0xf]
        %v3947 = vld [vmem:[#allocation10 + $0x8c] sm:$0xf]
        %v3948 = vld [vmem:[#allocation10 + $0x90] sm:$0xf]
        %v3949 = vld [vmem:[#allocation10 + $0x94] sm:$0xf]
        %v3950 = vld [vmem:[#allocation10 + $0x98] sm:$0xf]
        %v3951 = vld [vmem:[#allocation10 + $0x9c] sm:$0xf]
        %v3952 = vld [vmem:[#allocation10 + $0xa0] sm:$0xf]
        %v3953 = vld [vmem:[#allocation10 + $0xa4] sm:$0xf]
        %v3954 = vld [vmem:[#allocation10 + $0xa8] sm:$0xf]
        %v3955 = vld [vmem:[#allocation10 + $0xac] sm:$0xf]
        %v3956 = vld [vmem:[#allocation10 + $0xb0] sm:$0xf]
        %v3957 = vld [vmem:[#allocation10 + $0xb4] sm:$0xf]
        %v3958 = vld [vmem:[#allocation10 + $0xb8] sm:$0xf]
        %v3959 = vld [vmem:[#allocation10 + $0xbc] sm:$0xf]
        %v3960 = vld [vmem:[#allocation2 + $0x180] sm:$0xff]
        %v3961 = vld [vmem:[#allocation2 + $0x188] sm:$0xf]
        %v3962 = vld [vmem:[#allocation2 + $0x18c] sm:$0xff]
        %v3963 = vld [vmem:[#allocation2 + $0x194] sm:$0xf]
        %s3964 = scalar_lea.vmem [#allocation10], 192
        %v3965 = vld [vmem:[%s3964] sm:$0xf]
        %v3966 = vld [vmem:[%s3964 + $0x4] sm:$0xf]
        %v3967 = vld [vmem:[%s3964 + $0x8] sm:$0xf]
        %v3968 = vld [vmem:[%s3964 + $0xc] sm:$0xf]
        %v3969 = vld [vmem:[%s3964 + $0x10] sm:$0xf]
        %v3970 = vld [vmem:[%s3964 + $0x14] sm:$0xf]
        %v3971 = vld [vmem:[%s3964 + $0x18] sm:$0xf]
        %v3972 = vld [vmem:[%s3964 + $0x1c] sm:$0xf]
        %v3973 = vld [vmem:[%s3964 + $0x20] sm:$0xf]
        %v3974 = vld [vmem:[%s3964 + $0x24] sm:$0xf]
        %v3975 = vld [vmem:[%s3964 + $0x28] sm:$0xf]
        %v3976 = vld [vmem:[%s3964 + $0x2c] sm:$0xf]
        %v3977 = vld [vmem:[%s3964 + $0x30] sm:$0xf]
        %v3978 = vld [vmem:[%s3964 + $0x34] sm:$0xf]
        %v3979 = vld [vmem:[%s3964 + $0x38] sm:$0xf]
        %v3980 = vld [vmem:[%s3964 + $0x3c] sm:$0xf]
        %v3981 = vld [vmem:[%s3964 + $0x40] sm:$0xf]
        %v3982 = vld [vmem:[%s3964 + $0x44] sm:$0xf]
        %v3983 = vld [vmem:[%s3964 + $0x48] sm:$0xf]
        %v3984 = vld [vmem:[%s3964 + $0x4c] sm:$0xf]
        %v3985 = vld [vmem:[%s3964 + $0x50] sm:$0xf]
        %v3986 = vld [vmem:[%s3964 + $0x54] sm:$0xf]
        %v3987 = vld [vmem:[%s3964 + $0x58] sm:$0xf]
        %v3988 = vld [vmem:[%s3964 + $0x5c] sm:$0xf]
        %v3989 = vld [vmem:[%s3964 + $0x60] sm:$0xf]
        %v3990 = vld [vmem:[%s3964 + $0x64] sm:$0xf]
        %v3991 = vld [vmem:[%s3964 + $0x68] sm:$0xf]
        %v3992 = vld [vmem:[%s3964 + $0x6c] sm:$0xf]
        %v3993 = vld [vmem:[%s3964 + $0x70] sm:$0xf]
        %v3994 = vld [vmem:[%s3964 + $0x74] sm:$0xf]
        %v3995 = vld [vmem:[%s3964 + $0x78] sm:$0xf]
        %v3996 = vld [vmem:[%s3964 + $0x7c] sm:$0xf]
        %v3997 = vld [vmem:[%s3964 + $0x80] sm:$0xf]
        %v3998 = vld [vmem:[%s3964 + $0x84] sm:$0xf]
        %v3999 = vld [vmem:[%s3964 + $0x88] sm:$0xf]
        %v4000 = vld [vmem:[%s3964 + $0x8c] sm:$0xf]
        %v4001 = vld [vmem:[%s3964 + $0x90] sm:$0xf]
        %v4002 = vld [vmem:[%s3964 + $0x94] sm:$0xf]
        %v4003 = vld [vmem:[%s3964 + $0x98] sm:$0xf]
        %v4004 = vld [vmem:[%s3964 + $0x9c] sm:$0xf]
        %v4005 = vld [vmem:[%s3964 + $0xa0] sm:$0xf]
        %v4006 = vld [vmem:[%s3964 + $0xa4] sm:$0xf]
        %v4007 = vld [vmem:[%s3964 + $0xa8] sm:$0xf]
        %v4008 = vld [vmem:[%s3964 + $0xac] sm:$0xf]
        %v4009 = vld [vmem:[%s3964 + $0xb0] sm:$0xf]
        %v4010 = vld [vmem:[%s3964 + $0xb4] sm:$0xf]
        %v4011 = vld [vmem:[%s3964 + $0xb8] sm:$0xf]
        %v4012 = vld [vmem:[%s3964 + $0xbc] sm:$0xf]
        %v4077 = vunpack.c.l.b16 %v3852
        %v4078 = vunpack.c.h.b16 %v3852
        %v4079 = vunpack.c.l.b16 %v3853
        %v4080 = vunpack.c.l.b16 %v3854
        %v4081 = vunpack.c.h.b16 %v3854
        %v4082 = vunpack.c.l.b16 %v3855
        %v4083 = vunpack.c.l.b16 %v3856
        %v4084 = vunpack.c.h.b16 %v3856
        %v4085 = vunpack.c.l.b16 %v3857
        %v4086 = vunpack.c.l.b16 %v3858
        %v4087 = vunpack.c.h.b16 %v3858
        %v4088 = vunpack.c.l.b16 %v3859
        %v4089 = vunpack.c.l.b16 %v3860
        %v4090 = vunpack.c.h.b16 %v3860
        %v4091 = vunpack.c.l.b16 %v3861
        %v4092 = vunpack.c.l.b16 %v3862
        %v4093 = vunpack.c.h.b16 %v3862
        %v4094 = vunpack.c.l.b16 %v3863
        %v4095 = vunpack.c.l.b16 %v3864
        %v4096 = vunpack.c.h.b16 %v3864
        %v4097 = vunpack.c.l.b16 %v3865
        %v4098 = vunpack.c.l.b16 %v3866
        %v4099 = vunpack.c.h.b16 %v3866
        %v4100 = vunpack.c.l.b16 %v3867
        %v4101 = vunpack.c.l.b16 %v3868
        %v4102 = vunpack.c.h.b16 %v3868
        %v4103 = vunpack.c.l.b16 %v3869
        %v4104 = vunpack.c.l.b16 %v3870
        %v4105 = vunpack.c.h.b16 %v3870
        %v4106 = vunpack.c.l.b16 %v3871
        %v4107 = vunpack.c.l.b16 %v3872
        %v4108 = vunpack.c.h.b16 %v3872
        %v4109 = vunpack.c.l.b16 %v3873
        %v4110 = vunpack.c.l.b16 %v3874
        %v4111 = vunpack.c.h.b16 %v3874
        %v4112 = vunpack.c.l.b16 %v3875
        %v4113 = vunpack.c.l.b16 %v3876
        %v4114 = vunpack.c.h.b16 %v3876
        %v4115 = vunpack.c.l.b16 %v3877
        %v4116 = vunpack.c.l.b16 %v3878
        %v4117 = vunpack.c.h.b16 %v3878
        %v4118 = vunpack.c.l.b16 %v3879
        %v4119 = vunpack.c.l.b16 %v3880
        %v4120 = vunpack.c.h.b16 %v3880
        %v4121 = vunpack.c.l.b16 %v3881
        %v4122 = vunpack.c.l.b16 %v3882
        %v4123 = vunpack.c.h.b16 %v3882
        %v4124 = vunpack.c.l.b16 %v3883
        %v4125 = vunpack.c.l.b16 %v3884
        %v4126 = vunpack.c.h.b16 %v3884
        %v4127 = vunpack.c.l.b16 %v3885
        %v4128 = vunpack.c.l.b16 %v3886
        %v4129 = vunpack.c.h.b16 %v3886
        %v4130 = vunpack.c.l.b16 %v3887
        %v4131 = vunpack.c.l.b16 %v3888
        %v4132 = vunpack.c.h.b16 %v3888
        %v4133 = vunpack.c.l.b16 %v3889
        %v4134 = vunpack.c.l.b16 %v3890
        %v4135 = vunpack.c.h.b16 %v3890
        %v4136 = vunpack.c.l.b16 %v3891
        %v4137 = vunpack.c.l.b16 %v3892
        %v4138 = vunpack.c.h.b16 %v3892
        %v4139 = vunpack.c.l.b16 %v3893
        %v4140 = vunpack.c.l.b16 %v3894
        %v4141 = vunpack.c.h.b16 %v3894
        %v4142 = vunpack.c.l.b16 %v3895
        %v4143 = vunpack.c.l.b16 %v3896
        %v4144 = vunpack.c.h.b16 %v3896
        %v4145 = vunpack.c.l.b16 %v3897
        %v4146 = vunpack.c.l.b16 %v3898
        %v4147 = vunpack.c.h.b16 %v3898
        %v4148 = vunpack.c.l.b16 %v3899
        %v4149 = vunpack.c.l.b16 %v3900
        %v4150 = vunpack.c.h.b16 %v3900
        %v4151 = vunpack.c.l.b16 %v3901
        %v4152 = vunpack.c.l.b16 %v3902
        %v4153 = vunpack.c.h.b16 %v3902
        %v4154 = vunpack.c.l.b16 %v3903
        %v4155 = vunpack.c.l.b16 %v3904
        %v4156 = vunpack.c.h.b16 %v3904
        %v4157 = vunpack.c.l.b16 %v3905
        %v4158 = vunpack.c.l.b16 %v3906
        %v4159 = vunpack.c.h.b16 %v3906
        %v4160 = vunpack.c.l.b16 %v3907
        %v4161 = vunpack.c.l.b16 %v3908
        %v4162 = vunpack.c.h.b16 %v3908
        %v4163 = vunpack.c.l.b16 %v3909
        %v4164 = vunpack.c.l.b16 %v3910
        %v4165 = vunpack.c.h.b16 %v3910
        %v4166 = vunpack.c.l.b16 %v3911
        %v4167 = vunpack.c.l.b16 %v3960
        %v4168 = vunpack.c.h.b16 %v3960
        %v4169 = vunpack.c.l.b16 %v3961
        %v4170 = vunpack.c.l.b16 %v3962
        %v4171 = vunpack.c.h.b16 %v3962
        %v4172 = vunpack.c.l.b16 %v3963
        %v4173 = vpack.c.b16 %v4080, %v4077
        %v4174 = vpack.c.b16 %v4081, %v4078
        %v4175 = vpack.c.b16 %v4082, %v4079
        %v4176 = vpack.c.b16 %v4086, %v4083
        %v4177 = vpack.c.b16 %v4087, %v4084
        %v4178 = vpack.c.b16 %v4088, %v4085
        %v4179 = vpack.c.b16 %v4092, %v4089
        %v4180 = vpack.c.b16 %v4093, %v4090
        %v4181 = vpack.c.b16 %v4094, %v4091
        %v4182 = vpack.c.b16 %v4098, %v4095
        %v4183 = vpack.c.b16 %v4099, %v4096
        %v4184 = vpack.c.b16 %v4100, %v4097
        %v4185 = vpack.c.b16 %v4104, %v4101
        %v4186 = vpack.c.b16 %v4105, %v4102
        %v4187 = vpack.c.b16 %v4106, %v4103
        %v4188 = vpack.c.b16 %v4110, %v4107
        %v4189 = vpack.c.b16 %v4111, %v4108
        %v4190 = vpack.c.b16 %v4112, %v4109
        %v4191 = vpack.c.b16 %v4116, %v4113
        %v4192 = vpack.c.b16 %v4117, %v4114
        %v4193 = vpack.c.b16 %v4118, %v4115
        %v4194 = vpack.c.b16 %v4122, %v4119
        %v4195 = vpack.c.b16 %v4123, %v4120
        %v4196 = vpack.c.b16 %v4124, %v4121
        %v4197 = vpack.c.b16 %v4128, %v4125
        %v4198 = vpack.c.b16 %v4129, %v4126
        %v4199 = vpack.c.b16 %v4130, %v4127
        %v4200 = vpack.c.b16 %v4134, %v4131
        %v4201 = vpack.c.b16 %v4135, %v4132
        %v4202 = vpack.c.b16 %v4136, %v4133
        %v4203 = vpack.c.b16 %v4140, %v4137
        %v4204 = vpack.c.b16 %v4141, %v4138
        %v4205 = vpack.c.b16 %v4142, %v4139
        %v4206 = vpack.c.b16 %v4146, %v4143
        %v4207 = vpack.c.b16 %v4147, %v4144
        %v4208 = vpack.c.b16 %v4148, %v4145
        %v4209 = vpack.c.b16 %v4152, %v4149
        %v4210 = vpack.c.b16 %v4153, %v4150
        %v4211 = vpack.c.b16 %v4154, %v4151
        %v4212 = vpack.c.b16 %v4158, %v4155
        %v4213 = vpack.c.b16 %v4159, %v4156
        %v4214 = vpack.c.b16 %v4160, %v4157
        %v4215 = vpack.c.b16 %v4164, %v4161
        %v4216 = vpack.c.b16 %v4165, %v4162
        %v4217 = vpack.c.b16 %v4166, %v4163
        %v4218 = vpack.c.b16 %v4170, %v4167
        %v4219 = vpack.c.b16 %v4171, %v4168
        %v4220 = vpack.c.b16 %v4172, %v4169
        %v4317 = vunpack.c.l.b16 %v3965
        %v4318 = vunpack.c.l.b16 %v3966
        %v4319 = vunpack.c.l.b16 %v3967
        %v4320 = vunpack.c.l.b16 %v3968
        %v4321 = vunpack.c.l.b16 %v3969
        %v4322 = vunpack.c.l.b16 %v3970
        %v4323 = vunpack.c.l.b16 %v3971
        %v4324 = vunpack.c.l.b16 %v3972
        %v4325 = vunpack.c.l.b16 %v3973
        %v4326 = vunpack.c.l.b16 %v3974
        %v4327 = vunpack.c.l.b16 %v3975
        %v4328 = vunpack.c.l.b16 %v3976
        %v4329 = vunpack.c.l.b16 %v3977
        %v4330 = vunpack.c.l.b16 %v3978
        %v4331 = vunpack.c.l.b16 %v3979
        %v4332 = vunpack.c.l.b16 %v3980
        %v4333 = vunpack.c.l.b16 %v3981
        %v4334 = vunpack.c.l.b16 %v3982
        %v4335 = vunpack.c.l.b16 %v3983
        %v4336 = vunpack.c.l.b16 %v3984
        %v4337 = vunpack.c.l.b16 %v3985
        %v4338 = vunpack.c.l.b16 %v3986
        %v4339 = vunpack.c.l.b16 %v3987
        %v4340 = vunpack.c.l.b16 %v3988
        %v4341 = vunpack.c.l.b16 %v3989
        %v4342 = vunpack.c.l.b16 %v3990
        %v4343 = vunpack.c.l.b16 %v3991
        %v4344 = vunpack.c.l.b16 %v3992
        %v4345 = vunpack.c.l.b16 %v3993
        %v4346 = vunpack.c.l.b16 %v3994
        %v4347 = vunpack.c.l.b16 %v3995
        %v4348 = vunpack.c.l.b16 %v3996
        %v4349 = vunpack.c.l.b16 %v3997
        %v4350 = vunpack.c.l.b16 %v3998
        %v4351 = vunpack.c.l.b16 %v3999
        %v4352 = vunpack.c.l.b16 %v4000
        %v4353 = vunpack.c.l.b16 %v4001
        %v4354 = vunpack.c.l.b16 %v4002
        %v4355 = vunpack.c.l.b16 %v4003
        %v4356 = vunpack.c.l.b16 %v4004
        %v4357 = vunpack.c.l.b16 %v4005
        %v4358 = vunpack.c.l.b16 %v4006
        %v4359 = vunpack.c.l.b16 %v4007
        %v4360 = vunpack.c.l.b16 %v4008
        %v4361 = vunpack.c.l.b16 %v4009
        %v4362 = vunpack.c.l.b16 %v4010
        %v4363 = vunpack.c.l.b16 %v4011
        %v4364 = vunpack.c.l.b16 %v4012
        %v4365 = vpack.c.b16 %v4318, %v4317
        %v4366 = vpack.c.b16 %v4320, %v4319
        %v4367 = vpack.c.b16 %v4322, %v4321
        %v4368 = vpack.c.b16 %v4324, %v4323
        %v4369 = vpack.c.b16 %v4326, %v4325
        %v4370 = vpack.c.b16 %v4328, %v4327
        %v4371 = vpack.c.b16 %v4330, %v4329
        %v4372 = vpack.c.b16 %v4332, %v4331
        %v4373 = vpack.c.b16 %v4334, %v4333
        %v4374 = vpack.c.b16 %v4336, %v4335
        %v4375 = vpack.c.b16 %v4338, %v4337
        %v4376 = vpack.c.b16 %v4340, %v4339
        %v4377 = vpack.c.b16 %v4342, %v4341
        %v4378 = vpack.c.b16 %v4344, %v4343
        %v4379 = vpack.c.b16 %v4346, %v4345
        %v4380 = vpack.c.b16 %v4348, %v4347
        %v4381 = vpack.c.b16 %v4350, %v4349
        %v4382 = vpack.c.b16 %v4352, %v4351
        %v4383 = vpack.c.b16 %v4354, %v4353
        %v4384 = vpack.c.b16 %v4356, %v4355
        %v4385 = vpack.c.b16 %v4358, %v4357
        %v4386 = vpack.c.b16 %v4360, %v4359
        %v4387 = vpack.c.b16 %v4362, %v4361
        %v4388 = vpack.c.b16 %v4364, %v4363
        %4413 = vmatpush.bf16.msra.mxu0 %v4372
        %4414 = vmatpush.bf16.msra.mxu0 %v4371
        %4415 = vmatpush.bf16.msra.mxu0 %v4370
        %4416 = vmatpush.bf16.msra.mxu0 %v4369
        %4417 = vmatpush.bf16.msra.mxu0 %v4368
        %4418 = vmatpush.bf16.msra.mxu0 %v4367
        %4419 = vmatpush.bf16.msra.mxu0 %v4366
        %4420 = vmatpush.bf16.msra.mxu0 %v4365
        %4421 = vmatmul.bf16.gmra.mxu0 %v4173
        %v4422 = vpop.f32.mrf.mxu0
        %v4423 = vadd.f32 0.0, %v4422
        %v4424 = vpop.f32.mrf.mxu0
        %v4425 = vadd.f32 0.0, %v4424
        %4426 = vmatmul.bf16.gmra.mxu0 %v4176
        %v4427 = vpop.f32.mrf.mxu0
        %v4428 = vadd.f32 0.0, %v4427
        %v4429 = vpop.f32.mrf.mxu0
        %v4430 = vadd.f32 0.0, %v4429
        %4431 = vmatmul.bf16.gmra.mxu0 %v4179
        %v4432 = vpop.f32.mrf.mxu0
        %v4433 = vadd.f32 0.0, %v4432
        %v4434 = vpop.f32.mrf.mxu0
        %v4435 = vadd.f32 0.0, %v4434
        %4436 = vmatmul.bf16.gmra.mxu0 %v4182
        %v4437 = vpop.f32.mrf.mxu0
        %v4438 = vadd.f32 0.0, %v4437
        %v4439 = vpop.f32.mrf.mxu0
        %v4440 = vadd.f32 0.0, %v4439
        %4441 = vmatmul.bf16.gmra.mxu0 %v4185
        %v4442 = vpop.f32.mrf.mxu0
        %v4443 = vadd.f32 0.0, %v4442
        %v4444 = vpop.f32.mrf.mxu0
        %v4445 = vadd.f32 0.0, %v4444
        %4446 = vmatmul.bf16.gmra.mxu0 %v4188
        %v4447 = vpop.f32.mrf.mxu0
        %v4448 = vadd.f32 0.0, %v4447
        %v4449 = vpop.f32.mrf.mxu0
        %v4450 = vadd.f32 0.0, %v4449
        %4451 = vmatmul.bf16.gmra.mxu0 %v4191
        %v4452 = vpop.f32.mrf.mxu0
        %v4453 = vadd.f32 0.0, %v4452
        %v4454 = vpop.f32.mrf.mxu0
        %v4455 = vadd.f32 0.0, %v4454
        %4456 = vmatmul.bf16.gmra.mxu0 %v4194
        %v4457 = vpop.f32.mrf.mxu0
        %v4458 = vadd.f32 0.0, %v4457
        %v4459 = vpop.f32.mrf.mxu0
        %v4460 = vadd.f32 0.0, %v4459
        %4461 = vmatmul.bf16.gmra.mxu0 %v4197
        %v4462 = vpop.f32.mrf.mxu0
        %v4463 = vadd.f32 0.0, %v4462
        %v4464 = vpop.f32.mrf.mxu0
        %v4465 = vadd.f32 0.0, %v4464
        %4466 = vmatmul.bf16.gmra.mxu0 %v4200
        %v4467 = vpop.f32.mrf.mxu0
        %v4468 = vadd.f32 0.0, %v4467
        %v4469 = vpop.f32.mrf.mxu0
        %v4470 = vadd.f32 0.0, %v4469
        %4471 = vmatmul.bf16.gmra.mxu0 %v4203
        %v4472 = vpop.f32.mrf.mxu0
        %v4473 = vadd.f32 0.0, %v4472
        %v4474 = vpop.f32.mrf.mxu0
        %v4475 = vadd.f32 0.0, %v4474
        %4476 = vmatmul.bf16.gmra.mxu0 %v4206
        %v4477 = vpop.f32.mrf.mxu0
        %v4478 = vadd.f32 0.0, %v4477
        %v4479 = vpop.f32.mrf.mxu0
        %v4480 = vadd.f32 0.0, %v4479
        %4481 = vmatmul.bf16.gmra.mxu0 %v4209
        %v4482 = vpop.f32.mrf.mxu0
        %v4483 = vadd.f32 0.0, %v4482
        %v4484 = vpop.f32.mrf.mxu0
        %v4485 = vadd.f32 0.0, %v4484
        %4486 = vmatmul.bf16.gmra.mxu0 %v4212
        %v4487 = vpop.f32.mrf.mxu0
        %v4488 = vadd.f32 0.0, %v4487
        %v4489 = vpop.f32.mrf.mxu0
        %v4490 = vadd.f32 0.0, %v4489
        %4491 = vmatmul.bf16.gmra.mxu0 %v4215
        %v4492 = vpop.f32.mrf.mxu0
        %v4493 = vadd.f32 0.0, %v4492
        %v4494 = vpop.f32.mrf.mxu0
        %v4495 = vadd.f32 0.0, %v4494
        %4496 = vmatmul.bf16.gmra.mxu0 %v4218
        %v4497 = vpop.f32.mrf.mxu0
        %v4498 = vadd.f32 0.0, %v4497
        %v4499 = vpop.f32.mrf.mxu0
        %v4500 = vadd.f32 0.0, %v4499
        %4501 = vdwg.mxu0
        %4502 = vmatpush.bf16.msra.mxu0 %v4380
        %4503 = vmatpush.bf16.msra.mxu0 %v4379
        %4504 = vmatpush.bf16.msra.mxu0 %v4378
        %4505 = vmatpush.bf16.msra.mxu0 %v4377
        %4506 = vmatpush.bf16.msra.mxu0 %v4376
        %4507 = vmatpush.bf16.msra.mxu0 %v4375
        %4508 = vmatpush.bf16.msra.mxu0 %v4374
        %4509 = vmatpush.bf16.msra.mxu0 %v4373
        %4510 = vmatmul.bf16.gmra.mxu0 %v4174
        %v4511 = vpop.f32.mrf.mxu0
        %v4512 = vadd.f32 %v4423, %v4511
        %v4513 = vpop.f32.mrf.mxu0
        %v4514 = vadd.f32 %v4425, %v4513
        %4515 = vmatmul.bf16.gmra.mxu0 %v4177
        %v4516 = vpop.f32.mrf.mxu0
        %v4517 = vadd.f32 %v4428, %v4516
        %v4518 = vpop.f32.mrf.mxu0
        %v4519 = vadd.f32 %v4430, %v4518
        %4520 = vmatmul.bf16.gmra.mxu0 %v4180
        %v4521 = vpop.f32.mrf.mxu0
        %v4522 = vadd.f32 %v4433, %v4521
        %v4523 = vpop.f32.mrf.mxu0
        %v4524 = vadd.f32 %v4435, %v4523
        %4525 = vmatmul.bf16.gmra.mxu0 %v4183
        %v4526 = vpop.f32.mrf.mxu0
        %v4527 = vadd.f32 %v4438, %v4526
        %v4528 = vpop.f32.mrf.mxu0
        %v4529 = vadd.f32 %v4440, %v4528
        %4530 = vmatmul.bf16.gmra.mxu0 %v4186
        %v4531 = vpop.f32.mrf.mxu0
        %v4532 = vadd.f32 %v4443, %v4531
        %v4533 = vpop.f32.mrf.mxu0
        %v4534 = vadd.f32 %v4445, %v4533
        %4535 = vmatmul.bf16.gmra.mxu0 %v4189
        %v4536 = vpop.f32.mrf.mxu0
        %v4537 = vadd.f32 %v4448, %v4536
        %v4538 = vpop.f32.mrf.mxu0
        %v4539 = vadd.f32 %v4450, %v4538
        %4540 = vmatmul.bf16.gmra.mxu0 %v4192
        %v4541 = vpop.f32.mrf.mxu0
        %v4542 = vadd.f32 %v4453, %v4541
        %v4543 = vpop.f32.mrf.mxu0
        %v4544 = vadd.f32 %v4455, %v4543
        %4545 = vmatmul.bf16.gmra.mxu0 %v4195
        %v4546 = vpop.f32.mrf.mxu0
        %v4547 = vadd.f32 %v4458, %v4546
        %v4548 = vpop.f32.mrf.mxu0
        %v4549 = vadd.f32 %v4460, %v4548
        %4550 = vmatmul.bf16.gmra.mxu0 %v4198
        %v4551 = vpop.f32.mrf.mxu0
        %v4552 = vadd.f32 %v4463, %v4551
        %v4553 = vpop.f32.mrf.mxu0
        %v4554 = vadd.f32 %v4465, %v4553
        %4555 = vmatmul.bf16.gmra.mxu0 %v4201
        %v4556 = vpop.f32.mrf.mxu0
        %v4557 = vadd.f32 %v4468, %v4556
        %v4558 = vpop.f32.mrf.mxu0
        %v4559 = vadd.f32 %v4470, %v4558
        %4560 = vmatmul.bf16.gmra.mxu0 %v4204
        %v4561 = vpop.f32.mrf.mxu0
        %v4562 = vadd.f32 %v4473, %v4561
        %v4563 = vpop.f32.mrf.mxu0
        %v4564 = vadd.f32 %v4475, %v4563
        %4565 = vmatmul.bf16.gmra.mxu0 %v4207
        %v4566 = vpop.f32.mrf.mxu0
        %v4567 = vadd.f32 %v4478, %v4566
        %v4568 = vpop.f32.mrf.mxu0
        %v4569 = vadd.f32 %v4480, %v4568
        %4570 = vmatmul.bf16.gmra.mxu0 %v4210
        %v4571 = vpop.f32.mrf.mxu0
        %v4572 = vadd.f32 %v4483, %v4571
        %v4573 = vpop.f32.mrf.mxu0
        %v4574 = vadd.f32 %v4485, %v4573
        %4575 = vmatmul.bf16.gmra.mxu0 %v4213
        %v4576 = vpop.f32.mrf.mxu0
        %v4577 = vadd.f32 %v4488, %v4576
        %v4578 = vpop.f32.mrf.mxu0
        %v4579 = vadd.f32 %v4490, %v4578
        %4580 = vmatmul.bf16.gmra.mxu0 %v4216
        %v4581 = vpop.f32.mrf.mxu0
        %v4582 = vadd.f32 %v4493, %v4581
        %v4583 = vpop.f32.mrf.mxu0
        %v4584 = vadd.f32 %v4495, %v4583
        %4585 = vmatmul.bf16.gmra.mxu0 %v4219
        %v4586 = vpop.f32.mrf.mxu0
        %v4587 = vadd.f32 %v4498, %v4586
        %v4588 = vpop.f32.mrf.mxu0
        %v4589 = vadd.f32 %v4500, %v4588
        %4590 = vdwg.mxu0
        %4591 = vmatpush.bf16.msra.mxu0 %v4388
        %4592 = vmatpush.bf16.msra.mxu0 %v4387
        %4593 = vmatpush.bf16.msra.mxu0 %v4386
        %4594 = vmatpush.bf16.msra.mxu0 %v4385
        %4595 = vmatpush.bf16.msra.mxu0 %v4384
        %4596 = vmatpush.bf16.msra.mxu0 %v4383
        %4597 = vmatpush.bf16.msra.mxu0 %v4382
        %4598 = vmatpush.bf16.msra.mxu0 %v4381
        %4599 = vmatmul.bf16.gmra.mxu0 %v4175
        %v4600 = vpop.f32.mrf.mxu0
        %v4601 = vadd.f32 %v4512, %v4600
        %v4602 = vpop.f32.mrf.mxu0
        %v4603 = vadd.f32 %v4514, %v4602
        %4604 = vmatmul.bf16.gmra.mxu0 %v4178
        %v4605 = vpop.f32.mrf.mxu0
        %v4606 = vadd.f32 %v4517, %v4605
        %v4607 = vpop.f32.mrf.mxu0
        %v4608 = vadd.f32 %v4519, %v4607
        %4609 = vmatmul.bf16.gmra.mxu0 %v4181
        %v4610 = vpop.f32.mrf.mxu0
        %v4611 = vadd.f32 %v4522, %v4610
        %v4612 = vpop.f32.mrf.mxu0
        %v4613 = vadd.f32 %v4524, %v4612
        %4614 = vmatmul.bf16.gmra.mxu0 %v4184
        %v4615 = vpop.f32.mrf.mxu0
        %v4616 = vadd.f32 %v4527, %v4615
        %v4617 = vpop.f32.mrf.mxu0
        %v4618 = vadd.f32 %v4529, %v4617
        %4619 = vmatmul.bf16.gmra.mxu0 %v4187
        %v4620 = vpop.f32.mrf.mxu0
        %v4621 = vadd.f32 %v4532, %v4620
        %v4622 = vpop.f32.mrf.mxu0
        %v4623 = vadd.f32 %v4534, %v4622
        %4624 = vmatmul.bf16.gmra.mxu0 %v4190
        %v4625 = vpop.f32.mrf.mxu0
        %v4626 = vadd.f32 %v4537, %v4625
        %v4627 = vpop.f32.mrf.mxu0
        %v4628 = vadd.f32 %v4539, %v4627
        %4629 = vmatmul.bf16.gmra.mxu0 %v4193
        %v4630 = vpop.f32.mrf.mxu0
        %v4631 = vadd.f32 %v4542, %v4630
        %v4632 = vpop.f32.mrf.mxu0
        %v4633 = vadd.f32 %v4544, %v4632
        %4634 = vmatmul.bf16.gmra.mxu0 %v4196
        %v4635 = vpop.f32.mrf.mxu0
        %v4636 = vadd.f32 %v4547, %v4635
        %v4637 = vpop.f32.mrf.mxu0
        %v4638 = vadd.f32 %v4549, %v4637
        %4639 = vmatmul.bf16.gmra.mxu0 %v4199
        %v4640 = vpop.f32.mrf.mxu0
        %v4641 = vadd.f32 %v4552, %v4640
        %v4642 = vpop.f32.mrf.mxu0
        %v4643 = vadd.f32 %v4554, %v4642
        %4644 = vmatmul.bf16.gmra.mxu0 %v4202
        %v4645 = vpop.f32.mrf.mxu0
        %v4646 = vadd.f32 %v4557, %v4645
        %v4647 = vpop.f32.mrf.mxu0
        %v4648 = vadd.f32 %v4559, %v4647
        %4649 = vmatmul.bf16.gmra.mxu0 %v4205
        %v4650 = vpop.f32.mrf.mxu0
        %v4651 = vadd.f32 %v4562, %v4650
        %v4652 = vpop.f32.mrf.mxu0
        %v4653 = vadd.f32 %v4564, %v4652
        %4654 = vmatmul.bf16.gmra.mxu0 %v4208
        %v4655 = vpop.f32.mrf.mxu0
        %v4656 = vadd.f32 %v4567, %v4655
        %v4657 = vpop.f32.mrf.mxu0
        %v4658 = vadd.f32 %v4569, %v4657
        %4659 = vmatmul.bf16.gmra.mxu0 %v4211
        %v4660 = vpop.f32.mrf.mxu0
        %v4661 = vadd.f32 %v4572, %v4660
        %v4662 = vpop.f32.mrf.mxu0
        %v4663 = vadd.f32 %v4574, %v4662
        %4664 = vmatmul.bf16.gmra.mxu0 %v4214
        %v4665 = vpop.f32.mrf.mxu0
        %v4666 = vadd.f32 %v4577, %v4665
        %v4667 = vpop.f32.mrf.mxu0
        %v4668 = vadd.f32 %v4579, %v4667
        %4669 = vmatmul.bf16.gmra.mxu0 %v4217
        %v4670 = vpop.f32.mrf.mxu0
        %v4671 = vadd.f32 %v4582, %v4670
        %v4672 = vpop.f32.mrf.mxu0
        %v4673 = vadd.f32 %v4584, %v4672
        %4674 = vmatmul.bf16.gmra.mxu0 %v4220
        %v4675 = vpop.f32.mrf.mxu0
        %v4676 = vadd.f32 %v4587, %v4675
        %v4677 = vpop.f32.mrf.mxu0
        %v4678 = vadd.f32 %v4589, %v4677
        %4679 = vdwg.mxu0
        %v4684 = vunpack.c.l.b16 %v3848
        %v4685 = vunpack.c.h.b16 %v3848
        %v4686 = vunpack.c.l.b16 %v3849
        %v4687 = vunpack.c.l.b16 %v3850
        %v4688 = vunpack.c.h.b16 %v3850
        %v4689 = vunpack.c.l.b16 %v3851
        %v4690 = vpack.c.b16 %v4687, %v4684
        %v4691 = vpack.c.b16 %v4688, %v4685
        %v4692 = vpack.c.b16 %v4689, %v4686
        %v4744 = vunpack.c.l.b16 %v3912
        %v4745 = vunpack.c.l.b16 %v3913
        %v4746 = vunpack.c.l.b16 %v3914
        %v4747 = vunpack.c.l.b16 %v3915
        %v4748 = vunpack.c.l.b16 %v3916
        %v4749 = vunpack.c.l.b16 %v3917
        %v4750 = vunpack.c.l.b16 %v3918
        %v4751 = vunpack.c.l.b16 %v3919
        %v4752 = vunpack.c.l.b16 %v3920
        %v4753 = vunpack.c.l.b16 %v3921
        %v4754 = vunpack.c.l.b16 %v3922
        %v4755 = vunpack.c.l.b16 %v3923
        %v4756 = vunpack.c.l.b16 %v3924
        %v4757 = vunpack.c.l.b16 %v3925
        %v4758 = vunpack.c.l.b16 %v3926
        %v4759 = vunpack.c.l.b16 %v3927
        %v4760 = vunpack.c.l.b16 %v3928
        %v4761 = vunpack.c.l.b16 %v3929
        %v4762 = vunpack.c.l.b16 %v3930
        %v4763 = vunpack.c.l.b16 %v3931
        %v4764 = vunpack.c.l.b16 %v3932
        %v4765 = vunpack.c.l.b16 %v3933
        %v4766 = vunpack.c.l.b16 %v3934
        %v4767 = vunpack.c.l.b16 %v3935
        %v4768 = vunpack.c.l.b16 %v3936
        %v4769 = vunpack.c.l.b16 %v3937
        %v4770 = vunpack.c.l.b16 %v3938
        %v4771 = vunpack.c.l.b16 %v3939
        %v4772 = vunpack.c.l.b16 %v3940
        %v4773 = vunpack.c.l.b16 %v3941
        %v4774 = vunpack.c.l.b16 %v3942
        %v4775 = vunpack.c.l.b16 %v3943
        %v4776 = vunpack.c.l.b16 %v3944
        %v4777 = vunpack.c.l.b16 %v3945
        %v4778 = vunpack.c.l.b16 %v3946
        %v4779 = vunpack.c.l.b16 %v3947
        %v4780 = vunpack.c.l.b16 %v3948
        %v4781 = vunpack.c.l.b16 %v3949
        %v4782 = vunpack.c.l.b16 %v3950
        %v4783 = vunpack.c.l.b16 %v3951
        %v4784 = vunpack.c.l.b16 %v3952
        %v4785 = vunpack.c.l.b16 %v3953
        %v4786 = vunpack.c.l.b16 %v3954
        %v4787 = vunpack.c.l.b16 %v3955
        %v4788 = vunpack.c.l.b16 %v3956
        %v4789 = vunpack.c.l.b16 %v3957
        %v4790 = vunpack.c.l.b16 %v3958
        %v4791 = vunpack.c.l.b16 %v3959
        %v4792 = vpack.c.b16 %v4745, %v4744
        %v4793 = vpack.c.b16 %v4747, %v4746
        %v4794 = vpack.c.b16 %v4749, %v4748
        %v4795 = vpack.c.b16 %v4751, %v4750
        %v4796 = vpack.c.b16 %v4753, %v4752
        %v4797 = vpack.c.b16 %v4755, %v4754
        %v4798 = vpack.c.b16 %v4757, %v4756
        %v4799 = vpack.c.b16 %v4759, %v4758
        %v4800 = vpack.c.b16 %v4761, %v4760
        %v4801 = vpack.c.b16 %v4763, %v4762
        %v4802 = vpack.c.b16 %v4765, %v4764
        %v4803 = vpack.c.b16 %v4767, %v4766
        %v4804 = vpack.c.b16 %v4769, %v4768
        %v4805 = vpack.c.b16 %v4771, %v4770
        %v4806 = vpack.c.b16 %v4773, %v4772
        %v4807 = vpack.c.b16 %v4775, %v4774
        %v4808 = vpack.c.b16 %v4777, %v4776
        %v4809 = vpack.c.b16 %v4779, %v4778
        %v4810 = vpack.c.b16 %v4781, %v4780
        %v4811 = vpack.c.b16 %v4783, %v4782
        %v4812 = vpack.c.b16 %v4785, %v4784
        %v4813 = vpack.c.b16 %v4787, %v4786
        %v4814 = vpack.c.b16 %v4789, %v4788
        %v4815 = vpack.c.b16 %v4791, %v4790
        %4840 = vmatpush.bf16.msra.mxu0 %v4799
        %4841 = vmatpush.bf16.msra.mxu0 %v4798
        %4842 = vmatpush.bf16.msra.mxu0 %v4797
        %4843 = vmatpush.bf16.msra.mxu0 %v4796
        %4844 = vmatpush.bf16.msra.mxu0 %v4795
        %4845 = vmatpush.bf16.msra.mxu0 %v4794
        %4846 = vmatpush.bf16.msra.mxu0 %v4793
        %4847 = vmatpush.bf16.msra.mxu0 %v4792
        %4848 = vmatmul.bf16.gmra.mxu0 %v4690
        %v4849 = vpop.f32.mrf.mxu0
        %v4850 = vadd.f32 %v4601, %v4849
        %v4851 = vpop.f32.mrf.mxu0
        %v4852 = vadd.f32 %v4603, %v4851
        %4853 = vmatmul.bf16.gmra.mxu0 %v4173
        %v4854 = vpop.f32.mrf.mxu0
        %v4855 = vadd.f32 %v4606, %v4854
        %v4856 = vpop.f32.mrf.mxu0
        %v4857 = vadd.f32 %v4608, %v4856
        %4858 = vmatmul.bf16.gmra.mxu0 %v4176
        %v4859 = vpop.f32.mrf.mxu0
        %v4860 = vadd.f32 %v4611, %v4859
        %v4861 = vpop.f32.mrf.mxu0
        %v4862 = vadd.f32 %v4613, %v4861
        %4863 = vmatmul.bf16.gmra.mxu0 %v4179
        %v4864 = vpop.f32.mrf.mxu0
        %v4865 = vadd.f32 %v4616, %v4864
        %v4866 = vpop.f32.mrf.mxu0
        %v4867 = vadd.f32 %v4618, %v4866
        %4868 = vmatmul.bf16.gmra.mxu0 %v4182
        %v4869 = vpop.f32.mrf.mxu0
        %v4870 = vadd.f32 %v4621, %v4869
        %v4871 = vpop.f32.mrf.mxu0
        %v4872 = vadd.f32 %v4623, %v4871
        %4873 = vmatmul.bf16.gmra.mxu0 %v4185
        %v4874 = vpop.f32.mrf.mxu0
        %v4875 = vadd.f32 %v4626, %v4874
        %v4876 = vpop.f32.mrf.mxu0
        %v4877 = vadd.f32 %v4628, %v4876
        %4878 = vmatmul.bf16.gmra.mxu0 %v4188
        %v4879 = vpop.f32.mrf.mxu0
        %v4880 = vadd.f32 %v4631, %v4879
        %v4881 = vpop.f32.mrf.mxu0
        %v4882 = vadd.f32 %v4633, %v4881
        %4883 = vmatmul.bf16.gmra.mxu0 %v4191
        %v4884 = vpop.f32.mrf.mxu0
        %v4885 = vadd.f32 %v4636, %v4884
        %v4886 = vpop.f32.mrf.mxu0
        %v4887 = vadd.f32 %v4638, %v4886
        %4888 = vmatmul.bf16.gmra.mxu0 %v4194
        %v4889 = vpop.f32.mrf.mxu0
        %v4890 = vadd.f32 %v4641, %v4889
        %v4891 = vpop.f32.mrf.mxu0
        %v4892 = vadd.f32 %v4643, %v4891
        %4893 = vmatmul.bf16.gmra.mxu0 %v4197
        %v4894 = vpop.f32.mrf.mxu0
        %v4895 = vadd.f32 %v4646, %v4894
        %v4896 = vpop.f32.mrf.mxu0
        %v4897 = vadd.f32 %v4648, %v4896
        %4898 = vmatmul.bf16.gmra.mxu0 %v4200
        %v4899 = vpop.f32.mrf.mxu0
        %v4900 = vadd.f32 %v4651, %v4899
        %v4901 = vpop.f32.mrf.mxu0
        %v4902 = vadd.f32 %v4653, %v4901
        %4903 = vmatmul.bf16.gmra.mxu0 %v4203
        %v4904 = vpop.f32.mrf.mxu0
        %v4905 = vadd.f32 %v4656, %v4904
        %v4906 = vpop.f32.mrf.mxu0
        %v4907 = vadd.f32 %v4658, %v4906
        %4908 = vmatmul.bf16.gmra.mxu0 %v4206
        %v4909 = vpop.f32.mrf.mxu0
        %v4910 = vadd.f32 %v4661, %v4909
        %v4911 = vpop.f32.mrf.mxu0
        %v4912 = vadd.f32 %v4663, %v4911
        %4913 = vmatmul.bf16.gmra.mxu0 %v4209
        %v4914 = vpop.f32.mrf.mxu0
        %v4915 = vadd.f32 %v4666, %v4914
        %v4916 = vpop.f32.mrf.mxu0
        %v4917 = vadd.f32 %v4668, %v4916
        %4918 = vmatmul.bf16.gmra.mxu0 %v4212
        %v4919 = vpop.f32.mrf.mxu0
        %v4920 = vadd.f32 %v4671, %v4919
        %v4921 = vpop.f32.mrf.mxu0
        %v4922 = vadd.f32 %v4673, %v4921
        %4923 = vmatmul.bf16.gmra.mxu0 %v4215
        %v4924 = vpop.f32.mrf.mxu0
        %v4925 = vadd.f32 %v4676, %v4924
        %v4926 = vpop.f32.mrf.mxu0
        %v4927 = vadd.f32 %v4678, %v4926
        %4928 = vdwg.mxu0
        %4929 = vmatpush.bf16.msra.mxu0 %v4807
        %4930 = vmatpush.bf16.msra.mxu0 %v4806
        %4931 = vmatpush.bf16.msra.mxu0 %v4805
        %4932 = vmatpush.bf16.msra.mxu0 %v4804
        %4933 = vmatpush.bf16.msra.mxu0 %v4803
        %4934 = vmatpush.bf16.msra.mxu0 %v4802
        %4935 = vmatpush.bf16.msra.mxu0 %v4801
        %4936 = vmatpush.bf16.msra.mxu0 %v4800
        %4937 = vmatmul.bf16.gmra.mxu0 %v4691
        %v4938 = vpop.f32.mrf.mxu0
        %v4939 = vadd.f32 %v4850, %v4938
        %v4940 = vpop.f32.mrf.mxu0
        %v4941 = vadd.f32 %v4852, %v4940
        %4942 = vmatmul.bf16.gmra.mxu0 %v4174
        %v4943 = vpop.f32.mrf.mxu0
        %v4944 = vadd.f32 %v4855, %v4943
        %v4945 = vpop.f32.mrf.mxu0
        %v4946 = vadd.f32 %v4857, %v4945
        %4947 = vmatmul.bf16.gmra.mxu0 %v4177
        %v4948 = vpop.f32.mrf.mxu0
        %v4949 = vadd.f32 %v4860, %v4948
        %v4950 = vpop.f32.mrf.mxu0
        %v4951 = vadd.f32 %v4862, %v4950
        %4952 = vmatmul.bf16.gmra.mxu0 %v4180
        %v4953 = vpop.f32.mrf.mxu0
        %v4954 = vadd.f32 %v4865, %v4953
        %v4955 = vpop.f32.mrf.mxu0
        %v4956 = vadd.f32 %v4867, %v4955
        %4957 = vmatmul.bf16.gmra.mxu0 %v4183
        %v4958 = vpop.f32.mrf.mxu0
        %v4959 = vadd.f32 %v4870, %v4958
        %v4960 = vpop.f32.mrf.mxu0
        %v4961 = vadd.f32 %v4872, %v4960
        %4962 = vmatmul.bf16.gmra.mxu0 %v4186
        %v4963 = vpop.f32.mrf.mxu0
        %v4964 = vadd.f32 %v4875, %v4963
        %v4965 = vpop.f32.mrf.mxu0
        %v4966 = vadd.f32 %v4877, %v4965
        %4967 = vmatmul.bf16.gmra.mxu0 %v4189
        %v4968 = vpop.f32.mrf.mxu0
        %v4969 = vadd.f32 %v4880, %v4968
        %v4970 = vpop.f32.mrf.mxu0
        %v4971 = vadd.f32 %v4882, %v4970
        %4972 = vmatmul.bf16.gmra.mxu0 %v4192
        %v4973 = vpop.f32.mrf.mxu0
        %v4974 = vadd.f32 %v4885, %v4973
        %v4975 = vpop.f32.mrf.mxu0
        %v4976 = vadd.f32 %v4887, %v4975
        %4977 = vmatmul.bf16.gmra.mxu0 %v4195
        %v4978 = vpop.f32.mrf.mxu0
        %v4979 = vadd.f32 %v4890, %v4978
        %v4980 = vpop.f32.mrf.mxu0
        %v4981 = vadd.f32 %v4892, %v4980
        %4982 = vmatmul.bf16.gmra.mxu0 %v4198
        %v4983 = vpop.f32.mrf.mxu0
        %v4984 = vadd.f32 %v4895, %v4983
        %v4985 = vpop.f32.mrf.mxu0
        %v4986 = vadd.f32 %v4897, %v4985
        %4987 = vmatmul.bf16.gmra.mxu0 %v4201
        %v4988 = vpop.f32.mrf.mxu0
        %v4989 = vadd.f32 %v4900, %v4988
        %v4990 = vpop.f32.mrf.mxu0
        %v4991 = vadd.f32 %v4902, %v4990
        %4992 = vmatmul.bf16.gmra.mxu0 %v4204
        %v4993 = vpop.f32.mrf.mxu0
        %v4994 = vadd.f32 %v4905, %v4993
        %v4995 = vpop.f32.mrf.mxu0
        %v4996 = vadd.f32 %v4907, %v4995
        %4997 = vmatmul.bf16.gmra.mxu0 %v4207
        %v4998 = vpop.f32.mrf.mxu0
        %v4999 = vadd.f32 %v4910, %v4998
        %v5000 = vpop.f32.mrf.mxu0
        %v5001 = vadd.f32 %v4912, %v5000
        %5002 = vmatmul.bf16.gmra.mxu0 %v4210
        %v5003 = vpop.f32.mrf.mxu0
        %v5004 = vadd.f32 %v4915, %v5003
        %v5005 = vpop.f32.mrf.mxu0
        %v5006 = vadd.f32 %v4917, %v5005
        %5007 = vmatmul.bf16.gmra.mxu0 %v4213
        %v5008 = vpop.f32.mrf.mxu0
        %v5009 = vadd.f32 %v4920, %v5008
        %v5010 = vpop.f32.mrf.mxu0
        %v5011 = vadd.f32 %v4922, %v5010
        %5012 = vmatmul.bf16.gmra.mxu0 %v4216
        %v5013 = vpop.f32.mrf.mxu0
        %v5014 = vadd.f32 %v4925, %v5013
        %v5015 = vpop.f32.mrf.mxu0
        %v5016 = vadd.f32 %v4927, %v5015
        %5017 = vdwg.mxu0
        %5018 = vmatpush.bf16.msra.mxu0 %v4815
        %5019 = vmatpush.bf16.msra.mxu0 %v4814
        %5020 = vmatpush.bf16.msra.mxu0 %v4813
        %5021 = vmatpush.bf16.msra.mxu0 %v4812
        %5022 = vmatpush.bf16.msra.mxu0 %v4811
        %5023 = vmatpush.bf16.msra.mxu0 %v4810
        %5024 = vmatpush.bf16.msra.mxu0 %v4809
        %5025 = vmatpush.bf16.msra.mxu0 %v4808
        %5026 = vmatmul.bf16.gmra.mxu0 %v4692
        %v5027 = vpop.f32.mrf.mxu0
        %v5028 = vadd.f32 %v4939, %v5027
        %v5029 = vpop.f32.mrf.mxu0
        %v5030 = vadd.f32 %v4941, %v5029
        %5031 = vmatmul.bf16.gmra.mxu0 %v4175
        %v5032 = vpop.f32.mrf.mxu0
        %v5033 = vadd.f32 %v4944, %v5032
        %v5034 = vpop.f32.mrf.mxu0
        %v5035 = vadd.f32 %v4946, %v5034
        %5036 = vmatmul.bf16.gmra.mxu0 %v4178
        %v5037 = vpop.f32.mrf.mxu0
        %v5038 = vadd.f32 %v4949, %v5037
        %v5039 = vpop.f32.mrf.mxu0
        %v5040 = vadd.f32 %v4951, %v5039
        %5041 = vmatmul.bf16.gmra.mxu0 %v4181
        %v5042 = vpop.f32.mrf.mxu0
        %v5043 = vadd.f32 %v4954, %v5042
        %v5044 = vpop.f32.mrf.mxu0
        %v5045 = vadd.f32 %v4956, %v5044
        %5046 = vmatmul.bf16.gmra.mxu0 %v4184
        %v5047 = vpop.f32.mrf.mxu0
        %v5048 = vadd.f32 %v4959, %v5047
        %v5049 = vpop.f32.mrf.mxu0
        %v5050 = vadd.f32 %v4961, %v5049
        %5051 = vmatmul.bf16.gmra.mxu0 %v4187
        %v5052 = vpop.f32.mrf.mxu0
        %v5053 = vadd.f32 %v4964, %v5052
        %v5054 = vpop.f32.mrf.mxu0
        %v5055 = vadd.f32 %v4966, %v5054
        %5056 = vmatmul.bf16.gmra.mxu0 %v4190
        %v5057 = vpop.f32.mrf.mxu0
        %v5058 = vadd.f32 %v4969, %v5057
        %v5059 = vpop.f32.mrf.mxu0
        %v5060 = vadd.f32 %v4971, %v5059
        %5061 = vmatmul.bf16.gmra.mxu0 %v4193
        %v5062 = vpop.f32.mrf.mxu0
        %v5063 = vadd.f32 %v4974, %v5062
        %v5064 = vpop.f32.mrf.mxu0
        %v5065 = vadd.f32 %v4976, %v5064
        %5066 = vmatmul.bf16.gmra.mxu0 %v4196
        %v5067 = vpop.f32.mrf.mxu0
        %v5068 = vadd.f32 %v4979, %v5067
        %v5069 = vpop.f32.mrf.mxu0
        %v5070 = vadd.f32 %v4981, %v5069
        %5071 = vmatmul.bf16.gmra.mxu0 %v4199
        %v5072 = vpop.f32.mrf.mxu0
        %v5073 = vadd.f32 %v4984, %v5072
        %v5074 = vpop.f32.mrf.mxu0
        %v5075 = vadd.f32 %v4986, %v5074
        %5076 = vmatmul.bf16.gmra.mxu0 %v4202
        %v5077 = vpop.f32.mrf.mxu0
        %v5078 = vadd.f32 %v4989, %v5077
        %v5079 = vpop.f32.mrf.mxu0
        %v5080 = vadd.f32 %v4991, %v5079
        %5081 = vmatmul.bf16.gmra.mxu0 %v4205
        %v5082 = vpop.f32.mrf.mxu0
        %v5083 = vadd.f32 %v4994, %v5082
        %v5084 = vpop.f32.mrf.mxu0
        %v5085 = vadd.f32 %v4996, %v5084
        %5086 = vmatmul.bf16.gmra.mxu0 %v4208
        %v5087 = vpop.f32.mrf.mxu0
        %v5088 = vadd.f32 %v4999, %v5087
        %v5089 = vpop.f32.mrf.mxu0
        %v5090 = vadd.f32 %v5001, %v5089
        %5091 = vmatmul.bf16.gmra.mxu0 %v4211
        %v5092 = vpop.f32.mrf.mxu0
        %v5093 = vadd.f32 %v5004, %v5092
        %v5094 = vpop.f32.mrf.mxu0
        %v5095 = vadd.f32 %v5006, %v5094
        %5096 = vmatmul.bf16.gmra.mxu0 %v4214
        %v5097 = vpop.f32.mrf.mxu0
        %v5098 = vadd.f32 %v5009, %v5097
        %v5099 = vpop.f32.mrf.mxu0
        %v5100 = vadd.f32 %v5011, %v5099
        %5101 = vmatmul.bf16.gmra.mxu0 %v4217
        %v5102 = vpop.f32.mrf.mxu0
        %v5103 = vadd.f32 %v5014, %v5102
        %v5104 = vpop.f32.mrf.mxu0
        %v5105 = vadd.f32 %v5016, %v5104
        %5106 = vdwg.mxu0
        %v5107 = vld [vmem:[#allocation2 + $0x30] sm:$0xff]
        %v5108 = vld [vmem:[#allocation2 + $0x38] sm:$0xf]
        %v5109 = vld [vmem:[#allocation2 + $0x3c] sm:$0xff]
        %v5110 = vld [vmem:[#allocation2 + $0x44] sm:$0xf]
        %v5111 = vld [vmem:[#allocation2 + $0x48] sm:$0xff]
        %v5112 = vld [vmem:[#allocation2 + $0x50] sm:$0xf]
        %v5113 = vld [vmem:[#allocation2 + $0x54] sm:$0xff]
        %v5114 = vld [vmem:[#allocation2 + $0x5c] sm:$0xf]
        %v5115 = vld [vmem:[#allocation2 + $0x60] sm:$0xff]
        %v5116 = vld [vmem:[#allocation2 + $0x68] sm:$0xf]
        %v5117 = vld [vmem:[#allocation2 + $0x6c] sm:$0xff]
        %v5118 = vld [vmem:[#allocation2 + $0x74] sm:$0xf]
        %v5119 = vld [vmem:[#allocation2 + $0x78] sm:$0xff]
        %v5120 = vld [vmem:[#allocation2 + $0x80] sm:$0xf]
        %v5121 = vld [vmem:[#allocation2 + $0x84] sm:$0xff]
        %v5122 = vld [vmem:[#allocation2 + $0x8c] sm:$0xf]
        %v5123 = vld [vmem:[#allocation2 + $0x90] sm:$0xff]
        %v5124 = vld [vmem:[#allocation2 + $0x98] sm:$0xf]
        %v5125 = vld [vmem:[#allocation2 + $0x9c] sm:$0xff]
        %v5126 = vld [vmem:[#allocation2 + $0xa4] sm:$0xf]
        %v5127 = vld [vmem:[#allocation2 + $0xa8] sm:$0xff]
        %v5128 = vld [vmem:[#allocation2 + $0xb0] sm:$0xf]
        %v5129 = vld [vmem:[#allocation2 + $0xb4] sm:$0xff]
        %v5130 = vld [vmem:[#allocation2 + $0xbc] sm:$0xf]
        %v5131 = vld [vmem:[#allocation2 + $0xc0] sm:$0xff]
        %v5132 = vld [vmem:[#allocation2 + $0xc8] sm:$0xf]
        %v5133 = vld [vmem:[#allocation2 + $0xcc] sm:$0xff]
        %v5134 = vld [vmem:[#allocation2 + $0xd4] sm:$0xf]
        %v5135 = vld [vmem:[#allocation2 + $0xd8] sm:$0xff]
        %v5136 = vld [vmem:[#allocation2 + $0xe0] sm:$0xf]
        %v5137 = vld [vmem:[#allocation2 + $0xe4] sm:$0xff]
        %v5138 = vld [vmem:[#allocation2 + $0xec] sm:$0xf]
        %v5139 = vld [vmem:[#allocation2 + $0xf0] sm:$0xff]
        %v5140 = vld [vmem:[#allocation2 + $0xf8] sm:$0xf]
        %v5141 = vld [vmem:[#allocation2 + $0xfc] sm:$0xff]
        %v5142 = vld [vmem:[#allocation2 + $0x104] sm:$0xf]
        %v5143 = vld [vmem:[#allocation2 + $0x108] sm:$0xff]
        %v5144 = vld [vmem:[#allocation2 + $0x110] sm:$0xf]
        %v5145 = vld [vmem:[#allocation2 + $0x114] sm:$0xff]
        %v5146 = vld [vmem:[#allocation2 + $0x11c] sm:$0xf]
        %v5147 = vld [vmem:[#allocation2 + $0x120] sm:$0xff]
        %v5148 = vld [vmem:[#allocation2 + $0x128] sm:$0xf]
        %v5149 = vld [vmem:[#allocation2 + $0x12c] sm:$0xff]
        %v5150 = vld [vmem:[#allocation2 + $0x134] sm:$0xf]
        %v5151 = vld [vmem:[#allocation2 + $0x138] sm:$0xff]
        %v5152 = vld [vmem:[#allocation2 + $0x140] sm:$0xf]
        %v5153 = vld [vmem:[#allocation2 + $0x144] sm:$0xff]
        %v5154 = vld [vmem:[#allocation2 + $0x14c] sm:$0xf]
        %v5155 = vld [vmem:[#allocation2 + $0x150] sm:$0xff]
        %v5156 = vld [vmem:[#allocation2 + $0x158] sm:$0xf]
        %v5157 = vld [vmem:[#allocation2 + $0x15c] sm:$0xff]
        %v5158 = vld [vmem:[#allocation2 + $0x164] sm:$0xf]
        %v5159 = vld [vmem:[#allocation2 + $0x168] sm:$0xff]
        %v5160 = vld [vmem:[#allocation2 + $0x170] sm:$0xf]
        %v5161 = vld [vmem:[#allocation2 + $0x174] sm:$0xff]
        %v5162 = vld [vmem:[#allocation2 + $0x17c] sm:$0xf]
        %v5163 = vld [vmem:[#allocation2 + $0x180] sm:$0xff]
        %v5164 = vld [vmem:[#allocation2 + $0x188] sm:$0xf]
        %v5165 = vld [vmem:[#allocation2 + $0x18c] sm:$0xff]
        %v5166 = vld [vmem:[#allocation2 + $0x194] sm:$0xf]
        %v5167 = vld [vmem:[#allocation2 + $0x198] sm:$0xff]
        %v5168 = vld [vmem:[#allocation2 + $0x1a0] sm:$0xf]
        %v5169 = vld [vmem:[#allocation2 + $0x1a4] sm:$0xff]
        %v5170 = vld [vmem:[#allocation2 + $0x1ac] sm:$0xf]
        %s5171 = scalar_lea.vmem [#allocation10], 384
        %v5172 = vld [vmem:[%s5171] sm:$0xf]
        %v5173 = vld [vmem:[%s5171 + $0x4] sm:$0xf]
        %v5174 = vld [vmem:[%s5171 + $0x8] sm:$0xf]
        %v5175 = vld [vmem:[%s5171 + $0xc] sm:$0xf]
        %v5176 = vld [vmem:[%s5171 + $0x10] sm:$0xf]
        %v5177 = vld [vmem:[%s5171 + $0x14] sm:$0xf]
        %v5178 = vld [vmem:[%s5171 + $0x18] sm:$0xf]
        %v5179 = vld [vmem:[%s5171 + $0x1c] sm:$0xf]
        %v5180 = vld [vmem:[%s5171 + $0x20] sm:$0xf]
        %v5181 = vld [vmem:[%s5171 + $0x24] sm:$0xf]
        %v5182 = vld [vmem:[%s5171 + $0x28] sm:$0xf]
        %v5183 = vld [vmem:[%s5171 + $0x2c] sm:$0xf]
        %v5184 = vld [vmem:[%s5171 + $0x30] sm:$0xf]
        %v5185 = vld [vmem:[%s5171 + $0x34] sm:$0xf]
        %v5186 = vld [vmem:[%s5171 + $0x38] sm:$0xf]
        %v5187 = vld [vmem:[%s5171 + $0x3c] sm:$0xf]
        %v5188 = vld [vmem:[%s5171 + $0x40] sm:$0xf]
        %v5189 = vld [vmem:[%s5171 + $0x44] sm:$0xf]
        %v5190 = vld [vmem:[%s5171 + $0x48] sm:$0xf]
        %v5191 = vld [vmem:[%s5171 + $0x4c] sm:$0xf]
        %v5192 = vld [vmem:[%s5171 + $0x50] sm:$0xf]
        %v5193 = vld [vmem:[%s5171 + $0x54] sm:$0xf]
        %v5194 = vld [vmem:[%s5171 + $0x58] sm:$0xf]
        %v5195 = vld [vmem:[%s5171 + $0x5c] sm:$0xf]
        %v5196 = vld [vmem:[%s5171 + $0x60] sm:$0xf]
        %v5197 = vld [vmem:[%s5171 + $0x64] sm:$0xf]
        %v5198 = vld [vmem:[%s5171 + $0x68] sm:$0xf]
        %v5199 = vld [vmem:[%s5171 + $0x6c] sm:$0xf]
        %v5200 = vld [vmem:[%s5171 + $0x70] sm:$0xf]
        %v5201 = vld [vmem:[%s5171 + $0x74] sm:$0xf]
        %v5202 = vld [vmem:[%s5171 + $0x78] sm:$0xf]
        %v5203 = vld [vmem:[%s5171 + $0x7c] sm:$0xf]
        %v5204 = vld [vmem:[%s5171 + $0x80] sm:$0xf]
        %v5205 = vld [vmem:[%s5171 + $0x84] sm:$0xf]
        %v5206 = vld [vmem:[%s5171 + $0x88] sm:$0xf]
        %v5207 = vld [vmem:[%s5171 + $0x8c] sm:$0xf]
        %v5208 = vld [vmem:[%s5171 + $0x90] sm:$0xf]
        %v5209 = vld [vmem:[%s5171 + $0x94] sm:$0xf]
        %v5210 = vld [vmem:[%s5171 + $0x98] sm:$0xf]
        %v5211 = vld [vmem:[%s5171 + $0x9c] sm:$0xf]
        %v5212 = vld [vmem:[%s5171 + $0xa0] sm:$0xf]
        %v5213 = vld [vmem:[%s5171 + $0xa4] sm:$0xf]
        %v5214 = vld [vmem:[%s5171 + $0xa8] sm:$0xf]
        %v5215 = vld [vmem:[%s5171 + $0xac] sm:$0xf]
        %v5216 = vld [vmem:[%s5171 + $0xb0] sm:$0xf]
        %v5217 = vld [vmem:[%s5171 + $0xb4] sm:$0xf]
        %v5218 = vld [vmem:[%s5171 + $0xb8] sm:$0xf]
        %v5219 = vld [vmem:[%s5171 + $0xbc] sm:$0xf]
        %v5284 = vunpack.c.l.b16 %v5107
        %v5285 = vunpack.c.h.b16 %v5107
        %v5286 = vunpack.c.l.b16 %v5108
        %v5287 = vunpack.c.l.b16 %v5109
        %v5288 = vunpack.c.h.b16 %v5109
        %v5289 = vunpack.c.l.b16 %v5110
        %v5290 = vunpack.c.l.b16 %v5111
        %v5291 = vunpack.c.h.b16 %v5111
        %v5292 = vunpack.c.l.b16 %v5112
        %v5293 = vunpack.c.l.b16 %v5113
        %v5294 = vunpack.c.h.b16 %v5113
        %v5295 = vunpack.c.l.b16 %v5114
        %v5296 = vunpack.c.l.b16 %v5115
        %v5297 = vunpack.c.h.b16 %v5115
        %v5298 = vunpack.c.l.b16 %v5116
        %v5299 = vunpack.c.l.b16 %v5117
        %v5300 = vunpack.c.h.b16 %v5117
        %v5301 = vunpack.c.l.b16 %v5118
        %v5302 = vunpack.c.l.b16 %v5119
        %v5303 = vunpack.c.h.b16 %v5119
        %v5304 = vunpack.c.l.b16 %v5120
        %v5305 = vunpack.c.l.b16 %v5121
        %v5306 = vunpack.c.h.b16 %v5121
        %v5307 = vunpack.c.l.b16 %v5122
        %v5308 = vunpack.c.l.b16 %v5123
        %v5309 = vunpack.c.h.b16 %v5123
        %v5310 = vunpack.c.l.b16 %v5124
        %v5311 = vunpack.c.l.b16 %v5125
        %v5312 = vunpack.c.h.b16 %v5125
        %v5313 = vunpack.c.l.b16 %v5126
        %v5314 = vunpack.c.l.b16 %v5127
        %v5315 = vunpack.c.h.b16 %v5127
        %v5316 = vunpack.c.l.b16 %v5128
        %v5317 = vunpack.c.l.b16 %v5129
        %v5318 = vunpack.c.h.b16 %v5129
        %v5319 = vunpack.c.l.b16 %v5130
        %v5320 = vunpack.c.l.b16 %v5131
        %v5321 = vunpack.c.h.b16 %v5131
        %v5322 = vunpack.c.l.b16 %v5132
        %v5323 = vunpack.c.l.b16 %v5133
        %v5324 = vunpack.c.h.b16 %v5133
        %v5325 = vunpack.c.l.b16 %v5134
        %v5326 = vunpack.c.l.b16 %v5135
        %v5327 = vunpack.c.h.b16 %v5135
        %v5328 = vunpack.c.l.b16 %v5136
        %v5329 = vunpack.c.l.b16 %v5137
        %v5330 = vunpack.c.h.b16 %v5137
        %v5331 = vunpack.c.l.b16 %v5138
        %v5332 = vunpack.c.l.b16 %v5139
        %v5333 = vunpack.c.h.b16 %v5139
        %v5334 = vunpack.c.l.b16 %v5140
        %v5335 = vunpack.c.l.b16 %v5141
        %v5336 = vunpack.c.h.b16 %v5141
        %v5337 = vunpack.c.l.b16 %v5142
        %v5338 = vunpack.c.l.b16 %v5143
        %v5339 = vunpack.c.h.b16 %v5143
        %v5340 = vunpack.c.l.b16 %v5144
        %v5341 = vunpack.c.l.b16 %v5145
        %v5342 = vunpack.c.h.b16 %v5145
        %v5343 = vunpack.c.l.b16 %v5146
        %v5344 = vunpack.c.l.b16 %v5147
        %v5345 = vunpack.c.h.b16 %v5147
        %v5346 = vunpack.c.l.b16 %v5148
        %v5347 = vunpack.c.l.b16 %v5149
        %v5348 = vunpack.c.h.b16 %v5149
        %v5349 = vunpack.c.l.b16 %v5150
        %v5350 = vunpack.c.l.b16 %v5151
        %v5351 = vunpack.c.h.b16 %v5151
        %v5352 = vunpack.c.l.b16 %v5152
        %v5353 = vunpack.c.l.b16 %v5153
        %v5354 = vunpack.c.h.b16 %v5153
        %v5355 = vunpack.c.l.b16 %v5154
        %v5356 = vunpack.c.l.b16 %v5155
        %v5357 = vunpack.c.h.b16 %v5155
        %v5358 = vunpack.c.l.b16 %v5156
        %v5359 = vunpack.c.l.b16 %v5157
        %v5360 = vunpack.c.h.b16 %v5157
        %v5361 = vunpack.c.l.b16 %v5158
        %v5362 = vunpack.c.l.b16 %v5159
        %v5363 = vunpack.c.h.b16 %v5159
        %v5364 = vunpack.c.l.b16 %v5160
        %v5365 = vunpack.c.l.b16 %v5161
        %v5366 = vunpack.c.h.b16 %v5161
        %v5367 = vunpack.c.l.b16 %v5162
        %v5368 = vunpack.c.l.b16 %v5163
        %v5369 = vunpack.c.h.b16 %v5163
        %v5370 = vunpack.c.l.b16 %v5164
        %v5371 = vunpack.c.l.b16 %v5165
        %v5372 = vunpack.c.h.b16 %v5165
        %v5373 = vunpack.c.l.b16 %v5166
        %v5374 = vunpack.c.l.b16 %v5167
        %v5375 = vunpack.c.h.b16 %v5167
        %v5376 = vunpack.c.l.b16 %v5168
        %v5377 = vunpack.c.l.b16 %v5169
        %v5378 = vunpack.c.h.b16 %v5169
        %v5379 = vunpack.c.l.b16 %v5170
        %v5380 = vpack.c.b16 %v5287, %v5284
        %v5381 = vpack.c.b16 %v5288, %v5285
        %v5382 = vpack.c.b16 %v5289, %v5286
        %v5383 = vpack.c.b16 %v5293, %v5290
        %v5384 = vpack.c.b16 %v5294, %v5291
        %v5385 = vpack.c.b16 %v5295, %v5292
        %v5386 = vpack.c.b16 %v5299, %v5296
        %v5387 = vpack.c.b16 %v5300, %v5297
        %v5388 = vpack.c.b16 %v5301, %v5298
        %v5389 = vpack.c.b16 %v5305, %v5302
        %v5390 = vpack.c.b16 %v5306, %v5303
        %v5391 = vpack.c.b16 %v5307, %v5304
        %v5392 = vpack.c.b16 %v5311, %v5308
        %v5393 = vpack.c.b16 %v5312, %v5309
        %v5394 = vpack.c.b16 %v5313, %v5310
        %v5395 = vpack.c.b16 %v5317, %v5314
        %v5396 = vpack.c.b16 %v5318, %v5315
        %v5397 = vpack.c.b16 %v5319, %v5316
        %v5398 = vpack.c.b16 %v5323, %v5320
        %v5399 = vpack.c.b16 %v5324, %v5321
        %v5400 = vpack.c.b16 %v5325, %v5322
        %v5401 = vpack.c.b16 %v5329, %v5326
        %v5402 = vpack.c.b16 %v5330, %v5327
        %v5403 = vpack.c.b16 %v5331, %v5328
        %v5404 = vpack.c.b16 %v5335, %v5332
        %v5405 = vpack.c.b16 %v5336, %v5333
        %v5406 = vpack.c.b16 %v5337, %v5334
        %v5407 = vpack.c.b16 %v5341, %v5338
        %v5408 = vpack.c.b16 %v5342, %v5339
        %v5409 = vpack.c.b16 %v5343, %v5340
        %v5410 = vpack.c.b16 %v5347, %v5344
        %v5411 = vpack.c.b16 %v5348, %v5345
        %v5412 = vpack.c.b16 %v5349, %v5346
        %v5413 = vpack.c.b16 %v5353, %v5350
        %v5414 = vpack.c.b16 %v5354, %v5351
        %v5415 = vpack.c.b16 %v5355, %v5352
        %v5416 = vpack.c.b16 %v5359, %v5356
        %v5417 = vpack.c.b16 %v5360, %v5357
        %v5418 = vpack.c.b16 %v5361, %v5358
        %v5419 = vpack.c.b16 %v5365, %v5362
        %v5420 = vpack.c.b16 %v5366, %v5363
        %v5421 = vpack.c.b16 %v5367, %v5364
        %v5422 = vpack.c.b16 %v5371, %v5368
        %v5423 = vpack.c.b16 %v5372, %v5369
        %v5424 = vpack.c.b16 %v5373, %v5370
        %v5425 = vpack.c.b16 %v5377, %v5374
        %v5426 = vpack.c.b16 %v5378, %v5375
        %v5427 = vpack.c.b16 %v5379, %v5376
        %v5524 = vunpack.c.l.b16 %v5172
        %v5525 = vunpack.c.l.b16 %v5173
        %v5526 = vunpack.c.l.b16 %v5174
        %v5527 = vunpack.c.l.b16 %v5175
        %v5528 = vunpack.c.l.b16 %v5176
        %v5529 = vunpack.c.l.b16 %v5177
        %v5530 = vunpack.c.l.b16 %v5178
        %v5531 = vunpack.c.l.b16 %v5179
        %v5532 = vunpack.c.l.b16 %v5180
        %v5533 = vunpack.c.l.b16 %v5181
        %v5534 = vunpack.c.l.b16 %v5182
        %v5535 = vunpack.c.l.b16 %v5183
        %v5536 = vunpack.c.l.b16 %v5184
        %v5537 = vunpack.c.l.b16 %v5185
        %v5538 = vunpack.c.l.b16 %v5186
        %v5539 = vunpack.c.l.b16 %v5187
        %v5540 = vunpack.c.l.b16 %v5188
        %v5541 = vunpack.c.l.b16 %v5189
        %v5542 = vunpack.c.l.b16 %v5190
        %v5543 = vunpack.c.l.b16 %v5191
        %v5544 = vunpack.c.l.b16 %v5192
        %v5545 = vunpack.c.l.b16 %v5193
        %v5546 = vunpack.c.l.b16 %v5194
        %v5547 = vunpack.c.l.b16 %v5195
        %v5548 = vunpack.c.l.b16 %v5196
        %v5549 = vunpack.c.l.b16 %v5197
        %v5550 = vunpack.c.l.b16 %v5198
        %v5551 = vunpack.c.l.b16 %v5199
        %v5552 = vunpack.c.l.b16 %v5200
        %v5553 = vunpack.c.l.b16 %v5201
        %v5554 = vunpack.c.l.b16 %v5202
        %v5555 = vunpack.c.l.b16 %v5203
        %v5556 = vunpack.c.l.b16 %v5204
        %v5557 = vunpack.c.l.b16 %v5205
        %v5558 = vunpack.c.l.b16 %v5206
        %v5559 = vunpack.c.l.b16 %v5207
        %v5560 = vunpack.c.l.b16 %v5208
        %v5561 = vunpack.c.l.b16 %v5209
        %v5562 = vunpack.c.l.b16 %v5210
        %v5563 = vunpack.c.l.b16 %v5211
        %v5564 = vunpack.c.l.b16 %v5212
        %v5565 = vunpack.c.l.b16 %v5213
        %v5566 = vunpack.c.l.b16 %v5214
        %v5567 = vunpack.c.l.b16 %v5215
        %v5568 = vunpack.c.l.b16 %v5216
        %v5569 = vunpack.c.l.b16 %v5217
        %v5570 = vunpack.c.l.b16 %v5218
        %v5571 = vunpack.c.l.b16 %v5219
        %v5572 = vpack.c.b16 %v5525, %v5524
        %v5573 = vpack.c.b16 %v5527, %v5526
        %v5574 = vpack.c.b16 %v5529, %v5528
        %v5575 = vpack.c.b16 %v5531, %v5530
        %v5576 = vpack.c.b16 %v5533, %v5532
        %v5577 = vpack.c.b16 %v5535, %v5534
        %v5578 = vpack.c.b16 %v5537, %v5536
        %v5579 = vpack.c.b16 %v5539, %v5538
        %v5580 = vpack.c.b16 %v5541, %v5540
        %v5581 = vpack.c.b16 %v5543, %v5542
        %v5582 = vpack.c.b16 %v5545, %v5544
        %v5583 = vpack.c.b16 %v5547, %v5546
        %v5584 = vpack.c.b16 %v5549, %v5548
        %v5585 = vpack.c.b16 %v5551, %v5550
        %v5586 = vpack.c.b16 %v5553, %v5552
        %v5587 = vpack.c.b16 %v5555, %v5554
        %v5588 = vpack.c.b16 %v5557, %v5556
        %v5589 = vpack.c.b16 %v5559, %v5558
        %v5590 = vpack.c.b16 %v5561, %v5560
        %v5591 = vpack.c.b16 %v5563, %v5562
        %v5592 = vpack.c.b16 %v5565, %v5564
        %v5593 = vpack.c.b16 %v5567, %v5566
        %v5594 = vpack.c.b16 %v5569, %v5568
        %v5595 = vpack.c.b16 %v5571, %v5570
        %5620 = vmatpush.bf16.msra.mxu0 %v5579
        %5621 = vmatpush.bf16.msra.mxu0 %v5578
        %5622 = vmatpush.bf16.msra.mxu0 %v5577
        %5623 = vmatpush.bf16.msra.mxu0 %v5576
        %5624 = vmatpush.bf16.msra.mxu0 %v5575
        %5625 = vmatpush.bf16.msra.mxu0 %v5574
        %5626 = vmatpush.bf16.msra.mxu0 %v5573
        %5627 = vmatpush.bf16.msra.mxu0 %v5572
        %5628 = vmatmul.bf16.gmra.mxu0 %v5380
        %v5629 = vpop.f32.mrf.mxu0
        %v5630 = vadd.f32 0.0, %v5629
        %v5631 = vpop.f32.mrf.mxu0
        %v5632 = vadd.f32 0.0, %v5631
        %5633 = vmatmul.bf16.gmra.mxu0 %v5383
        %v5634 = vpop.f32.mrf.mxu0
        %v5635 = vadd.f32 0.0, %v5634
        %v5636 = vpop.f32.mrf.mxu0
        %v5637 = vadd.f32 0.0, %v5636
        %5638 = vmatmul.bf16.gmra.mxu0 %v5386
        %v5639 = vpop.f32.mrf.mxu0
        %v5640 = vadd.f32 0.0, %v5639
        %v5641 = vpop.f32.mrf.mxu0
        %v5642 = vadd.f32 0.0, %v5641
        %5643 = vmatmul.bf16.gmra.mxu0 %v5389
        %v5644 = vpop.f32.mrf.mxu0
        %v5645 = vadd.f32 0.0, %v5644
        %v5646 = vpop.f32.mrf.mxu0
        %v5647 = vadd.f32 0.0, %v5646
        %5648 = vmatmul.bf16.gmra.mxu0 %v5392
        %v5649 = vpop.f32.mrf.mxu0
        %v5650 = vadd.f32 0.0, %v5649
        %v5651 = vpop.f32.mrf.mxu0
        %v5652 = vadd.f32 0.0, %v5651
        %5653 = vmatmul.bf16.gmra.mxu0 %v5395
        %v5654 = vpop.f32.mrf.mxu0
        %v5655 = vadd.f32 0.0, %v5654
        %v5656 = vpop.f32.mrf.mxu0
        %v5657 = vadd.f32 0.0, %v5656
        %5658 = vmatmul.bf16.gmra.mxu0 %v5398
        %v5659 = vpop.f32.mrf.mxu0
        %v5660 = vadd.f32 0.0, %v5659
        %v5661 = vpop.f32.mrf.mxu0
        %v5662 = vadd.f32 0.0, %v5661
        %5663 = vmatmul.bf16.gmra.mxu0 %v5401
        %v5664 = vpop.f32.mrf.mxu0
        %v5665 = vadd.f32 0.0, %v5664
        %v5666 = vpop.f32.mrf.mxu0
        %v5667 = vadd.f32 0.0, %v5666
        %5668 = vmatmul.bf16.gmra.mxu0 %v5404
        %v5669 = vpop.f32.mrf.mxu0
        %v5670 = vadd.f32 0.0, %v5669
        %v5671 = vpop.f32.mrf.mxu0
        %v5672 = vadd.f32 0.0, %v5671
        %5673 = vmatmul.bf16.gmra.mxu0 %v5407
        %v5674 = vpop.f32.mrf.mxu0
        %v5675 = vadd.f32 0.0, %v5674
        %v5676 = vpop.f32.mrf.mxu0
        %v5677 = vadd.f32 0.0, %v5676
        %5678 = vmatmul.bf16.gmra.mxu0 %v5410
        %v5679 = vpop.f32.mrf.mxu0
        %v5680 = vadd.f32 0.0, %v5679
        %v5681 = vpop.f32.mrf.mxu0
        %v5682 = vadd.f32 0.0, %v5681
        %5683 = vmatmul.bf16.gmra.mxu0 %v5413
        %v5684 = vpop.f32.mrf.mxu0
        %v5685 = vadd.f32 0.0, %v5684
        %v5686 = vpop.f32.mrf.mxu0
        %v5687 = vadd.f32 0.0, %v5686
        %5688 = vmatmul.bf16.gmra.mxu0 %v5416
        %v5689 = vpop.f32.mrf.mxu0
        %v5690 = vadd.f32 0.0, %v5689
        %v5691 = vpop.f32.mrf.mxu0
        %v5692 = vadd.f32 0.0, %v5691
        %5693 = vmatmul.bf16.gmra.mxu0 %v5419
        %v5694 = vpop.f32.mrf.mxu0
        %v5695 = vadd.f32 0.0, %v5694
        %v5696 = vpop.f32.mrf.mxu0
        %v5697 = vadd.f32 0.0, %v5696
        %5698 = vmatmul.bf16.gmra.mxu0 %v5422
        %v5699 = vpop.f32.mrf.mxu0
        %v5700 = vadd.f32 0.0, %v5699
        %v5701 = vpop.f32.mrf.mxu0
        %v5702 = vadd.f32 0.0, %v5701
        %5703 = vmatmul.bf16.gmra.mxu0 %v5425
        %v5704 = vpop.f32.mrf.mxu0
        %v5705 = vadd.f32 0.0, %v5704
        %v5706 = vpop.f32.mrf.mxu0
        %v5707 = vadd.f32 0.0, %v5706
        %5708 = vdwg.mxu0
        %5709 = vmatpush.bf16.msra.mxu0 %v5587
        %5710 = vmatpush.bf16.msra.mxu0 %v5586
        %5711 = vmatpush.bf16.msra.mxu0 %v5585
        %5712 = vmatpush.bf16.msra.mxu0 %v5584
        %5713 = vmatpush.bf16.msra.mxu0 %v5583
        %5714 = vmatpush.bf16.msra.mxu0 %v5582
        %5715 = vmatpush.bf16.msra.mxu0 %v5581
        %5716 = vmatpush.bf16.msra.mxu0 %v5580
        %5717 = vmatmul.bf16.gmra.mxu0 %v5381
        %v5718 = vpop.f32.mrf.mxu0
        %v5719 = vadd.f32 %v5630, %v5718
        %v5720 = vpop.f32.mrf.mxu0
        %v5721 = vadd.f32 %v5632, %v5720
        %5722 = vmatmul.bf16.gmra.mxu0 %v5384
        %v5723 = vpop.f32.mrf.mxu0
        %v5724 = vadd.f32 %v5635, %v5723
        %v5725 = vpop.f32.mrf.mxu0
        %v5726 = vadd.f32 %v5637, %v5725
        %5727 = vmatmul.bf16.gmra.mxu0 %v5387
        %v5728 = vpop.f32.mrf.mxu0
        %v5729 = vadd.f32 %v5640, %v5728
        %v5730 = vpop.f32.mrf.mxu0
        %v5731 = vadd.f32 %v5642, %v5730
        %5732 = vmatmul.bf16.gmra.mxu0 %v5390
        %v5733 = vpop.f32.mrf.mxu0
        %v5734 = vadd.f32 %v5645, %v5733
        %v5735 = vpop.f32.mrf.mxu0
        %v5736 = vadd.f32 %v5647, %v5735
        %5737 = vmatmul.bf16.gmra.mxu0 %v5393
        %v5738 = vpop.f32.mrf.mxu0
        %v5739 = vadd.f32 %v5650, %v5738
        %v5740 = vpop.f32.mrf.mxu0
        %v5741 = vadd.f32 %v5652, %v5740
        %5742 = vmatmul.bf16.gmra.mxu0 %v5396
        %v5743 = vpop.f32.mrf.mxu0
        %v5744 = vadd.f32 %v5655, %v5743
        %v5745 = vpop.f32.mrf.mxu0
        %v5746 = vadd.f32 %v5657, %v5745
        %5747 = vmatmul.bf16.gmra.mxu0 %v5399
        %v5748 = vpop.f32.mrf.mxu0
        %v5749 = vadd.f32 %v5660, %v5748
        %v5750 = vpop.f32.mrf.mxu0
        %v5751 = vadd.f32 %v5662, %v5750
        %5752 = vmatmul.bf16.gmra.mxu0 %v5402
        %v5753 = vpop.f32.mrf.mxu0
        %v5754 = vadd.f32 %v5665, %v5753
        %v5755 = vpop.f32.mrf.mxu0
        %v5756 = vadd.f32 %v5667, %v5755
        %5757 = vmatmul.bf16.gmra.mxu0 %v5405
        %v5758 = vpop.f32.mrf.mxu0
        %v5759 = vadd.f32 %v5670, %v5758
        %v5760 = vpop.f32.mrf.mxu0
        %v5761 = vadd.f32 %v5672, %v5760
        %5762 = vmatmul.bf16.gmra.mxu0 %v5408
        %v5763 = vpop.f32.mrf.mxu0
        %v5764 = vadd.f32 %v5675, %v5763
        %v5765 = vpop.f32.mrf.mxu0
        %v5766 = vadd.f32 %v5677, %v5765
        %5767 = vmatmul.bf16.gmra.mxu0 %v5411
        %v5768 = vpop.f32.mrf.mxu0
        %v5769 = vadd.f32 %v5680, %v5768
        %v5770 = vpop.f32.mrf.mxu0
        %v5771 = vadd.f32 %v5682, %v5770
        %5772 = vmatmul.bf16.gmra.mxu0 %v5414
        %v5773 = vpop.f32.mrf.mxu0
        %v5774 = vadd.f32 %v5685, %v5773
        %v5775 = vpop.f32.mrf.mxu0
        %v5776 = vadd.f32 %v5687, %v5775
        %5777 = vmatmul.bf16.gmra.mxu0 %v5417
        %v5778 = vpop.f32.mrf.mxu0
        %v5779 = vadd.f32 %v5690, %v5778
        %v5780 = vpop.f32.mrf.mxu0
        %v5781 = vadd.f32 %v5692, %v5780
        %5782 = vmatmul.bf16.gmra.mxu0 %v5420
        %v5783 = vpop.f32.mrf.mxu0
        %v5784 = vadd.f32 %v5695, %v5783
        %v5785 = vpop.f32.mrf.mxu0
        %v5786 = vadd.f32 %v5697, %v5785
        %5787 = vmatmul.bf16.gmra.mxu0 %v5423
        %v5788 = vpop.f32.mrf.mxu0
        %v5789 = vadd.f32 %v5700, %v5788
        %v5790 = vpop.f32.mrf.mxu0
        %v5791 = vadd.f32 %v5702, %v5790
        %5792 = vmatmul.bf16.gmra.mxu0 %v5426
        %v5793 = vpop.f32.mrf.mxu0
        %v5794 = vadd.f32 %v5705, %v5793
        %v5795 = vpop.f32.mrf.mxu0
        %v5796 = vadd.f32 %v5707, %v5795
        %5797 = vdwg.mxu0
        %5798 = vmatpush.bf16.msra.mxu0 %v5595
        %5799 = vmatpush.bf16.msra.mxu0 %v5594
        %5800 = vmatpush.bf16.msra.mxu0 %v5593
        %5801 = vmatpush.bf16.msra.mxu0 %v5592
        %5802 = vmatpush.bf16.msra.mxu0 %v5591
        %5803 = vmatpush.bf16.msra.mxu0 %v5590
        %5804 = vmatpush.bf16.msra.mxu0 %v5589
        %5805 = vmatpush.bf16.msra.mxu0 %v5588
        %5806 = vmatmul.bf16.gmra.mxu0 %v5382
        %v5807 = vpop.f32.mrf.mxu0
        %v5808 = vadd.f32 %v5719, %v5807
        %v5809 = vpop.f32.mrf.mxu0
        %v5810 = vadd.f32 %v5721, %v5809
        %5811 = vmatmul.bf16.gmra.mxu0 %v5385
        %v5812 = vpop.f32.mrf.mxu0
        %v5813 = vadd.f32 %v5724, %v5812
        %v5814 = vpop.f32.mrf.mxu0
        %v5815 = vadd.f32 %v5726, %v5814
        %5816 = vmatmul.bf16.gmra.mxu0 %v5388
        %v5817 = vpop.f32.mrf.mxu0
        %v5818 = vadd.f32 %v5729, %v5817
        %v5819 = vpop.f32.mrf.mxu0
        %v5820 = vadd.f32 %v5731, %v5819
        %5821 = vmatmul.bf16.gmra.mxu0 %v5391
        %v5822 = vpop.f32.mrf.mxu0
        %v5823 = vadd.f32 %v5734, %v5822
        %v5824 = vpop.f32.mrf.mxu0
        %v5825 = vadd.f32 %v5736, %v5824
        %5826 = vmatmul.bf16.gmra.mxu0 %v5394
        %v5827 = vpop.f32.mrf.mxu0
        %v5828 = vadd.f32 %v5739, %v5827
        %v5829 = vpop.f32.mrf.mxu0
        %v5830 = vadd.f32 %v5741, %v5829
        %5831 = vmatmul.bf16.gmra.mxu0 %v5397
        %v5832 = vpop.f32.mrf.mxu0
        %v5833 = vadd.f32 %v5744, %v5832
        %v5834 = vpop.f32.mrf.mxu0
        %v5835 = vadd.f32 %v5746, %v5834
        %5836 = vmatmul.bf16.gmra.mxu0 %v5400
        %v5837 = vpop.f32.mrf.mxu0
        %v5838 = vadd.f32 %v5749, %v5837
        %v5839 = vpop.f32.mrf.mxu0
        %v5840 = vadd.f32 %v5751, %v5839
        %5841 = vmatmul.bf16.gmra.mxu0 %v5403
        %v5842 = vpop.f32.mrf.mxu0
        %v5843 = vadd.f32 %v5754, %v5842
        %v5844 = vpop.f32.mrf.mxu0
        %v5845 = vadd.f32 %v5756, %v5844
        %5846 = vmatmul.bf16.gmra.mxu0 %v5406
        %v5847 = vpop.f32.mrf.mxu0
        %v5848 = vadd.f32 %v5759, %v5847
        %v5849 = vpop.f32.mrf.mxu0
        %v5850 = vadd.f32 %v5761, %v5849
        %5851 = vmatmul.bf16.gmra.mxu0 %v5409
        %v5852 = vpop.f32.mrf.mxu0
        %v5853 = vadd.f32 %v5764, %v5852
        %v5854 = vpop.f32.mrf.mxu0
        %v5855 = vadd.f32 %v5766, %v5854
        %5856 = vmatmul.bf16.gmra.mxu0 %v5412
        %v5857 = vpop.f32.mrf.mxu0
        %v5858 = vadd.f32 %v5769, %v5857
        %v5859 = vpop.f32.mrf.mxu0
        %v5860 = vadd.f32 %v5771, %v5859
        %5861 = vmatmul.bf16.gmra.mxu0 %v5415
        %v5862 = vpop.f32.mrf.mxu0
        %v5863 = vadd.f32 %v5774, %v5862
        %v5864 = vpop.f32.mrf.mxu0
        %v5865 = vadd.f32 %v5776, %v5864
        %5866 = vmatmul.bf16.gmra.mxu0 %v5418
        %v5867 = vpop.f32.mrf.mxu0
        %v5868 = vadd.f32 %v5779, %v5867
        %v5869 = vpop.f32.mrf.mxu0
        %v5870 = vadd.f32 %v5781, %v5869
        %5871 = vmatmul.bf16.gmra.mxu0 %v5421
        %v5872 = vpop.f32.mrf.mxu0
        %v5873 = vadd.f32 %v5784, %v5872
        %v5874 = vpop.f32.mrf.mxu0
        %v5875 = vadd.f32 %v5786, %v5874
        %5876 = vmatmul.bf16.gmra.mxu0 %v5424
        %v5877 = vpop.f32.mrf.mxu0
        %v5878 = vadd.f32 %v5789, %v5877
        %v5879 = vpop.f32.mrf.mxu0
        %v5880 = vadd.f32 %v5791, %v5879
        %5881 = vmatmul.bf16.gmra.mxu0 %v5427
        %v5882 = vpop.f32.mrf.mxu0
        %v5883 = vadd.f32 %v5794, %v5882
        %v5884 = vpop.f32.mrf.mxu0
        %v5885 = vadd.f32 %v5796, %v5884
        %5886 = vdwg.mxu0
        %v5887 = vadd.f32 %v5028, %v5808
        %v5888 = vadd.f32 %v5030, %v5810
        %v5889 = vadd.f32 %v5033, %v5813
        %v5890 = vadd.f32 %v5035, %v5815
        %v5891 = vadd.f32 %v5038, %v5818
        %v5892 = vadd.f32 %v5040, %v5820
        %v5893 = vadd.f32 %v5043, %v5823
        %v5894 = vadd.f32 %v5045, %v5825
        %v5895 = vadd.f32 %v5048, %v5828
        %v5896 = vadd.f32 %v5050, %v5830
        %v5897 = vadd.f32 %v5053, %v5833
        %v5898 = vadd.f32 %v5055, %v5835
        %v5899 = vadd.f32 %v5058, %v5838
        %v5900 = vadd.f32 %v5060, %v5840
        %v5901 = vadd.f32 %v5063, %v5843
        %v5902 = vadd.f32 %v5065, %v5845
        %v5903 = vadd.f32 %v5068, %v5848
        %v5904 = vadd.f32 %v5070, %v5850
        %v5905 = vadd.f32 %v5073, %v5853
        %v5906 = vadd.f32 %v5075, %v5855
        %v5907 = vadd.f32 %v5078, %v5858
        %v5908 = vadd.f32 %v5080, %v5860
        %v5909 = vadd.f32 %v5083, %v5863
        %v5910 = vadd.f32 %v5085, %v5865
        %v5911 = vadd.f32 %v5088, %v5868
        %v5912 = vadd.f32 %v5090, %v5870
        %v5913 = vadd.f32 %v5093, %v5873
        %v5914 = vadd.f32 %v5095, %v5875
        %v5915 = vadd.f32 %v5098, %v5878
        %v5916 = vadd.f32 %v5100, %v5880
        %v5917 = vadd.f32 %v5103, %v5883
        %v5918 = vadd.f32 %v5105, %v5885
        %v5919 = vrot.slane %v5887, 1
        %v5920 = vrot.slane %v5888, 1
        %v5921 = vrot.slane %v5889, 1
        %v5922 = vrot.slane %v5890, 1
        %v5923 = vrot.slane %v5891, 1
        %v5924 = vrot.slane %v5892, 1
        %v5925 = vrot.slane %v5893, 1
        %v5926 = vrot.slane %v5894, 1
        %v5927 = vrot.slane %v5895, 1
        %v5928 = vrot.slane %v5896, 1
        %v5929 = vrot.slane %v5897, 1
        %v5930 = vrot.slane %v5898, 1
        %v5931 = vrot.slane %v5899, 1
        %v5932 = vrot.slane %v5900, 1
        %v5933 = vrot.slane %v5901, 1
        %v5934 = vrot.slane %v5902, 1
        %v5935 = vrot.slane %v5903, 1
        %v5936 = vrot.slane %v5904, 1
        %v5937 = vrot.slane %v5905, 1
        %v5938 = vrot.slane %v5906, 1
        %v5939 = vrot.slane %v5907, 1
        %v5940 = vrot.slane %v5908, 1
        %v5941 = vrot.slane %v5909, 1
        %v5942 = vrot.slane %v5910, 1
        %v5943 = vrot.slane %v5911, 1
        %v5944 = vrot.slane %v5912, 1
        %v5945 = vrot.slane %v5913, 1
        %v5946 = vrot.slane %v5914, 1
        %v5947 = vrot.slane %v5915, 1
        %v5948 = vrot.slane %v5916, 1
        %v5949 = vrot.slane %v5917, 1
        %v5950 = vrot.slane %v5918, 1
        %v5951 = vsel %vm1132, %v5949, %v5950
        %v5952 = vsel %vm1132, %v5948, %v5949
        %v5953 = vsel %vm1132, %v5947, %v5948
        %v5954 = vsel %vm1132, %v5946, %v5947
        %v5955 = vsel %vm1132, %v5945, %v5946
        %v5956 = vsel %vm1132, %v5944, %v5945
        %v5957 = vsel %vm1132, %v5943, %v5944
        %v5958 = vsel %vm1132, %v5942, %v5943
        %v5959 = vsel %vm1132, %v5941, %v5942
        %v5960 = vsel %vm1132, %v5940, %v5941
        %v5961 = vsel %vm1132, %v5939, %v5940
        %v5962 = vsel %vm1132, %v5938, %v5939
        %v5963 = vsel %vm1132, %v5937, %v5938
        %v5964 = vsel %vm1132, %v5936, %v5937
        %v5965 = vsel %vm1132, %v5935, %v5936
        %v5966 = vsel %vm1132, %v5934, %v5935
        %v5967 = vsel %vm1132, %v5933, %v5934
        %v5968 = vsel %vm1132, %v5932, %v5933
        %v5969 = vsel %vm1132, %v5931, %v5932
        %v5970 = vsel %vm1132, %v5930, %v5931
        %v5971 = vsel %vm1132, %v5929, %v5930
        %v5972 = vsel %vm1132, %v5928, %v5929
        %v5973 = vsel %vm1132, %v5927, %v5928
        %v5974 = vsel %vm1132, %v5926, %v5927
        %v5975 = vsel %vm1132, %v5925, %v5926
        %v5976 = vsel %vm1132, %v5924, %v5925
        %v5977 = vsel %vm1132, %v5923, %v5924
        %v5978 = vsel %vm1132, %v5922, %v5923
        %v5979 = vsel %vm1132, %v5921, %v5922
        %v5980 = vsel %vm1132, %v5920, %v5921
        %v5981 = vsel %vm1132, %v5919, %v5920
        %v5982 = vsel %vm1132, %v5950, %v5919
        %v5983 = vadd.f32 %v5887, %v5981
        %v5984 = vadd.f32 %v5888, %v5980
        %v5985 = vadd.f32 %v5889, %v5979
        %v5986 = vadd.f32 %v5890, %v5978
        %v5987 = vadd.f32 %v5891, %v5977
        %v5988 = vadd.f32 %v5892, %v5976
        %v5989 = vadd.f32 %v5893, %v5975
        %v5990 = vadd.f32 %v5894, %v5974
        %v5991 = vadd.f32 %v5895, %v5973
        %v5992 = vadd.f32 %v5896, %v5972
        %v5993 = vadd.f32 %v5897, %v5971
        %v5994 = vadd.f32 %v5898, %v5970
        %v5995 = vadd.f32 %v5899, %v5969
        %v5996 = vadd.f32 %v5900, %v5968
        %v5997 = vadd.f32 %v5901, %v5967
        %v5998 = vadd.f32 %v5902, %v5966
        %v5999 = vadd.f32 %v5903, %v5965
        %v6000 = vadd.f32 %v5904, %v5964
        %v6001 = vadd.f32 %v5905, %v5963
        %v6002 = vadd.f32 %v5906, %v5962
        %v6003 = vadd.f32 %v5907, %v5961
        %v6004 = vadd.f32 %v5908, %v5960
        %v6005 = vadd.f32 %v5909, %v5959
        %v6006 = vadd.f32 %v5910, %v5958
        %v6007 = vadd.f32 %v5911, %v5957
        %v6008 = vadd.f32 %v5912, %v5956
        %v6009 = vadd.f32 %v5913, %v5955
        %v6010 = vadd.f32 %v5914, %v5954
        %v6011 = vadd.f32 %v5915, %v5953
        %v6012 = vadd.f32 %v5916, %v5952
        %v6013 = vadd.f32 %v5917, %v5951
        %v6014 = vadd.f32 %v5918, %v5982
        %6015 = vst [vmem:[#allocation3] sm:$0xff] %v5983
        %6016 = vst [vmem:[#allocation3 + $0x8] sm:$0xff] %v5984
        %6017 = vst [vmem:[#allocation3 + $0x10] sm:$0xff] %v5985
        %6018 = vst [vmem:[#allocation3 + $0x18] sm:$0xff] %v5986
        %6019 = vst [vmem:[#allocation3 + $0x20] sm:$0xff] %v5987
        %6020 = vst [vmem:[#allocation3 + $0x28] sm:$0xff] %v5988
        %6021 = vst [vmem:[#allocation3 + $0x30] sm:$0xff] %v5989
        %6022 = vst [vmem:[#allocation3 + $0x38] sm:$0xff] %v5990
        %6023 = vst [vmem:[#allocation3 + $0x40] sm:$0xff] %v5991
        %6024 = vst [vmem:[#allocation3 + $0x48] sm:$0xff] %v5992
        %6025 = vst [vmem:[#allocation3 + $0x50] sm:$0xff] %v5993
        %6026 = vst [vmem:[#allocation3 + $0x58] sm:$0xff] %v5994
        %6027 = vst [vmem:[#allocation3 + $0x60] sm:$0xff] %v5995
        %6028 = vst [vmem:[#allocation3 + $0x68] sm:$0xff] %v5996
        %6029 = vst [vmem:[#allocation3 + $0x70] sm:$0xff] %v5997
        %6030 = vst [vmem:[#allocation3 + $0x78] sm:$0xff] %v5998
        %6031 = vst [vmem:[#allocation3 + $0x80] sm:$0xff] %v5999
        %6032 = vst [vmem:[#allocation3 + $0x88] sm:$0xff] %v6000
        %6033 = vst [vmem:[#allocation3 + $0x90] sm:$0xff] %v6001
        %6034 = vst [vmem:[#allocation3 + $0x98] sm:$0xff] %v6002
        %6035 = vst [vmem:[#allocation3 + $0xa0] sm:$0xff] %v6003
        %6036 = vst [vmem:[#allocation3 + $0xa8] sm:$0xff] %v6004
        %6037 = vst [vmem:[#allocation3 + $0xb0] sm:$0xff] %v6005
        %6038 = vst [vmem:[#allocation3 + $0xb8] sm:$0xff] %v6006
        %6039 = vst [vmem:[#allocation3 + $0xc0] sm:$0xff] %v6007
        %6040 = vst [vmem:[#allocation3 + $0xc8] sm:$0xff] %v6008
        %6041 = vst [vmem:[#allocation3 + $0xd0] sm:$0xff] %v6009
        %6042 = vst [vmem:[#allocation3 + $0xd8] sm:$0xff] %v6010
        %6043 = vst [vmem:[#allocation3 + $0xe0] sm:$0xff] %v6011
        %6044 = vst [vmem:[#allocation3 + $0xe8] sm:$0xff] %v6012
        %6045 = vst [vmem:[#allocation3 + $0xf0] sm:$0xff] %v6013
        %6046 = vst [vmem:[#allocation3 + $0xf8] sm:$0xff] %v6014
        %v6047 = vld [vmem:[#allocation3] ss:$2 sm:$0xff]
        %s6048 = scalar_lea.vmem [#allocation3], 16
        %v6049 = vld [vmem:[%s6048] ss:$2 sm:$0xff]
        %s6050 = scalar_lea.vmem [#allocation3], 32
        %v6051 = vld [vmem:[%s6050] ss:$2 sm:$0xff]
        %s6052 = scalar_lea.vmem [#allocation3], 48
        %v6053 = vld [vmem:[%s6052] ss:$2 sm:$0xff]
        %s6054 = scalar_lea.vmem [#allocation3], 64
        %v6055 = vld [vmem:[%s6054] ss:$2 sm:$0xff]
        %s6056 = scalar_lea.vmem [#allocation3], 80
        %v6057 = vld [vmem:[%s6056] ss:$2 sm:$0xff]
        %s6058 = scalar_lea.vmem [#allocation3], 96
        %v6059 = vld [vmem:[%s6058] ss:$2 sm:$0xff]
        %s6060 = scalar_lea.vmem [#allocation3], 112
        %v6061 = vld [vmem:[%s6060] ss:$2 sm:$0xff]
        %s6062 = scalar_lea.vmem [#allocation3], 128
        %v6063 = vld [vmem:[%s6062] ss:$2 sm:$0xff]
        %s6064 = scalar_lea.vmem [#allocation3], 144
        %v6065 = vld [vmem:[%s6064] ss:$2 sm:$0xff]
        %s6066 = scalar_lea.vmem [#allocation3], 160
        %v6067 = vld [vmem:[%s6066] ss:$2 sm:$0xff]
        %s6068 = scalar_lea.vmem [#allocation3], 176
        %v6069 = vld [vmem:[%s6068] ss:$2 sm:$0xff]
        %s6070 = scalar_lea.vmem [#allocation3], 192
        %v6071 = vld [vmem:[%s6070] ss:$2 sm:$0xff]
        %s6072 = scalar_lea.vmem [#allocation3], 208
        %v6073 = vld [vmem:[%s6072] ss:$2 sm:$0xff]
        %s6074 = scalar_lea.vmem [#allocation3], 224
        %v6075 = vld [vmem:[%s6074] ss:$2 sm:$0xff]
        %s6076 = scalar_lea.vmem [#allocation3], 240
        %v6077 = vld [vmem:[%s6076] ss:$2 sm:$0xff]
        %v6078 = vadd.f32 %v6047, %v6049
        %v6079 = vadd.f32 %v6051, %v6053
        %v6080 = vadd.f32 %v6055, %v6057
        %v6081 = vadd.f32 %v6059, %v6061
        %v6082 = vadd.f32 %v6063, %v6065
        %v6083 = vadd.f32 %v6067, %v6069
        %v6084 = vadd.f32 %v6071, %v6073
        %v6085 = vadd.f32 %v6075, %v6077
        %v6086 = vmul.f32 %v6078, 0.25
        %v6087 = vmul.f32 %v6079, 0.25
        %v6088 = vmul.f32 %v6080, 0.25
        %v6089 = vmul.f32 %v6081, 0.25
        %v6090 = vmul.f32 %v6082, 0.25
        %v6091 = vmul.f32 %v6083, 0.25
        %v6092 = vmul.f32 %v6084, 0.25
        %v6093 = vmul.f32 %v6085, 0.25
        %v6094 = vld [vmem:[%s5] sm:$0x1]
        %v6096 = vperm.slane %v6094, 0
        %v6098 = vadd.f32 %v6086, %v6096
        %v6099 = vadd.f32 %v6087, %v6096
        %v6100 = vadd.f32 %v6088, %v6096
        %v6101 = vadd.f32 %v6089, %v6096
        %v6102 = vadd.f32 %v6090, %v6096
        %v6103 = vadd.f32 %v6091, %v6096
        %v6104 = vadd.f32 %v6092, %v6096
        %v6105 = vadd.f32 %v6093, %v6096
        %v6106 = vld [vmem:[%s363] sm:$0xf]
        %v6107 = vld [vmem:[%s363 + $0x4] sm:$0xf]
        %v6108 = vld [vmem:[%s363 + $0x8] sm:$0xf]
        %v6109 = vld [vmem:[%s363 + $0xc] sm:$0xf]
        %v6110 = vld [vmem:[%s363 + $0x10] sm:$0xf]
        %v6111 = vld [vmem:[%s363 + $0x14] sm:$0xf]
        %v6112 = vld [vmem:[%s363 + $0x18] sm:$0xf]
        %v6113 = vld [vmem:[%s363 + $0x1c] sm:$0xf]
        %v6114 = vld [vmem:[#allocation12] sm:$0xf]
        %v6115 = vld [vmem:[#allocation12 + $0x4] sm:$0xf]
        %v6116 = vld [vmem:[#allocation12 + $0x8] sm:$0xf]
        %v6117 = vld [vmem:[#allocation12 + $0xc] sm:$0xf]
        %v6118 = vld [vmem:[#allocation12 + $0x10] sm:$0xf]
        %v6119 = vld [vmem:[#allocation12 + $0x14] sm:$0xf]
        %v6120 = vld [vmem:[#allocation12 + $0x18] sm:$0xf]
        %v6121 = vld [vmem:[#allocation12 + $0x1c] sm:$0xf]
        %v6122 = vld [vmem:[#allocation12 + $0x20] sm:$0xf]
        %v6123 = vld [vmem:[#allocation12 + $0x24] sm:$0xf]
        %v6124 = vld [vmem:[#allocation12 + $0x28] sm:$0xf]
        %v6125 = vld [vmem:[#allocation12 + $0x2c] sm:$0xf]
        %v6126 = vld [vmem:[#allocation12 + $0x30] sm:$0xf]
        %v6127 = vld [vmem:[#allocation12 + $0x34] sm:$0xf]
        %v6128 = vld [vmem:[#allocation12 + $0x38] sm:$0xf]
        %v6129 = vld [vmem:[#allocation12 + $0x3c] sm:$0xf]
        %v6130 = vld [vmem:[%s7] sm:$0x1]
        %v6132 = vperm.slane %v6130, 0
        %v6142 = vunpack.c.l.b16 %v6106
        %v6143 = vunpack.c.l.b16 %v6107
        %v6144 = vunpack.c.l.b16 %v6108
        %v6145 = vunpack.c.l.b16 %v6109
        %v6146 = vunpack.c.l.b16 %v6110
        %v6147 = vunpack.c.l.b16 %v6111
        %v6148 = vunpack.c.l.b16 %v6112
        %v6149 = vunpack.c.l.b16 %v6113
        %v6150 = vpack.c.b16 %v6143, %v6142
        %v6151 = vpack.c.b16 %v6145, %v6144
        %v6152 = vpack.c.b16 %v6147, %v6146
        %v6153 = vpack.c.b16 %v6149, %v6148
        %v6174 = vunpack.c.l.b16 %v6114
        %v6175 = vunpack.c.l.b16 %v6115
        %v6176 = vunpack.c.l.b16 %v6116
        %v6177 = vunpack.c.l.b16 %v6117
        %v6178 = vunpack.c.l.b16 %v6118
        %v6179 = vunpack.c.l.b16 %v6119
        %v6180 = vunpack.c.l.b16 %v6120
        %v6181 = vunpack.c.l.b16 %v6121
        %v6182 = vunpack.c.l.b16 %v6122
        %v6183 = vunpack.c.l.b16 %v6123
        %v6184 = vunpack.c.l.b16 %v6124
        %v6185 = vunpack.c.l.b16 %v6125
        %v6186 = vunpack.c.l.b16 %v6126
        %v6187 = vunpack.c.l.b16 %v6127
        %v6188 = vunpack.c.l.b16 %v6128
        %v6189 = vunpack.c.l.b16 %v6129
        %v6190 = vpack.c.b16 %v6175, %v6174
        %v6191 = vpack.c.b16 %v6177, %v6176
        %v6192 = vpack.c.b16 %v6179, %v6178
        %v6193 = vpack.c.b16 %v6181, %v6180
        %v6194 = vpack.c.b16 %v6183, %v6182
        %v6195 = vpack.c.b16 %v6185, %v6184
        %v6196 = vpack.c.b16 %v6187, %v6186
        %v6197 = vpack.c.b16 %v6189, %v6188
        %6206 = vmatpush.bf16.msra.mxu0 %v6197
        %6207 = vmatpush.bf16.msra.mxu0 %v6196
        %6208 = vmatpush.bf16.msra.mxu0 %v6195
        %6209 = vmatpush.bf16.msra.mxu0 %v6194
        %6210 = vmatpush.bf16.msra.mxu0 %v6193
        %6211 = vmatpush.bf16.msra.mxu0 %v6192
        %6212 = vmatpush.bf16.msra.mxu0 %v6191
        %6213 = vmatpush.bf16.msra.mxu0 %v6190
        %6214 = vmatmul.bf16.gmra.mxu0 %v6150
        %v6215 = vpop.f32.mrf.mxu0
        %v6216 = vadd.f32 %v6132, %v6215
        %v6217 = vpop.f32.mrf.mxu0
        %v6218 = vadd.f32 %v6132, %v6217
        %6219 = vmatmul.bf16.gmra.mxu0 %v6151
        %v6220 = vpop.f32.mrf.mxu0
        %v6221 = vadd.f32 %v6132, %v6220
        %v6222 = vpop.f32.mrf.mxu0
        %v6223 = vadd.f32 %v6132, %v6222
        %6224 = vmatmul.bf16.gmra.mxu0 %v6152
        %v6225 = vpop.f32.mrf.mxu0
        %v6226 = vadd.f32 %v6132, %v6225
        %v6227 = vpop.f32.mrf.mxu0
        %v6228 = vadd.f32 %v6132, %v6227
        %6229 = vmatmul.bf16.gmra.mxu0 %v6153
        %v6230 = vpop.f32.mrf.mxu0
        %v6231 = vadd.f32 %v6132, %v6230
        %v6232 = vpop.f32.mrf.mxu0
        %v6233 = vadd.f32 %v6132, %v6232
        %6234 = vdwg.mxu0
        %v6235 = vadd.f32 %v6098, %v6216
        %v6236 = vadd.f32 %v6099, %v6218
        %v6237 = vadd.f32 %v6100, %v6221
        %v6238 = vadd.f32 %v6101, %v6223
        %v6239 = vadd.f32 %v6102, %v6226
        %v6240 = vadd.f32 %v6103, %v6228
        %v6241 = vadd.f32 %v6104, %v6231
        %v6242 = vadd.f32 %v6105, %v6233
        %6243 = vst [vmem:[%s416] sm:$0xff] %v6235
        %6244 = vst [vmem:[%s416 + $0x8] sm:$0xff] %v6236
        %6245 = vst [vmem:[%s416 + $0x10] sm:$0xff] %v6237
        %6246 = vst [vmem:[%s416 + $0x18] sm:$0xff] %v6238
        %6247 = vst [vmem:[%s416 + $0x20] sm:$0xff] %v6239
        %6248 = vst [vmem:[%s416 + $0x28] sm:$0xff] %v6240
        %6249 = vst [vmem:[%s416 + $0x30] sm:$0xff] %v6241
        %6250 = vst [vmem:[%s416 + $0x38] sm:$0xff] %v6242
        %s6251 = sand.u32 %s215, 1
        %s6252 = scalar_lea.sflag [#allocation6], %s6251
        %s6253 = sand.u32 %s215, 1
        %s6254 = smul.addr %s6253, 64
        %s6255 = scalar_lea.vmem [#allocation13], %s6254
        // Predicated region
        $region73: #{tpu_custom_call.1} parent=51 // pred_check
          %p6256 = pneg %p225
        $region74: #{tpu_custom_call.1} parent=51 // pred_check_branch
          %6258 = sbr.rel (%p6256) target = $region76
        $region75: #{tpu_custom_call.1} parent=51 // pred_region
          %6260 = vsyncadd %s6252, 0
          %s6261 = smul.addr %s29, 8
          %s6262 = smul.addr %s6261, 8
          %s6263 = scalar_lea.hbm %s8, %s6262
          %s6264 = sshll.u32 %s6255, 4
          %s6265 = int_to_ptr.vmem [resolvable:$true] %s6264
          %s6266 = sshll.u32 %s6263, 4
          %s6267 = int_to_ptr.hbm [resolvable:$true] %s6266
          %6272 = dma.vmem_to_hbm [thread:$0]  %s6265, 1024, %s6267, %s6252, 128, 128, 8
        $region76: #{tpu_custom_call.1} parent=51 // pred_fallthru
          _
      $region52: #{tpu_custom_call.1} parent=5 // pred_fallthru
        _
      %p6273 = scmp.le.s32.totalorder 2, %s24
      // Predicated region
      $region77: #{tpu_custom_call.1} parent=5 // pred_check
        %p6274 = pneg %p6273
      $region78: #{tpu_custom_call.1} parent=5 // pred_check_branch
        %6276 = sbr.rel (%p6274) target = $region80
      $region79: #{tpu_custom_call.1} parent=5 // pred_region
        %s6277 = ssub.s32 %s24, 2
        // Predicated region
        $region81: #{tpu_custom_call.1} parent=79 // pred_check
          %p6278 = pneg %p231
        $region82: #{tpu_custom_call.1} parent=79 // pred_check_branch
          %6280 = sbr.rel (%p6278) target = $region84
        $region83: #{tpu_custom_call.1} parent=79 // pred_region
          %s6281 = sand.u32 %s216, 1
          %s6282 = scalar_lea.sflag [#allocation6], %s6281
          %s6283 = sand.u32 %s216, 1
          %s6284 = smul.addr %s6283, 64
          %s6285 = scalar_lea.vmem [#allocation13], %s6284
          %6287 = dma.done %s6282, 1024
        $region84: #{tpu_custom_call.1} parent=79 // pred_fallthru
          _
      $region80: #{tpu_custom_call.1} parent=5 // pred_fallthru
        _
    $region6: #{tpu_custom_call.1} parent=1 // loop_footer
      %s28 = sadd.s32 1, %s24
    $region7: #{tpu_custom_call.1} parent=1 // loop_footer_branch
      %23 = sbr.rel target = $region3
    $region8: #{tpu_custom_call.1} parent=1 // loop_exit
      _
    %6288 = vsyncpa [#allocation5], 1
    %s6289 = scalar_lea.sflag [#allocation5], 1
    %6290 = vsyncpa %s6289, 1
    %6291 = vsyncpa [#allocation8], 1
    %s6292 = scalar_lea.sflag [#allocation8], 1
    %6293 = vsyncpa %s6292, 1
    %6294 = vsyncpa [#allocation11], 1
    %6295 = vsyncpa [#allocation6], 1
    %s6296 = scalar_lea.sflag [#allocation6], 1
    %6297 = vsyncpa %s6296, 1

</llo_original>
